<compile_context>
chip_gen: v7x
topology: tpu7x:2x2x1
jax: 0.10.0
libtpu: 0.0.40
codegen_flags: <defaults>
</compile_context>

<pallas_src>
import functools
import math

import jax
import jax.numpy as jnp
from jax.experimental import pallas as pl
from jax.experimental.pallas import tpu as pltpu


def _encoder_block_kernel(x_ref, mask_ref, pos_ref,
                          gc_ref, bc_ref, wdw_ref, wpw_ref, bpw_ref,
                          g1_ref, b1_ref, wq_ref, wkv_ref,
                          g2_ref, b2_ref, wf1_ref, bf1_ref, wf2_ref, bf2_ref,
                          out_ref, *, heads):
    """One batch element per grid step; x block is (1, L, D) channels-last."""
    L, D = x_ref.shape[1], x_ref.shape[2]
    conv_num = wpw_ref.shape[0]
    k = wdw_ref.shape[1]
    pad = k // 2
    dh = D // heads
    f32 = jnp.float32

    def layer_norm(v, gamma, beta):           # nn.LayerNorm(d_model), eps=1e-5
        mu = jnp.mean(v, axis=-1, keepdims=True)
        var = jnp.mean(jnp.square(v - mu), axis=-1, keepdims=True)
        return (v - mu) * jax.lax.rsqrt(var + 1e-5) * gamma + beta

    def mxu(a, w):                            # bf16 operands, f32 accumulation
        return jnp.dot(a.astype(jnp.bfloat16), w.astype(jnp.bfloat16),
                       preferred_element_type=f32)

    # PosEncoder: x + sinusoidal timing signal (precomputed, resident in VMEM).
    x = x_ref[0].astype(f32) + pos_ref[...]               # (L, D)
    mask = mask_ref[0].astype(f32)                        # (1, L), 1 = valid key

    gc, bc = gc_ref[...], bc_ref[...]
    wdw, bpw = wdw_ref[...], bpw_ref[...]

    # ---- conv blocks: LN -> depthwise conv(k) -> pointwise 1x1 + ReLU -> +res ----
    for i in range(conv_num):
        res = x
        y = layer_norm(x, gc[i], bc[i])
        # TODO(synk): F.dropout on even conv layers is identity in eval mode.
        zeros = jnp.zeros((pad, D), f32)
        ypad = jnp.concatenate([zeros, y, zeros], axis=0)  # (L + 2*pad, D)
        acc = jnp.zeros((L, D), f32)
        for t in range(k):                                 # depthwise taps (VPU)
            acc = acc + ypad[t:t + L, :] * wdw[i, t]
        y = jnp.maximum(mxu(acc, wpw_ref[i]) + bpw[i], 0.0)   # pointwise + ReLU
        x = y + res                     # layer_dropout (eval) = inputs + residual

    # ---- self-attention block ---------------------------------------------------
    res = x
    y = layer_norm(x, g1_ref[...], b1_ref[...])
    q = mxu(y, wq_ref[...]) * (dh ** -0.5)                # query_conv (scaled)
    kv = mxu(y, wkv_ref[...])                             # mem_conv -> [K | V]
    key, val = kv[:, :D], kv[:, D:]
    neg = (1.0 - mask) * (-1e30)                          # mask_logits additive term
    heads_out = []
    for h in range(heads):
        sl = slice(h * dh, (h + 1) * dh)
        logits = jax.lax.dot_general(                     # q_h @ k_h^T  (L, L)
            q[:, sl].astype(jnp.bfloat16), key[:, sl].astype(jnp.bfloat16),
            dimension_numbers=(((1,), (1,)), ((), ())),
            preferred_element_type=f32)
        logits = logits * mask + neg                      # mask over key positions
        logits = logits - jnp.max(logits, axis=-1, keepdims=True)
        p = jnp.exp(logits)
        p = p * pl.reciprocal(jnp.sum(p, axis=-1, keepdims=True), approx=True)
        heads_out.append(jnp.dot(p.astype(jnp.bfloat16),
                                 val[:, sl].astype(jnp.bfloat16),
                                 preferred_element_type=f32))
    x = jnp.concatenate(heads_out, axis=-1) + res         # combine heads, +residual

    # ---- FFN block ----------------------------------------------------------------
    res = x
    y = layer_norm(x, g2_ref[...], b2_ref[...])
    y = jnp.maximum(mxu(y, wf1_ref[...]) + bf1_ref[...], 0.0)   # FFN_1 (ReLU, bias)
    y = mxu(y, wf2_ref[...]) + bf2_ref[...]                     # FFN_2 (bias)
    out_ref[0] = (y + res).astype(out_ref.dtype)                # lane-dense store


def _pos_encoding_signal(length, channels, min_timescale=1.0, max_timescale=1.0e4):
    """Standard QANet get_timing_signal, shape (length, channels)."""
    position = jnp.arange(length, dtype=jnp.float32)
    num_timescales = channels // 2
    log_inc = math.log(float(max_timescale) / float(min_timescale)) / max(num_timescales - 1, 1)
    inv_timescales = min_timescale * jnp.exp(
        jnp.arange(num_timescales, dtype=jnp.float32) * -log_inc)
    scaled = position[:, None] * inv_timescales[None, :]
    signal = jnp.concatenate([jnp.sin(scaled), jnp.cos(scaled)], axis=1)
    if channels % 2:
        signal = jnp.pad(signal, ((0, 0), (0, 1)))
    return signal.astype(jnp.float32)


@functools.partial(jax.jit, static_argnames=("heads",))
def encoder_block_forward(x, mask, params, *, heads, l=0, blks=1):
    """x: (N, d_model, L) f32 (PyTorch NCL), mask: (N, L) in {0,1} -> (N, d_model, L).

    `l`/`blks` only parameterize layer_dropout probabilities, which are dead in
    eval mode (layer_dropout == inputs + residual); accepted for interface parity.
    """
    del l, blks
    N, D, L = x.shape
    pos = _pos_encoding_signal(L, D)                          # (L, D)
    x_nld = jnp.transpose(x, (0, 2, 1)).astype(jnp.float32)   # NCL -> NLD, once
    mask3 = mask.reshape(N, 1, L).astype(jnp.float32)

    weights = (pos, params["gc"], params["bc"], params["wdw"], params["wpw"],
               params["bpw"], params["g1"], params["b1"], params["wq"],
               params["wkv"], params["g2"], params["b2"], params["wf1"],
               params["bf1"], params["wf2"], params["bf2"])

    def resident(a):                      # full-array block, stays in VMEM
        nd = a.ndim
        return pl.BlockSpec(a.shape, lambda b, nd=nd: (0,) * nd)

    out_nld = pl.pallas_call(
        functools.partial(_encoder_block_kernel, heads=heads),
        out_shape=jax.ShapeDtypeStruct((N, L, D), jnp.float32),
        grid=(N,),
        in_specs=[pl.BlockSpec((1, L, D), lambda b: (b, 0, 0)),
                  pl.BlockSpec((1, 1, L), lambda b: (b, 0, 0))]
                 + [resident(w) for w in weights],
        out_specs=pl.BlockSpec((1, L, D), lambda b: (b, 0, 0)),
        compiler_params=pltpu.CompilerParams(
            dimension_semantics=("parallel",),          # shard batch over v7x's 2 TCs
            vmem_limit_bytes=48 * 1024 * 1024),         # headroom under v7x's 64 MiB
    )(x_nld, mask3, *weights)

    # Back to PyTorch NCL at the module boundary only; when stacking EncoderBlocks,
    # keep the lane-dense NLD layout between blocks and drop this transpose.
    return jnp.transpose(out_nld, (0, 2, 1))


def make_params(key, *, d_model, conv_num, k):
    # NOTE: weights are generated directly in matmul layout.  Importing a PyTorch
    # checkpoint requires: 1x1 Conv1d weight (O, I, 1) -> transpose to (I, O);
    # depthwise Conv1d weight (D, 1, k) -> wdw[i, t, 0, d] = W[d, 0, t].
    D = d_model
    ks = jax.random.split(key, 15)
    bf16 = jnp.bfloat16

    def nrm(kk, shape, scale, dtype=jnp.float32):
        return (scale * jax.random.normal(kk, shape)).astype(dtype)

    return dict(
        # LayerNorms: norm_C (per conv layer), norm_1, norm_2
        gc=1.0 + nrm(ks[0], (conv_num, 1, D), 0.02),
        bc=nrm(ks[1], (conv_num, 1, D), 0.02),
        g1=1.0 + nrm(ks[2], (1, D), 0.02),
        b1=nrm(ks[3], (1, D), 0.02),
        g2=1.0 + nrm(ks[4], (1, D), 0.02),
        b2=nrm(ks[5], (1, D), 0.02),
        # DepthwiseSeparableConv: depthwise taps (bias=False) + pointwise 1x1 (+bias)
        wdw=nrm(ks[6], (conv_num, k, 1, D), 1.0 / k ** 0.5),
        wpw=nrm(ks[7], (conv_num, D, D), 1.0 / D ** 0.5, bf16),
        bpw=nrm(ks[8], (conv_num, 1, D), 0.02),
        # SelfAttention: query_conv (D->D) and mem_conv (D->2D), both bias=False
        wq=nrm(ks[9], (D, D), 1.0 / D ** 0.5, bf16),
        wkv=nrm(ks[10], (D, 2 * D), 1.0 / D ** 0.5, bf16),
        # FFN_1 (ReLU, bias=True) and FFN_2 (bias=True)
        wf1=nrm(ks[11], (D, D), 1.0 / D ** 0.5, bf16),
        bf1=nrm(ks[12], (1, D), 0.02),
        wf2=nrm(ks[13], (D, D), 1.0 / D ** 0.5, bf16),
        bf2=nrm(ks[14], (1, D), 0.02),
    )


if __name__ == "__main__":
    key = jax.random.PRNGKey(0)
    N, L, d_model, heads, conv_num, k = 2, 16, 128, 8, 2, 7

    kp, kx = jax.random.split(key)
    params = make_params(kp, d_model=d_model, conv_num=conv_num, k=k)
    x = jax.random.normal(kx, (N, d_model, L), dtype=jnp.float32)
    lengths = jnp.array([L, L - 5], dtype=jnp.int32)
    mask = (jnp.arange(L)[None, :] < lengths[:, None]).astype(jnp.float32)

    out = encoder_block_forward(x, mask, params, heads=heads, l=1, blks=7)
    out = jax.block_until_ready(out)
    assert out.shape == (N, d_model, L), out.shape
    assert bool(jnp.all(jnp.isfinite(out)))
    print("KERNEL_OK")
</pallas_src>

<mosaic_0001>
module attributes {stable_mosaic.version = 11 : i64} {
  func.func @_encoder_block_kernel(%arg0: i32, %arg1: memref<1x16x128xf32, #tpu.memory_space<vmem>>, %arg2: memref<1x1x16xf32, #tpu.memory_space<vmem>>, %arg3: memref<16x128xf32, #tpu.memory_space<vmem>>, %arg4: memref<2x1x128xf32, #tpu.memory_space<vmem>>, %arg5: memref<2x1x128xf32, #tpu.memory_space<vmem>>, %arg6: memref<2x7x1x128xf32, #tpu.memory_space<vmem>>, %arg7: memref<2x128x128xbf16, #tpu.memory_space<vmem>>, %arg8: memref<2x1x128xf32, #tpu.memory_space<vmem>>, %arg9: memref<1x128xf32, #tpu.memory_space<vmem>>, %arg10: memref<1x128xf32, #tpu.memory_space<vmem>>, %arg11: memref<128x128xbf16, #tpu.memory_space<vmem>>, %arg12: memref<128x256xbf16, #tpu.memory_space<vmem>>, %arg13: memref<1x128xf32, #tpu.memory_space<vmem>>, %arg14: memref<1x128xf32, #tpu.memory_space<vmem>>, %arg15: memref<128x128xbf16, #tpu.memory_space<vmem>>, %arg16: memref<1x128xf32, #tpu.memory_space<vmem>>, %arg17: memref<128x128xbf16, #tpu.memory_space<vmem>>, %arg18: memref<1x128xf32, #tpu.memory_space<vmem>>, %arg19: memref<1x16x128xf32, #tpu.memory_space<vmem>>) attributes {dimension_semantics = [#tpu.dimension_semantics<parallel>], iteration_bounds = array<i64: 2>, scalar_prefetch = 0 : i64, scratch_operands = 0 : i64, tpu.core_type = #tpu.core_type<tc>, window_params = [{transform_indices = @transform_0, window_bounds = array<i64: 1, 16, 128>}, {transform_indices = @transform_1, window_bounds = array<i64: 1, 1, 16>}, {pipeline_mode = #tpu.pipeline_mode<synchronous>, transform_indices = @transform_2, window_bounds = array<i64: 16, 128>}, {pipeline_mode = #tpu.pipeline_mode<synchronous>, transform_indices = @transform_3, window_bounds = array<i64: 2, 1, 128>}, {pipeline_mode = #tpu.pipeline_mode<synchronous>, transform_indices = @transform_4, window_bounds = array<i64: 2, 1, 128>}, {pipeline_mode = #tpu.pipeline_mode<synchronous>, transform_indices = @transform_5, window_bounds = array<i64: 2, 7, 1, 128>}, {pipeline_mode = #tpu.pipeline_mode<synchronous>, transform_indices = @transform_6, window_bounds = array<i64: 2, 128, 128>}, {pipeline_mode = #tpu.pipeline_mode<synchronous>, transform_indices = @transform_7, window_bounds = array<i64: 2, 1, 128>}, {pipeline_mode = #tpu.pipeline_mode<synchronous>, transform_indices = @transform_8, window_bounds = array<i64: 1, 128>}, {pipeline_mode = #tpu.pipeline_mode<synchronous>, transform_indices = @transform_9, window_bounds = array<i64: 1, 128>}, {pipeline_mode = #tpu.pipeline_mode<synchronous>, transform_indices = @transform_10, window_bounds = array<i64: 128, 128>}, {pipeline_mode = #tpu.pipeline_mode<synchronous>, transform_indices = @transform_11, window_bounds = array<i64: 128, 256>}, {pipeline_mode = #tpu.pipeline_mode<synchronous>, transform_indices = @transform_12, window_bounds = array<i64: 1, 128>}, {pipeline_mode = #tpu.pipeline_mode<synchronous>, transform_indices = @transform_13, window_bounds = array<i64: 1, 128>}, {pipeline_mode = #tpu.pipeline_mode<synchronous>, transform_indices = @transform_14, window_bounds = array<i64: 128, 128>}, {pipeline_mode = #tpu.pipeline_mode<synchronous>, transform_indices = @transform_15, window_bounds = array<i64: 1, 128>}, {pipeline_mode = #tpu.pipeline_mode<synchronous>, transform_indices = @transform_16, window_bounds = array<i64: 128, 128>}, {pipeline_mode = #tpu.pipeline_mode<synchronous>, transform_indices = @transform_17, window_bounds = array<i64: 1, 128>}, {transform_indices = @transform_18, window_bounds = array<i64: 1, 16, 128>}]} {
    %c0 = arith.constant 0 : index
    %c0_0 = arith.constant 0 : index
    %c0_1 = arith.constant 0 : index
    %0 = vector.load %arg1[%c0, %c0_0, %c0_1] : memref<1x16x128xf32, #tpu.memory_space<vmem>>, vector<1x16x128xf32>
    %1 = vector.shape_cast %0 : vector<1x16x128xf32> to vector<16x128xf32>
    %c0_2 = arith.constant 0 : index
    %c0_3 = arith.constant 0 : index
    %2 = vector.load %arg3[%c0_2, %c0_3] : memref<16x128xf32, #tpu.memory_space<vmem>>, vector<16x128xf32>
    %3 = arith.addf %1, %2 : vector<16x128xf32>
    %c0_4 = arith.constant 0 : index
    %c0_5 = arith.constant 0 : index
    %c0_6 = arith.constant 0 : index
    %4 = vector.load %arg2[%c0_4, %c0_5, %c0_6] : memref<1x1x16xf32, #tpu.memory_space<vmem>>, vector<1x1x16xf32>
    %5 = vector.shape_cast %4 : vector<1x1x16xf32> to vector<1x16xf32>
    %c0_7 = arith.constant 0 : index
    %c0_8 = arith.constant 0 : index
    %c0_9 = arith.constant 0 : index
    %6 = vector.load %arg4[%c0_7, %c0_8, %c0_9] : memref<2x1x128xf32, #tpu.memory_space<vmem>>, vector<2x1x128xf32>
    %c0_10 = arith.constant 0 : index
    %c0_11 = arith.constant 0 : index
    %c0_12 = arith.constant 0 : index
    %7 = vector.load %arg5[%c0_10, %c0_11, %c0_12] : memref<2x1x128xf32, #tpu.memory_space<vmem>>, vector<2x1x128xf32>
    %c0_13 = arith.constant 0 : index
    %c0_14 = arith.constant 0 : index
    %c0_15 = arith.constant 0 : index
    %c0_16 = arith.constant 0 : index
    %8 = vector.load %arg6[%c0_13, %c0_14, %c0_15, %c0_16] : memref<2x7x1x128xf32, #tpu.memory_space<vmem>>, vector<2x7x1x128xf32>
    %c0_17 = arith.constant 0 : index
    %c0_18 = arith.constant 0 : index
    %c0_19 = arith.constant 0 : index
    %9 = vector.load %arg8[%c0_17, %c0_18, %c0_19] : memref<2x1x128xf32, #tpu.memory_space<vmem>>, vector<2x1x128xf32>
    %10 = vector.extract_strided_slice %6 {offsets = [0, 0, 0], sizes = [1, 1, 128], strides = [1, 1, 1]} : vector<2x1x128xf32> to vector<1x1x128xf32>
    %11 = vector.shape_cast %10 : vector<1x1x128xf32> to vector<1x128xf32>
    %12 = vector.extract_strided_slice %7 {offsets = [0, 0, 0], sizes = [1, 1, 128], strides = [1, 1, 1]} : vector<2x1x128xf32> to vector<1x1x128xf32>
    %13 = vector.shape_cast %12 : vector<1x1x128xf32> to vector<1x128xf32>
    %cst = arith.constant dense<0.000000e+00> : vector<16xf32>
    %14 = vector.multi_reduction <add>, %3, %cst [1] : vector<16x128xf32> to vector<16xf32>
    %15 = vector.shape_cast %14 : vector<16xf32> to vector<16x1xf32>
    %cst_20 = arith.constant 1.280000e+02 : f32
    %16 = vector.broadcast %cst_20 : f32 to vector<16x1xf32>
    %17 = arith.divf %15, %16 : vector<16x1xf32>
    %18 = vector.broadcast %17 : vector<16x1xf32> to vector<16x128xf32>
    %19 = arith.subf %3, %18 : vector<16x128xf32>
    %20 = arith.mulf %19, %19 : vector<16x128xf32>
    %cst_21 = arith.constant dense<0.000000e+00> : vector<16xf32>
    %21 = vector.multi_reduction <add>, %20, %cst_21 [1] : vector<16x128xf32> to vector<16xf32>
    %22 = vector.shape_cast %21 : vector<16xf32> to vector<16x1xf32>
    %cst_22 = arith.constant 1.280000e+02 : f32
    %23 = vector.broadcast %cst_22 : f32 to vector<16x1xf32>
    %24 = arith.divf %22, %23 : vector<16x1xf32>
    %25 = vector.broadcast %17 : vector<16x1xf32> to vector<16x128xf32>
    %26 = arith.subf %3, %25 : vector<16x128xf32>
    %cst_23 = arith.constant 9.99999974E-6 : f32
    %27 = vector.broadcast %cst_23 : f32 to vector<16x1xf32>
    %28 = arith.addf %24, %27 : vector<16x1xf32>
    %29 = math.rsqrt %28 : vector<16x1xf32>
    %30 = vector.broadcast %29 : vector<16x1xf32> to vector<16x128xf32>
    %31 = arith.mulf %26, %30 : vector<16x128xf32>
    %32 = vector.broadcast %11 : vector<1x128xf32> to vector<16x128xf32>
    %33 = arith.mulf %31, %32 : vector<16x128xf32>
    %34 = vector.broadcast %13 : vector<1x128xf32> to vector<16x128xf32>
    %35 = arith.addf %33, %34 : vector<16x128xf32>
    %cst_24 = arith.constant 0.000000e+00 : f32
    %36 = vector.broadcast %cst_24 : f32 to vector<3x128xf32>
    %37 = tpu.concatenate %36, %35, %36 in 0 : vector<3x128xf32>, vector<16x128xf32>, vector<3x128xf32> -> vector<22x128xf32>
    %cst_25 = arith.constant 0.000000e+00 : f32
    %38 = vector.broadcast %cst_25 : f32 to vector<16x128xf32>
    %39 = vector.extract_strided_slice %37 {offsets = [0, 0], sizes = [16, 128], strides = [1, 1]} : vector<22x128xf32> to vector<16x128xf32>
    %40 = vector.extract_strided_slice %8 {offsets = [0, 0, 0, 0], sizes = [1, 1, 1, 128], strides = [1, 1, 1, 1]} : vector<2x7x1x128xf32> to vector<1x1x1x128xf32>
    %41 = vector.shape_cast %40 : vector<1x1x1x128xf32> to vector<1x128xf32>
    %42 = vector.broadcast %41 : vector<1x128xf32> to vector<16x128xf32>
    %43 = arith.mulf %39, %42 : vector<16x128xf32>
    %44 = arith.addf %38, %43 : vector<16x128xf32>
    %45 = vector.extract_strided_slice %37 {offsets = [1, 0], sizes = [16, 128], strides = [1, 1]} : vector<22x128xf32> to vector<16x128xf32>
    %46 = vector.extract_strided_slice %8 {offsets = [0, 1, 0, 0], sizes = [1, 1, 1, 128], strides = [1, 1, 1, 1]} : vector<2x7x1x128xf32> to vector<1x1x1x128xf32>
    %47 = vector.shape_cast %46 : vector<1x1x1x128xf32> to vector<1x128xf32>
    %48 = vector.broadcast %47 : vector<1x128xf32> to vector<16x128xf32>
    %49 = arith.mulf %45, %48 : vector<16x128xf32>
    %50 = arith.addf %44, %49 : vector<16x128xf32>
    %51 = vector.extract_strided_slice %37 {offsets = [2, 0], sizes = [16, 128], strides = [1, 1]} : vector<22x128xf32> to vector<16x128xf32>
    %52 = vector.extract_strided_slice %8 {offsets = [0, 2, 0, 0], sizes = [1, 1, 1, 128], strides = [1, 1, 1, 1]} : vector<2x7x1x128xf32> to vector<1x1x1x128xf32>
    %53 = vector.shape_cast %52 : vector<1x1x1x128xf32> to vector<1x128xf32>
    %54 = vector.broadcast %53 : vector<1x128xf32> to vector<16x128xf32>
    %55 = arith.mulf %51, %54 : vector<16x128xf32>
    %56 = arith.addf %50, %55 : vector<16x128xf32>
    %57 = vector.extract_strided_slice %37 {offsets = [3, 0], sizes = [16, 128], strides = [1, 1]} : vector<22x128xf32> to vector<16x128xf32>
    %58 = vector.extract_strided_slice %8 {offsets = [0, 3, 0, 0], sizes = [1, 1, 1, 128], strides = [1, 1, 1, 1]} : vector<2x7x1x128xf32> to vector<1x1x1x128xf32>
    %59 = vector.shape_cast %58 : vector<1x1x1x128xf32> to vector<1x128xf32>
    %60 = vector.broadcast %59 : vector<1x128xf32> to vector<16x128xf32>
    %61 = arith.mulf %57, %60 : vector<16x128xf32>
    %62 = arith.addf %56, %61 : vector<16x128xf32>
    %63 = vector.extract_strided_slice %37 {offsets = [4, 0], sizes = [16, 128], strides = [1, 1]} : vector<22x128xf32> to vector<16x128xf32>
    %64 = vector.extract_strided_slice %8 {offsets = [0, 4, 0, 0], sizes = [1, 1, 1, 128], strides = [1, 1, 1, 1]} : vector<2x7x1x128xf32> to vector<1x1x1x128xf32>
    %65 = vector.shape_cast %64 : vector<1x1x1x128xf32> to vector<1x128xf32>
    %66 = vector.broadcast %65 : vector<1x128xf32> to vector<16x128xf32>
    %67 = arith.mulf %63, %66 : vector<16x128xf32>
    %68 = arith.addf %62, %67 : vector<16x128xf32>
    %69 = vector.extract_strided_slice %37 {offsets = [5, 0], sizes = [16, 128], strides = [1, 1]} : vector<22x128xf32> to vector<16x128xf32>
    %70 = vector.extract_strided_slice %8 {offsets = [0, 5, 0, 0], sizes = [1, 1, 1, 128], strides = [1, 1, 1, 1]} : vector<2x7x1x128xf32> to vector<1x1x1x128xf32>
    %71 = vector.shape_cast %70 : vector<1x1x1x128xf32> to vector<1x128xf32>
    %72 = vector.broadcast %71 : vector<1x128xf32> to vector<16x128xf32>
    %73 = arith.mulf %69, %72 : vector<16x128xf32>
    %74 = arith.addf %68, %73 : vector<16x128xf32>
    %75 = vector.extract_strided_slice %37 {offsets = [6, 0], sizes = [16, 128], strides = [1, 1]} : vector<22x128xf32> to vector<16x128xf32>
    %76 = vector.extract_strided_slice %8 {offsets = [0, 6, 0, 0], sizes = [1, 1, 1, 128], strides = [1, 1, 1, 1]} : vector<2x7x1x128xf32> to vector<1x1x1x128xf32>
    %77 = vector.shape_cast %76 : vector<1x1x1x128xf32> to vector<1x128xf32>
    %78 = vector.broadcast %77 : vector<1x128xf32> to vector<16x128xf32>
    %79 = arith.mulf %75, %78 : vector<16x128xf32>
    %80 = arith.addf %74, %79 : vector<16x128xf32>
    %c0_26 = arith.constant 0 : index
    %c0_27 = arith.constant 0 : index
    %c0_28 = arith.constant 0 : index
    %81 = vector.load %arg7[%c0_26, %c0_27, %c0_28] : memref<2x128x128xbf16, #tpu.memory_space<vmem>>, vector<1x128x128xbf16>
    %82 = vector.shape_cast %81 : vector<1x128x128xbf16> to vector<128x128xbf16>
    %83 = arith.truncf %80 : vector<16x128xf32> to vector<16x128xbf16>
    %cst_29 = arith.constant dense<0.000000e+00> : vector<16x128xf32>
    %84 = tpu.matmul %83, %82, %cst_29 {dimension_numbers = #tpu.dot_dimension_numbers<[1], [0], [0], [1], [0, 0, 1, 1], [], []>} : vector<16x128xbf16>, vector<128x128xbf16>, vector<16x128xf32> -> vector<16x128xf32>
    %85 = vector.extract_strided_slice %9 {offsets = [0, 0, 0], sizes = [1, 1, 128], strides = [1, 1, 1]} : vector<2x1x128xf32> to vector<1x1x128xf32>
    %86 = vector.shape_cast %85 : vector<1x1x128xf32> to vector<1x128xf32>
    %87 = vector.broadcast %86 : vector<1x128xf32> to vector<16x128xf32>
    %88 = arith.addf %84, %87 : vector<16x128xf32>
    %cst_30 = arith.constant 0.000000e+00 : f32
    %89 = vector.broadcast %cst_30 : f32 to vector<16x128xf32>
    %90 = arith.maximumf %88, %89 : vector<16x128xf32>
    %91 = arith.addf %90, %3 : vector<16x128xf32>
    %92 = vector.extract_strided_slice %6 {offsets = [1, 0, 0], sizes = [1, 1, 128], strides = [1, 1, 1]} : vector<2x1x128xf32> to vector<1x1x128xf32>
    %93 = vector.shape_cast %92 : vector<1x1x128xf32> to vector<1x128xf32>
    %94 = vector.extract_strided_slice %7 {offsets = [1, 0, 0], sizes = [1, 1, 128], strides = [1, 1, 1]} : vector<2x1x128xf32> to vector<1x1x128xf32>
    %95 = vector.shape_cast %94 : vector<1x1x128xf32> to vector<1x128xf32>
    %cst_31 = arith.constant dense<0.000000e+00> : vector<16xf32>
    %96 = vector.multi_reduction <add>, %91, %cst_31 [1] : vector<16x128xf32> to vector<16xf32>
    %97 = vector.shape_cast %96 : vector<16xf32> to vector<16x1xf32>
    %cst_32 = arith.constant 1.280000e+02 : f32
    %98 = vector.broadcast %cst_32 : f32 to vector<16x1xf32>
    %99 = arith.divf %97, %98 : vector<16x1xf32>
    %100 = vector.broadcast %99 : vector<16x1xf32> to vector<16x128xf32>
    %101 = arith.subf %91, %100 : vector<16x128xf32>
    %102 = arith.mulf %101, %101 : vector<16x128xf32>
    %cst_33 = arith.constant dense<0.000000e+00> : vector<16xf32>
    %103 = vector.multi_reduction <add>, %102, %cst_33 [1] : vector<16x128xf32> to vector<16xf32>
    %104 = vector.shape_cast %103 : vector<16xf32> to vector<16x1xf32>
    %cst_34 = arith.constant 1.280000e+02 : f32
    %105 = vector.broadcast %cst_34 : f32 to vector<16x1xf32>
    %106 = arith.divf %104, %105 : vector<16x1xf32>
    %107 = vector.broadcast %99 : vector<16x1xf32> to vector<16x128xf32>
    %108 = arith.subf %91, %107 : vector<16x128xf32>
    %cst_35 = arith.constant 9.99999974E-6 : f32
    %109 = vector.broadcast %cst_35 : f32 to vector<16x1xf32>
    %110 = arith.addf %106, %109 : vector<16x1xf32>
    %111 = math.rsqrt %110 : vector<16x1xf32>
    %112 = vector.broadcast %111 : vector<16x1xf32> to vector<16x128xf32>
    %113 = arith.mulf %108, %112 : vector<16x128xf32>
    %114 = vector.broadcast %93 : vector<1x128xf32> to vector<16x128xf32>
    %115 = arith.mulf %113, %114 : vector<16x128xf32>
    %116 = vector.broadcast %95 : vector<1x128xf32> to vector<16x128xf32>
    %117 = arith.addf %115, %116 : vector<16x128xf32>
    %cst_36 = arith.constant 0.000000e+00 : f32
    %118 = vector.broadcast %cst_36 : f32 to vector<3x128xf32>
    %119 = tpu.concatenate %118, %117, %118 in 0 : vector<3x128xf32>, vector<16x128xf32>, vector<3x128xf32> -> vector<22x128xf32>
    %cst_37 = arith.constant 0.000000e+00 : f32
    %120 = vector.broadcast %cst_37 : f32 to vector<16x128xf32>
    %121 = vector.extract_strided_slice %119 {offsets = [0, 0], sizes = [16, 128], strides = [1, 1]} : vector<22x128xf32> to vector<16x128xf32>
    %122 = vector.extract_strided_slice %8 {offsets = [1, 0, 0, 0], sizes = [1, 1, 1, 128], strides = [1, 1, 1, 1]} : vector<2x7x1x128xf32> to vector<1x1x1x128xf32>
    %123 = vector.shape_cast %122 : vector<1x1x1x128xf32> to vector<1x128xf32>
    %124 = vector.broadcast %123 : vector<1x128xf32> to vector<16x128xf32>
    %125 = arith.mulf %121, %124 : vector<16x128xf32>
    %126 = arith.addf %120, %125 : vector<16x128xf32>
    %127 = vector.extract_strided_slice %119 {offsets = [1, 0], sizes = [16, 128], strides = [1, 1]} : vector<22x128xf32> to vector<16x128xf32>
    %128 = vector.extract_strided_slice %8 {offsets = [1, 1, 0, 0], sizes = [1, 1, 1, 128], strides = [1, 1, 1, 1]} : vector<2x7x1x128xf32> to vector<1x1x1x128xf32>
    %129 = vector.shape_cast %128 : vector<1x1x1x128xf32> to vector<1x128xf32>
    %130 = vector.broadcast %129 : vector<1x128xf32> to vector<16x128xf32>
    %131 = arith.mulf %127, %130 : vector<16x128xf32>
    %132 = arith.addf %126, %131 : vector<16x128xf32>
    %133 = vector.extract_strided_slice %119 {offsets = [2, 0], sizes = [16, 128], strides = [1, 1]} : vector<22x128xf32> to vector<16x128xf32>
    %134 = vector.extract_strided_slice %8 {offsets = [1, 2, 0, 0], sizes = [1, 1, 1, 128], strides = [1, 1, 1, 1]} : vector<2x7x1x128xf32> to vector<1x1x1x128xf32>
    %135 = vector.shape_cast %134 : vector<1x1x1x128xf32> to vector<1x128xf32>
    %136 = vector.broadcast %135 : vector<1x128xf32> to vector<16x128xf32>
    %137 = arith.mulf %133, %136 : vector<16x128xf32>
    %138 = arith.addf %132, %137 : vector<16x128xf32>
    %139 = vector.extract_strided_slice %119 {offsets = [3, 0], sizes = [16, 128], strides = [1, 1]} : vector<22x128xf32> to vector<16x128xf32>
    %140 = vector.extract_strided_slice %8 {offsets = [1, 3, 0, 0], sizes = [1, 1, 1, 128], strides = [1, 1, 1, 1]} : vector<2x7x1x128xf32> to vector<1x1x1x128xf32>
    %141 = vector.shape_cast %140 : vector<1x1x1x128xf32> to vector<1x128xf32>
    %142 = vector.broadcast %141 : vector<1x128xf32> to vector<16x128xf32>
    %143 = arith.mulf %139, %142 : vector<16x128xf32>
    %144 = arith.addf %138, %143 : vector<16x128xf32>
    %145 = vector.extract_strided_slice %119 {offsets = [4, 0], sizes = [16, 128], strides = [1, 1]} : vector<22x128xf32> to vector<16x128xf32>
    %146 = vector.extract_strided_slice %8 {offsets = [1, 4, 0, 0], sizes = [1, 1, 1, 128], strides = [1, 1, 1, 1]} : vector<2x7x1x128xf32> to vector<1x1x1x128xf32>
    %147 = vector.shape_cast %146 : vector<1x1x1x128xf32> to vector<1x128xf32>
    %148 = vector.broadcast %147 : vector<1x128xf32> to vector<16x128xf32>
    %149 = arith.mulf %145, %148 : vector<16x128xf32>
    %150 = arith.addf %144, %149 : vector<16x128xf32>
    %151 = vector.extract_strided_slice %119 {offsets = [5, 0], sizes = [16, 128], strides = [1, 1]} : vector<22x128xf32> to vector<16x128xf32>
    %152 = vector.extract_strided_slice %8 {offsets = [1, 5, 0, 0], sizes = [1, 1, 1, 128], strides = [1, 1, 1, 1]} : vector<2x7x1x128xf32> to vector<1x1x1x128xf32>
    %153 = vector.shape_cast %152 : vector<1x1x1x128xf32> to vector<1x128xf32>
    %154 = vector.broadcast %153 : vector<1x128xf32> to vector<16x128xf32>
    %155 = arith.mulf %151, %154 : vector<16x128xf32>
    %156 = arith.addf %150, %155 : vector<16x128xf32>
    %157 = vector.extract_strided_slice %119 {offsets = [6, 0], sizes = [16, 128], strides = [1, 1]} : vector<22x128xf32> to vector<16x128xf32>
    %158 = vector.extract_strided_slice %8 {offsets = [1, 6, 0, 0], sizes = [1, 1, 1, 128], strides = [1, 1, 1, 1]} : vector<2x7x1x128xf32> to vector<1x1x1x128xf32>
    %159 = vector.shape_cast %158 : vector<1x1x1x128xf32> to vector<1x128xf32>
    %160 = vector.broadcast %159 : vector<1x128xf32> to vector<16x128xf32>
    %161 = arith.mulf %157, %160 : vector<16x128xf32>
    %162 = arith.addf %156, %161 : vector<16x128xf32>
    %c1 = arith.constant 1 : index
    %c0_38 = arith.constant 0 : index
    %c0_39 = arith.constant 0 : index
    %163 = vector.load %arg7[%c1, %c0_38, %c0_39] : memref<2x128x128xbf16, #tpu.memory_space<vmem>>, vector<1x128x128xbf16>
    %164 = vector.shape_cast %163 : vector<1x128x128xbf16> to vector<128x128xbf16>
    %165 = arith.truncf %162 : vector<16x128xf32> to vector<16x128xbf16>
    %cst_40 = arith.constant dense<0.000000e+00> : vector<16x128xf32>
    %166 = tpu.matmul %165, %164, %cst_40 {dimension_numbers = #tpu.dot_dimension_numbers<[1], [0], [0], [1], [0, 0, 1, 1], [], []>} : vector<16x128xbf16>, vector<128x128xbf16>, vector<16x128xf32> -> vector<16x128xf32>
    %167 = vector.extract_strided_slice %9 {offsets = [1, 0, 0], sizes = [1, 1, 128], strides = [1, 1, 1]} : vector<2x1x128xf32> to vector<1x1x128xf32>
    %168 = vector.shape_cast %167 : vector<1x1x128xf32> to vector<1x128xf32>
    %169 = vector.broadcast %168 : vector<1x128xf32> to vector<16x128xf32>
    %170 = arith.addf %166, %169 : vector<16x128xf32>
    %cst_41 = arith.constant 0.000000e+00 : f32
    %171 = vector.broadcast %cst_41 : f32 to vector<16x128xf32>
    %172 = arith.maximumf %170, %171 : vector<16x128xf32>
    %173 = arith.addf %172, %91 : vector<16x128xf32>
    %c0_42 = arith.constant 0 : index
    %c0_43 = arith.constant 0 : index
    %174 = vector.load %arg9[%c0_42, %c0_43] : memref<1x128xf32, #tpu.memory_space<vmem>>, vector<1x128xf32>
    %c0_44 = arith.constant 0 : index
    %c0_45 = arith.constant 0 : index
    %175 = vector.load %arg10[%c0_44, %c0_45] : memref<1x128xf32, #tpu.memory_space<vmem>>, vector<1x128xf32>
    %cst_46 = arith.constant dense<0.000000e+00> : vector<16xf32>
    %176 = vector.multi_reduction <add>, %173, %cst_46 [1] : vector<16x128xf32> to vector<16xf32>
    %177 = vector.shape_cast %176 : vector<16xf32> to vector<16x1xf32>
    %cst_47 = arith.constant 1.280000e+02 : f32
    %178 = vector.broadcast %cst_47 : f32 to vector<16x1xf32>
    %179 = arith.divf %177, %178 : vector<16x1xf32>
    %180 = vector.broadcast %179 : vector<16x1xf32> to vector<16x128xf32>
    %181 = arith.subf %173, %180 : vector<16x128xf32>
    %182 = arith.mulf %181, %181 : vector<16x128xf32>
    %cst_48 = arith.constant dense<0.000000e+00> : vector<16xf32>
    %183 = vector.multi_reduction <add>, %182, %cst_48 [1] : vector<16x128xf32> to vector<16xf32>
    %184 = vector.shape_cast %183 : vector<16xf32> to vector<16x1xf32>
    %cst_49 = arith.constant 1.280000e+02 : f32
    %185 = vector.broadcast %cst_49 : f32 to vector<16x1xf32>
    %186 = arith.divf %184, %185 : vector<16x1xf32>
    %187 = vector.broadcast %179 : vector<16x1xf32> to vector<16x128xf32>
    %188 = arith.subf %173, %187 : vector<16x128xf32>
    %cst_50 = arith.constant 9.99999974E-6 : f32
    %189 = vector.broadcast %cst_50 : f32 to vector<16x1xf32>
    %190 = arith.addf %186, %189 : vector<16x1xf32>
    %191 = math.rsqrt %190 : vector<16x1xf32>
    %192 = vector.broadcast %191 : vector<16x1xf32> to vector<16x128xf32>
    %193 = arith.mulf %188, %192 : vector<16x128xf32>
    %194 = vector.broadcast %174 : vector<1x128xf32> to vector<16x128xf32>
    %195 = arith.mulf %193, %194 : vector<16x128xf32>
    %196 = vector.broadcast %175 : vector<1x128xf32> to vector<16x128xf32>
    %197 = arith.addf %195, %196 : vector<16x128xf32>
    %c0_51 = arith.constant 0 : index
    %c0_52 = arith.constant 0 : index
    %198 = vector.load %arg11[%c0_51, %c0_52] : memref<128x128xbf16, #tpu.memory_space<vmem>>, vector<128x128xbf16>
    %199 = arith.truncf %197 : vector<16x128xf32> to vector<16x128xbf16>
    %cst_53 = arith.constant dense<0.000000e+00> : vector<16x128xf32>
    %200 = tpu.matmul %199, %198, %cst_53 {dimension_numbers = #tpu.dot_dimension_numbers<[1], [0], [0], [1], [0, 0, 1, 1], [], []>} : vector<16x128xbf16>, vector<128x128xbf16>, vector<16x128xf32> -> vector<16x128xf32>
    %cst_54 = arith.constant 2.500000e-01 : f32
    %201 = vector.broadcast %cst_54 : f32 to vector<16x128xf32>
    %202 = arith.mulf %200, %201 : vector<16x128xf32>
    %c0_55 = arith.constant 0 : index
    %c0_56 = arith.constant 0 : index
    %203 = vector.load %arg12[%c0_55, %c0_56] : memref<128x256xbf16, #tpu.memory_space<vmem>>, vector<128x256xbf16>
    %204 = arith.truncf %197 : vector<16x128xf32> to vector<16x128xbf16>
    %cst_57 = arith.constant dense<0.000000e+00> : vector<16x256xf32>
    %205 = tpu.matmul %204, %203, %cst_57 {dimension_numbers = #tpu.dot_dimension_numbers<[1], [0], [0], [1], [0, 0, 1, 1], [], []>} : vector<16x128xbf16>, vector<128x256xbf16>, vector<16x256xf32> -> vector<16x256xf32>
    %206 = vector.extract_strided_slice %205 {offsets = [0, 0], sizes = [16, 128], strides = [1, 1]} : vector<16x256xf32> to vector<16x128xf32>
    %207 = vector.extract_strided_slice %205 {offsets = [0, 128], sizes = [16, 128], strides = [1, 1]} : vector<16x256xf32> to vector<16x128xf32>
    %cst_58 = arith.constant 1.000000e+00 : f32
    %208 = vector.broadcast %cst_58 : f32 to vector<1x16xf32>
    %209 = arith.subf %208, %5 : vector<1x16xf32>
    %cst_59 = arith.constant -1.000000e+30 : f32
    %210 = vector.broadcast %cst_59 : f32 to vector<1x16xf32>
    %211 = arith.mulf %209, %210 : vector<1x16xf32>
    %212 = vector.extract_strided_slice %202 {offsets = [0, 0], sizes = [16, 16], strides = [1, 1]} : vector<16x128xf32> to vector<16x16xf32>
    %213 = arith.truncf %212 : vector<16x16xf32> to vector<16x16xbf16>
    %214 = vector.extract_strided_slice %206 {offsets = [0, 0], sizes = [16, 16], strides = [1, 1]} : vector<16x128xf32> to vector<16x16xf32>
    %215 = arith.truncf %214 : vector<16x16xf32> to vector<16x16xbf16>
    %cst_60 = arith.constant dense<0.000000e+00> : vector<16x16xf32>
    %216 = tpu.matmul %213, %215, %cst_60 {dimension_numbers = #tpu.dot_dimension_numbers<[1], [1], [0], [0], [0, 0, 1, 0], [], []>} : vector<16x16xbf16>, vector<16x16xbf16>, vector<16x16xf32> -> vector<16x16xf32>
    %217 = vector.broadcast %5 : vector<1x16xf32> to vector<16x16xf32>
    %218 = arith.mulf %216, %217 : vector<16x16xf32>
    %219 = vector.broadcast %211 : vector<1x16xf32> to vector<16x16xf32>
    %220 = arith.addf %218, %219 : vector<16x16xf32>
    %cst_61 = arith.constant dense<0xFF800000> : vector<16xf32>
    %221 = vector.multi_reduction <maximumf>, %220, %cst_61 [1] : vector<16x16xf32> to vector<16xf32>
    %222 = vector.shape_cast %221 : vector<16xf32> to vector<16x1xf32>
    %223 = vector.broadcast %222 : vector<16x1xf32> to vector<16x16xf32>
    %224 = arith.subf %220, %223 : vector<16x16xf32>
    %225 = math.exp %224 : vector<16x16xf32>
    %cst_62 = arith.constant dense<0.000000e+00> : vector<16xf32>
    %226 = vector.multi_reduction <add>, %225, %cst_62 [1] : vector<16x16xf32> to vector<16xf32>
    %227 = vector.shape_cast %226 : vector<16xf32> to vector<16x1xf32>
    %228 = tpu.reciprocal %227 {approx = true} : vector<16x1xf32> -> vector<16x1xf32>
    %229 = vector.broadcast %228 : vector<16x1xf32> to vector<16x16xf32>
    %230 = arith.mulf %225, %229 : vector<16x16xf32>
    %231 = arith.truncf %230 : vector<16x16xf32> to vector<16x16xbf16>
    %232 = vector.extract_strided_slice %207 {offsets = [0, 0], sizes = [16, 16], strides = [1, 1]} : vector<16x128xf32> to vector<16x16xf32>
    %233 = arith.truncf %232 : vector<16x16xf32> to vector<16x16xbf16>
    %cst_63 = arith.constant dense<0.000000e+00> : vector<16x16xf32>
    %234 = tpu.matmul %231, %233, %cst_63 {dimension_numbers = #tpu.dot_dimension_numbers<[1], [0], [0], [1], [0, 0, 1, 1], [], []>} : vector<16x16xbf16>, vector<16x16xbf16>, vector<16x16xf32> -> vector<16x16xf32>
    %235 = vector.extract_strided_slice %202 {offsets = [0, 16], sizes = [16, 16], strides = [1, 1]} : vector<16x128xf32> to vector<16x16xf32>
    %236 = arith.truncf %235 : vector<16x16xf32> to vector<16x16xbf16>
    %237 = vector.extract_strided_slice %206 {offsets = [0, 16], sizes = [16, 16], strides = [1, 1]} : vector<16x128xf32> to vector<16x16xf32>
    %238 = arith.truncf %237 : vector<16x16xf32> to vector<16x16xbf16>
    %cst_64 = arith.constant dense<0.000000e+00> : vector<16x16xf32>
    %239 = tpu.matmul %236, %238, %cst_64 {dimension_numbers = #tpu.dot_dimension_numbers<[1], [1], [0], [0], [0, 0, 1, 0], [], []>} : vector<16x16xbf16>, vector<16x16xbf16>, vector<16x16xf32> -> vector<16x16xf32>
    %240 = vector.broadcast %5 : vector<1x16xf32> to vector<16x16xf32>
    %241 = arith.mulf %239, %240 : vector<16x16xf32>
    %242 = vector.broadcast %211 : vector<1x16xf32> to vector<16x16xf32>
    %243 = arith.addf %241, %242 : vector<16x16xf32>
    %cst_65 = arith.constant dense<0xFF800000> : vector<16xf32>
    %244 = vector.multi_reduction <maximumf>, %243, %cst_65 [1] : vector<16x16xf32> to vector<16xf32>
    %245 = vector.shape_cast %244 : vector<16xf32> to vector<16x1xf32>
    %246 = vector.broadcast %245 : vector<16x1xf32> to vector<16x16xf32>
    %247 = arith.subf %243, %246 : vector<16x16xf32>
    %248 = math.exp %247 : vector<16x16xf32>
    %cst_66 = arith.constant dense<0.000000e+00> : vector<16xf32>
    %249 = vector.multi_reduction <add>, %248, %cst_66 [1] : vector<16x16xf32> to vector<16xf32>
    %250 = vector.shape_cast %249 : vector<16xf32> to vector<16x1xf32>
    %251 = tpu.reciprocal %250 {approx = true} : vector<16x1xf32> -> vector<16x1xf32>
    %252 = vector.broadcast %251 : vector<16x1xf32> to vector<16x16xf32>
    %253 = arith.mulf %248, %252 : vector<16x16xf32>
    %254 = arith.truncf %253 : vector<16x16xf32> to vector<16x16xbf16>
    %255 = vector.extract_strided_slice %207 {offsets = [0, 16], sizes = [16, 16], strides = [1, 1]} : vector<16x128xf32> to vector<16x16xf32>
    %256 = arith.truncf %255 : vector<16x16xf32> to vector<16x16xbf16>
    %cst_67 = arith.constant dense<0.000000e+00> : vector<16x16xf32>
    %257 = tpu.matmul %254, %256, %cst_67 {dimension_numbers = #tpu.dot_dimension_numbers<[1], [0], [0], [1], [0, 0, 1, 1], [], []>} : vector<16x16xbf16>, vector<16x16xbf16>, vector<16x16xf32> -> vector<16x16xf32>
    %258 = vector.extract_strided_slice %202 {offsets = [0, 32], sizes = [16, 16], strides = [1, 1]} : vector<16x128xf32> to vector<16x16xf32>
    %259 = arith.truncf %258 : vector<16x16xf32> to vector<16x16xbf16>
    %260 = vector.extract_strided_slice %206 {offsets = [0, 32], sizes = [16, 16], strides = [1, 1]} : vector<16x128xf32> to vector<16x16xf32>
    %261 = arith.truncf %260 : vector<16x16xf32> to vector<16x16xbf16>
    %cst_68 = arith.constant dense<0.000000e+00> : vector<16x16xf32>
    %262 = tpu.matmul %259, %261, %cst_68 {dimension_numbers = #tpu.dot_dimension_numbers<[1], [1], [0], [0], [0, 0, 1, 0], [], []>} : vector<16x16xbf16>, vector<16x16xbf16>, vector<16x16xf32> -> vector<16x16xf32>
    %263 = vector.broadcast %5 : vector<1x16xf32> to vector<16x16xf32>
    %264 = arith.mulf %262, %263 : vector<16x16xf32>
    %265 = vector.broadcast %211 : vector<1x16xf32> to vector<16x16xf32>
    %266 = arith.addf %264, %265 : vector<16x16xf32>
    %cst_69 = arith.constant dense<0xFF800000> : vector<16xf32>
    %267 = vector.multi_reduction <maximumf>, %266, %cst_69 [1] : vector<16x16xf32> to vector<16xf32>
    %268 = vector.shape_cast %267 : vector<16xf32> to vector<16x1xf32>
    %269 = vector.broadcast %268 : vector<16x1xf32> to vector<16x16xf32>
    %270 = arith.subf %266, %269 : vector<16x16xf32>
    %271 = math.exp %270 : vector<16x16xf32>
    %cst_70 = arith.constant dense<0.000000e+00> : vector<16xf32>
    %272 = vector.multi_reduction <add>, %271, %cst_70 [1] : vector<16x16xf32> to vector<16xf32>
    %273 = vector.shape_cast %272 : vector<16xf32> to vector<16x1xf32>
    %274 = tpu.reciprocal %273 {approx = true} : vector<16x1xf32> -> vector<16x1xf32>
    %275 = vector.broadcast %274 : vector<16x1xf32> to vector<16x16xf32>
    %276 = arith.mulf %271, %275 : vector<16x16xf32>
    %277 = arith.truncf %276 : vector<16x16xf32> to vector<16x16xbf16>
    %278 = vector.extract_strided_slice %207 {offsets = [0, 32], sizes = [16, 16], strides = [1, 1]} : vector<16x128xf32> to vector<16x16xf32>
    %279 = arith.truncf %278 : vector<16x16xf32> to vector<16x16xbf16>
    %cst_71 = arith.constant dense<0.000000e+00> : vector<16x16xf32>
    %280 = tpu.matmul %277, %279, %cst_71 {dimension_numbers = #tpu.dot_dimension_numbers<[1], [0], [0], [1], [0, 0, 1, 1], [], []>} : vector<16x16xbf16>, vector<16x16xbf16>, vector<16x16xf32> -> vector<16x16xf32>
    %281 = vector.extract_strided_slice %202 {offsets = [0, 48], sizes = [16, 16], strides = [1, 1]} : vector<16x128xf32> to vector<16x16xf32>
    %282 = arith.truncf %281 : vector<16x16xf32> to vector<16x16xbf16>
    %283 = vector.extract_strided_slice %206 {offsets = [0, 48], sizes = [16, 16], strides = [1, 1]} : vector<16x128xf32> to vector<16x16xf32>
    %284 = arith.truncf %283 : vector<16x16xf32> to vector<16x16xbf16>
    %cst_72 = arith.constant dense<0.000000e+00> : vector<16x16xf32>
    %285 = tpu.matmul %282, %284, %cst_72 {dimension_numbers = #tpu.dot_dimension_numbers<[1], [1], [0], [0], [0, 0, 1, 0], [], []>} : vector<16x16xbf16>, vector<16x16xbf16>, vector<16x16xf32> -> vector<16x16xf32>
    %286 = vector.broadcast %5 : vector<1x16xf32> to vector<16x16xf32>
    %287 = arith.mulf %285, %286 : vector<16x16xf32>
    %288 = vector.broadcast %211 : vector<1x16xf32> to vector<16x16xf32>
    %289 = arith.addf %287, %288 : vector<16x16xf32>
    %cst_73 = arith.constant dense<0xFF800000> : vector<16xf32>
    %290 = vector.multi_reduction <maximumf>, %289, %cst_73 [1] : vector<16x16xf32> to vector<16xf32>
    %291 = vector.shape_cast %290 : vector<16xf32> to vector<16x1xf32>
    %292 = vector.broadcast %291 : vector<16x1xf32> to vector<16x16xf32>
    %293 = arith.subf %289, %292 : vector<16x16xf32>
    %294 = math.exp %293 : vector<16x16xf32>
    %cst_74 = arith.constant dense<0.000000e+00> : vector<16xf32>
    %295 = vector.multi_reduction <add>, %294, %cst_74 [1] : vector<16x16xf32> to vector<16xf32>
    %296 = vector.shape_cast %295 : vector<16xf32> to vector<16x1xf32>
    %297 = tpu.reciprocal %296 {approx = true} : vector<16x1xf32> -> vector<16x1xf32>
    %298 = vector.broadcast %297 : vector<16x1xf32> to vector<16x16xf32>
    %299 = arith.mulf %294, %298 : vector<16x16xf32>
    %300 = arith.truncf %299 : vector<16x16xf32> to vector<16x16xbf16>
    %301 = vector.extract_strided_slice %207 {offsets = [0, 48], sizes = [16, 16], strides = [1, 1]} : vector<16x128xf32> to vector<16x16xf32>
    %302 = arith.truncf %301 : vector<16x16xf32> to vector<16x16xbf16>
    %cst_75 = arith.constant dense<0.000000e+00> : vector<16x16xf32>
    %303 = tpu.matmul %300, %302, %cst_75 {dimension_numbers = #tpu.dot_dimension_numbers<[1], [0], [0], [1], [0, 0, 1, 1], [], []>} : vector<16x16xbf16>, vector<16x16xbf16>, vector<16x16xf32> -> vector<16x16xf32>
    %304 = vector.extract_strided_slice %202 {offsets = [0, 64], sizes = [16, 16], strides = [1, 1]} : vector<16x128xf32> to vector<16x16xf32>
    %305 = arith.truncf %304 : vector<16x16xf32> to vector<16x16xbf16>
    %306 = vector.extract_strided_slice %206 {offsets = [0, 64], sizes = [16, 16], strides = [1, 1]} : vector<16x128xf32> to vector<16x16xf32>
    %307 = arith.truncf %306 : vector<16x16xf32> to vector<16x16xbf16>
    %cst_76 = arith.constant dense<0.000000e+00> : vector<16x16xf32>
    %308 = tpu.matmul %305, %307, %cst_76 {dimension_numbers = #tpu.dot_dimension_numbers<[1], [1], [0], [0], [0, 0, 1, 0], [], []>} : vector<16x16xbf16>, vector<16x16xbf16>, vector<16x16xf32> -> vector<16x16xf32>
    %309 = vector.broadcast %5 : vector<1x16xf32> to vector<16x16xf32>
    %310 = arith.mulf %308, %309 : vector<16x16xf32>
    %311 = vector.broadcast %211 : vector<1x16xf32> to vector<16x16xf32>
    %312 = arith.addf %310, %311 : vector<16x16xf32>
    %cst_77 = arith.constant dense<0xFF800000> : vector<16xf32>
    %313 = vector.multi_reduction <maximumf>, %312, %cst_77 [1] : vector<16x16xf32> to vector<16xf32>
    %314 = vector.shape_cast %313 : vector<16xf32> to vector<16x1xf32>
    %315 = vector.broadcast %314 : vector<16x1xf32> to vector<16x16xf32>
    %316 = arith.subf %312, %315 : vector<16x16xf32>
    %317 = math.exp %316 : vector<16x16xf32>
    %cst_78 = arith.constant dense<0.000000e+00> : vector<16xf32>
    %318 = vector.multi_reduction <add>, %317, %cst_78 [1] : vector<16x16xf32> to vector<16xf32>
    %319 = vector.shape_cast %318 : vector<16xf32> to vector<16x1xf32>
    %320 = tpu.reciprocal %319 {approx = true} : vector<16x1xf32> -> vector<16x1xf32>
    %321 = vector.broadcast %320 : vector<16x1xf32> to vector<16x16xf32>
    %322 = arith.mulf %317, %321 : vector<16x16xf32>
    %323 = arith.truncf %322 : vector<16x16xf32> to vector<16x16xbf16>
    %324 = vector.extract_strided_slice %207 {offsets = [0, 64], sizes = [16, 16], strides = [1, 1]} : vector<16x128xf32> to vector<16x16xf32>
    %325 = arith.truncf %324 : vector<16x16xf32> to vector<16x16xbf16>
    %cst_79 = arith.constant dense<0.000000e+00> : vector<16x16xf32>
    %326 = tpu.matmul %323, %325, %cst_79 {dimension_numbers = #tpu.dot_dimension_numbers<[1], [0], [0], [1], [0, 0, 1, 1], [], []>} : vector<16x16xbf16>, vector<16x16xbf16>, vector<16x16xf32> -> vector<16x16xf32>
    %327 = vector.extract_strided_slice %202 {offsets = [0, 80], sizes = [16, 16], strides = [1, 1]} : vector<16x128xf32> to vector<16x16xf32>
    %328 = arith.truncf %327 : vector<16x16xf32> to vector<16x16xbf16>
    %329 = vector.extract_strided_slice %206 {offsets = [0, 80], sizes = [16, 16], strides = [1, 1]} : vector<16x128xf32> to vector<16x16xf32>
    %330 = arith.truncf %329 : vector<16x16xf32> to vector<16x16xbf16>
    %cst_80 = arith.constant dense<0.000000e+00> : vector<16x16xf32>
    %331 = tpu.matmul %328, %330, %cst_80 {dimension_numbers = #tpu.dot_dimension_numbers<[1], [1], [0], [0], [0, 0, 1, 0], [], []>} : vector<16x16xbf16>, vector<16x16xbf16>, vector<16x16xf32> -> vector<16x16xf32>
    %332 = vector.broadcast %5 : vector<1x16xf32> to vector<16x16xf32>
    %333 = arith.mulf %331, %332 : vector<16x16xf32>
    %334 = vector.broadcast %211 : vector<1x16xf32> to vector<16x16xf32>
    %335 = arith.addf %333, %334 : vector<16x16xf32>
    %cst_81 = arith.constant dense<0xFF800000> : vector<16xf32>
    %336 = vector.multi_reduction <maximumf>, %335, %cst_81 [1] : vector<16x16xf32> to vector<16xf32>
    %337 = vector.shape_cast %336 : vector<16xf32> to vector<16x1xf32>
    %338 = vector.broadcast %337 : vector<16x1xf32> to vector<16x16xf32>
    %339 = arith.subf %335, %338 : vector<16x16xf32>
    %340 = math.exp %339 : vector<16x16xf32>
    %cst_82 = arith.constant dense<0.000000e+00> : vector<16xf32>
    %341 = vector.multi_reduction <add>, %340, %cst_82 [1] : vector<16x16xf32> to vector<16xf32>
    %342 = vector.shape_cast %341 : vector<16xf32> to vector<16x1xf32>
    %343 = tpu.reciprocal %342 {approx = true} : vector<16x1xf32> -> vector<16x1xf32>
    %344 = vector.broadcast %343 : vector<16x1xf32> to vector<16x16xf32>
    %345 = arith.mulf %340, %344 : vector<16x16xf32>
    %346 = arith.truncf %345 : vector<16x16xf32> to vector<16x16xbf16>
    %347 = vector.extract_strided_slice %207 {offsets = [0, 80], sizes = [16, 16], strides = [1, 1]} : vector<16x128xf32> to vector<16x16xf32>
    %348 = arith.truncf %347 : vector<16x16xf32> to vector<16x16xbf16>
    %cst_83 = arith.constant dense<0.000000e+00> : vector<16x16xf32>
    %349 = tpu.matmul %346, %348, %cst_83 {dimension_numbers = #tpu.dot_dimension_numbers<[1], [0], [0], [1], [0, 0, 1, 1], [], []>} : vector<16x16xbf16>, vector<16x16xbf16>, vector<16x16xf32> -> vector<16x16xf32>
    %350 = vector.extract_strided_slice %202 {offsets = [0, 96], sizes = [16, 16], strides = [1, 1]} : vector<16x128xf32> to vector<16x16xf32>
    %351 = arith.truncf %350 : vector<16x16xf32> to vector<16x16xbf16>
    %352 = vector.extract_strided_slice %206 {offsets = [0, 96], sizes = [16, 16], strides = [1, 1]} : vector<16x128xf32> to vector<16x16xf32>
    %353 = arith.truncf %352 : vector<16x16xf32> to vector<16x16xbf16>
    %cst_84 = arith.constant dense<0.000000e+00> : vector<16x16xf32>
    %354 = tpu.matmul %351, %353, %cst_84 {dimension_numbers = #tpu.dot_dimension_numbers<[1], [1], [0], [0], [0, 0, 1, 0], [], []>} : vector<16x16xbf16>, vector<16x16xbf16>, vector<16x16xf32> -> vector<16x16xf32>
    %355 = vector.broadcast %5 : vector<1x16xf32> to vector<16x16xf32>
    %356 = arith.mulf %354, %355 : vector<16x16xf32>
    %357 = vector.broadcast %211 : vector<1x16xf32> to vector<16x16xf32>
    %358 = arith.addf %356, %357 : vector<16x16xf32>
    %cst_85 = arith.constant dense<0xFF800000> : vector<16xf32>
    %359 = vector.multi_reduction <maximumf>, %358, %cst_85 [1] : vector<16x16xf32> to vector<16xf32>
    %360 = vector.shape_cast %359 : vector<16xf32> to vector<16x1xf32>
    %361 = vector.broadcast %360 : vector<16x1xf32> to vector<16x16xf32>
    %362 = arith.subf %358, %361 : vector<16x16xf32>
    %363 = math.exp %362 : vector<16x16xf32>
    %cst_86 = arith.constant dense<0.000000e+00> : vector<16xf32>
    %364 = vector.multi_reduction <add>, %363, %cst_86 [1] : vector<16x16xf32> to vector<16xf32>
    %365 = vector.shape_cast %364 : vector<16xf32> to vector<16x1xf32>
    %366 = tpu.reciprocal %365 {approx = true} : vector<16x1xf32> -> vector<16x1xf32>
    %367 = vector.broadcast %366 : vector<16x1xf32> to vector<16x16xf32>
    %368 = arith.mulf %363, %367 : vector<16x16xf32>
    %369 = arith.truncf %368 : vector<16x16xf32> to vector<16x16xbf16>
    %370 = vector.extract_strided_slice %207 {offsets = [0, 96], sizes = [16, 16], strides = [1, 1]} : vector<16x128xf32> to vector<16x16xf32>
    %371 = arith.truncf %370 : vector<16x16xf32> to vector<16x16xbf16>
    %cst_87 = arith.constant dense<0.000000e+00> : vector<16x16xf32>
    %372 = tpu.matmul %369, %371, %cst_87 {dimension_numbers = #tpu.dot_dimension_numbers<[1], [0], [0], [1], [0, 0, 1, 1], [], []>} : vector<16x16xbf16>, vector<16x16xbf16>, vector<16x16xf32> -> vector<16x16xf32>
    %373 = vector.extract_strided_slice %202 {offsets = [0, 112], sizes = [16, 16], strides = [1, 1]} : vector<16x128xf32> to vector<16x16xf32>
    %374 = arith.truncf %373 : vector<16x16xf32> to vector<16x16xbf16>
    %375 = vector.extract_strided_slice %206 {offsets = [0, 112], sizes = [16, 16], strides = [1, 1]} : vector<16x128xf32> to vector<16x16xf32>
    %376 = arith.truncf %375 : vector<16x16xf32> to vector<16x16xbf16>
    %cst_88 = arith.constant dense<0.000000e+00> : vector<16x16xf32>
    %377 = tpu.matmul %374, %376, %cst_88 {dimension_numbers = #tpu.dot_dimension_numbers<[1], [1], [0], [0], [0, 0, 1, 0], [], []>} : vector<16x16xbf16>, vector<16x16xbf16>, vector<16x16xf32> -> vector<16x16xf32>
    %378 = vector.broadcast %5 : vector<1x16xf32> to vector<16x16xf32>
    %379 = arith.mulf %377, %378 : vector<16x16xf32>
    %380 = vector.broadcast %211 : vector<1x16xf32> to vector<16x16xf32>
    %381 = arith.addf %379, %380 : vector<16x16xf32>
    %cst_89 = arith.constant dense<0xFF800000> : vector<16xf32>
    %382 = vector.multi_reduction <maximumf>, %381, %cst_89 [1] : vector<16x16xf32> to vector<16xf32>
    %383 = vector.shape_cast %382 : vector<16xf32> to vector<16x1xf32>
    %384 = vector.broadcast %383 : vector<16x1xf32> to vector<16x16xf32>
    %385 = arith.subf %381, %384 : vector<16x16xf32>
    %386 = math.exp %385 : vector<16x16xf32>
    %cst_90 = arith.constant dense<0.000000e+00> : vector<16xf32>
    %387 = vector.multi_reduction <add>, %386, %cst_90 [1] : vector<16x16xf32> to vector<16xf32>
    %388 = vector.shape_cast %387 : vector<16xf32> to vector<16x1xf32>
    %389 = tpu.reciprocal %388 {approx = true} : vector<16x1xf32> -> vector<16x1xf32>
    %390 = vector.broadcast %389 : vector<16x1xf32> to vector<16x16xf32>
    %391 = arith.mulf %386, %390 : vector<16x16xf32>
    %392 = arith.truncf %391 : vector<16x16xf32> to vector<16x16xbf16>
    %393 = vector.extract_strided_slice %207 {offsets = [0, 112], sizes = [16, 16], strides = [1, 1]} : vector<16x128xf32> to vector<16x16xf32>
    %394 = arith.truncf %393 : vector<16x16xf32> to vector<16x16xbf16>
    %cst_91 = arith.constant dense<0.000000e+00> : vector<16x16xf32>
    %395 = tpu.matmul %392, %394, %cst_91 {dimension_numbers = #tpu.dot_dimension_numbers<[1], [0], [0], [1], [0, 0, 1, 1], [], []>} : vector<16x16xbf16>, vector<16x16xbf16>, vector<16x16xf32> -> vector<16x16xf32>
    %396 = tpu.concatenate %234, %257, %280, %303, %326, %349, %372, %395 in 1 : vector<16x16xf32>, vector<16x16xf32>, vector<16x16xf32>, vector<16x16xf32>, vector<16x16xf32>, vector<16x16xf32>, vector<16x16xf32>, vector<16x16xf32> -> vector<16x128xf32>
    %397 = arith.addf %396, %173 : vector<16x128xf32>
    %c0_92 = arith.constant 0 : index
    %c0_93 = arith.constant 0 : index
    %398 = vector.load %arg13[%c0_92, %c0_93] : memref<1x128xf32, #tpu.memory_space<vmem>>, vector<1x128xf32>
    %c0_94 = arith.constant 0 : index
    %c0_95 = arith.constant 0 : index
    %399 = vector.load %arg14[%c0_94, %c0_95] : memref<1x128xf32, #tpu.memory_space<vmem>>, vector<1x128xf32>
    %cst_96 = arith.constant dense<0.000000e+00> : vector<16xf32>
    %400 = vector.multi_reduction <add>, %397, %cst_96 [1] : vector<16x128xf32> to vector<16xf32>
    %401 = vector.shape_cast %400 : vector<16xf32> to vector<16x1xf32>
    %cst_97 = arith.constant 1.280000e+02 : f32
    %402 = vector.broadcast %cst_97 : f32 to vector<16x1xf32>
    %403 = arith.divf %401, %402 : vector<16x1xf32>
    %404 = vector.broadcast %403 : vector<16x1xf32> to vector<16x128xf32>
    %405 = arith.subf %397, %404 : vector<16x128xf32>
    %406 = arith.mulf %405, %405 : vector<16x128xf32>
    %cst_98 = arith.constant dense<0.000000e+00> : vector<16xf32>
    %407 = vector.multi_reduction <add>, %406, %cst_98 [1] : vector<16x128xf32> to vector<16xf32>
    %408 = vector.shape_cast %407 : vector<16xf32> to vector<16x1xf32>
    %cst_99 = arith.constant 1.280000e+02 : f32
    %409 = vector.broadcast %cst_99 : f32 to vector<16x1xf32>
    %410 = arith.divf %408, %409 : vector<16x1xf32>
    %411 = vector.broadcast %403 : vector<16x1xf32> to vector<16x128xf32>
    %412 = arith.subf %397, %411 : vector<16x128xf32>
    %cst_100 = arith.constant 9.99999974E-6 : f32
    %413 = vector.broadcast %cst_100 : f32 to vector<16x1xf32>
    %414 = arith.addf %410, %413 : vector<16x1xf32>
    %415 = math.rsqrt %414 : vector<16x1xf32>
    %416 = vector.broadcast %415 : vector<16x1xf32> to vector<16x128xf32>
    %417 = arith.mulf %412, %416 : vector<16x128xf32>
    %418 = vector.broadcast %398 : vector<1x128xf32> to vector<16x128xf32>
    %419 = arith.mulf %417, %418 : vector<16x128xf32>
    %420 = vector.broadcast %399 : vector<1x128xf32> to vector<16x128xf32>
    %421 = arith.addf %419, %420 : vector<16x128xf32>
    %c0_101 = arith.constant 0 : index
    %c0_102 = arith.constant 0 : index
    %422 = vector.load %arg15[%c0_101, %c0_102] : memref<128x128xbf16, #tpu.memory_space<vmem>>, vector<128x128xbf16>
    %423 = arith.truncf %421 : vector<16x128xf32> to vector<16x128xbf16>
    %cst_103 = arith.constant dense<0.000000e+00> : vector<16x128xf32>
    %424 = tpu.matmul %423, %422, %cst_103 {dimension_numbers = #tpu.dot_dimension_numbers<[1], [0], [0], [1], [0, 0, 1, 1], [], []>} : vector<16x128xbf16>, vector<128x128xbf16>, vector<16x128xf32> -> vector<16x128xf32>
    %c0_104 = arith.constant 0 : index
    %c0_105 = arith.constant 0 : index
    %425 = vector.load %arg16[%c0_104, %c0_105] : memref<1x128xf32, #tpu.memory_space<vmem>>, vector<1x128xf32>
    %426 = vector.broadcast %425 : vector<1x128xf32> to vector<16x128xf32>
    %427 = arith.addf %424, %426 : vector<16x128xf32>
    %cst_106 = arith.constant 0.000000e+00 : f32
    %428 = vector.broadcast %cst_106 : f32 to vector<16x128xf32>
    %429 = arith.maximumf %427, %428 : vector<16x128xf32>
    %c0_107 = arith.constant 0 : index
    %c0_108 = arith.constant 0 : index
    %430 = vector.load %arg17[%c0_107, %c0_108] : memref<128x128xbf16, #tpu.memory_space<vmem>>, vector<128x128xbf16>
    %431 = arith.truncf %429 : vector<16x128xf32> to vector<16x128xbf16>
    %cst_109 = arith.constant dense<0.000000e+00> : vector<16x128xf32>
    %432 = tpu.matmul %431, %430, %cst_109 {dimension_numbers = #tpu.dot_dimension_numbers<[1], [0], [0], [1], [0, 0, 1, 1], [], []>} : vector<16x128xbf16>, vector<128x128xbf16>, vector<16x128xf32> -> vector<16x128xf32>
    %c0_110 = arith.constant 0 : index
    %c0_111 = arith.constant 0 : index
    %433 = vector.load %arg18[%c0_110, %c0_111] : memref<1x128xf32, #tpu.memory_space<vmem>>, vector<1x128xf32>
    %434 = vector.broadcast %433 : vector<1x128xf32> to vector<16x128xf32>
    %435 = arith.addf %432, %434 : vector<16x128xf32>
    %436 = arith.addf %435, %397 : vector<16x128xf32>
    %c0_112 = arith.constant 0 : index
    %c0_113 = arith.constant 0 : index
    %c0_114 = arith.constant 0 : index
    %437 = vector.load %arg19[%c0_112, %c0_113, %c0_114] : memref<1x16x128xf32, #tpu.memory_space<vmem>>, vector<1x16x128xf32>
    %438 = vector.shape_cast %437 : vector<1x16x128xf32> to vector<16x128xf32>
    %439 = vector.shape_cast %436 : vector<16x128xf32> to vector<1x16x128xf32>
    tpu.vector_store %arg19[%c0_112, %c0_113, %c0_114], %439 {strides = array<i32>} : memref<1x16x128xf32, #tpu.memory_space<vmem>>, vector<1x16x128xf32>,
    return
  }
  func.func @transform_0(%arg0: i32) -> (i32, i32, i32) {
    %c0_i32 = arith.constant 0 : i32
    %c0_i32_0 = arith.constant 0 : i32
    %c0_i32_1 = arith.constant 0 : i32
    return %arg0, %c0_i32, %c0_i32_0 : i32, i32, i32
  }
  func.func @transform_1(%arg0: i32) -> (i32, i32, i32) {
    %c0_i32 = arith.constant 0 : i32
    %c0_i32_0 = arith.constant 0 : i32
    %c0_i32_1 = arith.constant 0 : i32
    return %arg0, %c0_i32, %c0_i32_0 : i32, i32, i32
  }
  func.func @transform_2(%arg0: i32) -> (i32, i32) {
    %c0_i32 = arith.constant 0 : i32
    %c0_i32_0 = arith.constant 0 : i32
    %c0_i32_1 = arith.constant 0 : i32
    return %c0_i32, %c0_i32_0 : i32, i32
  }
  func.func @transform_3(%arg0: i32) -> (i32, i32, i32) {
    %c0_i32 = arith.constant 0 : i32
    %c0_i32_0 = arith.constant 0 : i32
    %c0_i32_1 = arith.constant 0 : i32
    %c0_i32_2 = arith.constant 0 : i32
    return %c0_i32, %c0_i32_0, %c0_i32_1 : i32, i32, i32
  }
  func.func @transform_4(%arg0: i32) -> (i32, i32, i32) {
    %c0_i32 = arith.constant 0 : i32
    %c0_i32_0 = arith.constant 0 : i32
    %c0_i32_1 = arith.constant 0 : i32
    %c0_i32_2 = arith.constant 0 : i32
    return %c0_i32, %c0_i32_0, %c0_i32_1 : i32, i32, i32
  }
  func.func @transform_5(%arg0: i32) -> (i32, i32, i32, i32) {
    %c0_i32 = arith.constant 0 : i32
    %c0_i32_0 = arith.constant 0 : i32
    %c0_i32_1 = arith.constant 0 : i32
    %c0_i32_2 = arith.constant 0 : i32
    %c0_i32_3 = arith.constant 0 : i32
    return %c0_i32, %c0_i32_0, %c0_i32_1, %c0_i32_2 : i32, i32, i32, i32
  }
  func.func @transform_6(%arg0: i32) -> (i32, i32, i32) {
    %c0_i32 = arith.constant 0 : i32
    %c0_i32_0 = arith.constant 0 : i32
    %c0_i32_1 = arith.constant 0 : i32
    %c0_i32_2 = arith.constant 0 : i32
    return %c0_i32, %c0_i32_0, %c0_i32_1 : i32, i32, i32
  }
  func.func @transform_7(%arg0: i32) -> (i32, i32, i32) {
    %c0_i32 = arith.constant 0 : i32
    %c0_i32_0 = arith.constant 0 : i32
    %c0_i32_1 = arith.constant 0 : i32
    %c0_i32_2 = arith.constant 0 : i32
    return %c0_i32, %c0_i32_0, %c0_i32_1 : i32, i32, i32
  }
  func.func @transform_8(%arg0: i32) -> (i32, i32) {
    %c0_i32 = arith.constant 0 : i32
    %c0_i32_0 = arith.constant 0 : i32
    %c0_i32_1 = arith.constant 0 : i32
    return %c0_i32, %c0_i32_0 : i32, i32
  }
  func.func @transform_9(%arg0: i32) -> (i32, i32) {
    %c0_i32 = arith.constant 0 : i32
    %c0_i32_0 = arith.constant 0 : i32
    %c0_i32_1 = arith.constant 0 : i32
    return %c0_i32, %c0_i32_0 : i32, i32
  }
  func.func @transform_10(%arg0: i32) -> (i32, i32) {
    %c0_i32 = arith.constant 0 : i32
    %c0_i32_0 = arith.constant 0 : i32
    %c0_i32_1 = arith.constant 0 : i32
    return %c0_i32, %c0_i32_0 : i32, i32
  }
  func.func @transform_11(%arg0: i32) -> (i32, i32) {
    %c0_i32 = arith.constant 0 : i32
    %c0_i32_0 = arith.constant 0 : i32
    %c0_i32_1 = arith.constant 0 : i32
    return %c0_i32, %c0_i32_0 : i32, i32
  }
  func.func @transform_12(%arg0: i32) -> (i32, i32) {
    %c0_i32 = arith.constant 0 : i32
    %c0_i32_0 = arith.constant 0 : i32
    %c0_i32_1 = arith.constant 0 : i32
    return %c0_i32, %c0_i32_0 : i32, i32
  }
  func.func @transform_13(%arg0: i32) -> (i32, i32) {
    %c0_i32 = arith.constant 0 : i32
    %c0_i32_0 = arith.constant 0 : i32
    %c0_i32_1 = arith.constant 0 : i32
    return %c0_i32, %c0_i32_0 : i32, i32
  }
  func.func @transform_14(%arg0: i32) -> (i32, i32) {
    %c0_i32 = arith.constant 0 : i32
    %c0_i32_0 = arith.constant 0 : i32
    %c0_i32_1 = arith.constant 0 : i32
    return %c0_i32, %c0_i32_0 : i32, i32
  }
  func.func @transform_15(%arg0: i32) -> (i32, i32) {
    %c0_i32 = arith.constant 0 : i32
    %c0_i32_0 = arith.constant 0 : i32
    %c0_i32_1 = arith.constant 0 : i32
    return %c0_i32, %c0_i32_0 : i32, i32
  }
  func.func @transform_16(%arg0: i32) -> (i32, i32) {
    %c0_i32 = arith.constant 0 : i32
    %c0_i32_0 = arith.constant 0 : i32
    %c0_i32_1 = arith.constant 0 : i32
    return %c0_i32, %c0_i32_0 : i32, i32
  }
  func.func @transform_17(%arg0: i32) -> (i32, i32) {
    %c0_i32 = arith.constant 0 : i32
    %c0_i32_0 = arith.constant 0 : i32
    %c0_i32_1 = arith.constant 0 : i32
    return %c0_i32, %c0_i32_0 : i32, i32
  }
  func.func @transform_18(%arg0: i32) -> (i32, i32, i32) {
    %c0_i32 = arith.constant 0 : i32
    %c0_i32_0 = arith.constant 0 : i32
    %c0_i32_1 = arith.constant 0 : i32
    return %arg0, %c0_i32, %c0_i32_0 : i32, i32, i32
  }
}

</mosaic_0001>

<llo_original>
// kernel: encoder_block_forward.1
$region0: #{encoder_block_forward.1}
  #allocation0 [shape = 'u32[]', space=smem, size = 0x4, offset = 0x4, fixed_abs, tag = 'smem constant byte address 0x4 - core index']
  #allocation1 [shape = 'u32[144,128]{1,0:T(1,128)}', space=vmem, size = 0x12000, scoped, tag = 'internal scratch']
  %s0 = inlined_call_operand.hbm [shape: f32[2,16,128], index: 0, kind: input, shape index: {}]
  %s1 = inlined_call_operand.vmem [shape: f32[2,1,16], index: 1, kind: input, shape index: {}]
  %s2 = inlined_call_operand.vmem [shape: f32[16,128], index: 2, kind: input, shape index: {}]
  %s3 = inlined_call_operand.vmem [shape: f32[2,1,128], index: 3, kind: input, shape index: {}]
  %s4 = inlined_call_operand.vmem [shape: f32[2,1,128], index: 4, kind: input, shape index: {}]
  %s5 = inlined_call_operand.vmem [shape: f32[2,7,1,128], index: 5, kind: input, shape index: {}]
  %s6 = inlined_call_operand.vmem [shape: bf16[2,128,128], index: 6, kind: input, shape index: {}]
  %s7 = inlined_call_operand.vmem [shape: f32[2,1,128], index: 7, kind: input, shape index: {}]
  %s8 = inlined_call_operand.vmem [shape: f32[1,128], index: 8, kind: input, shape index: {}]
  %s9 = inlined_call_operand.vmem [shape: f32[1,128], index: 9, kind: input, shape index: {}]
  %s10 = inlined_call_operand.hbm [shape: bf16[128,128], index: 10, kind: input, shape index: {}]
  %s11 = inlined_call_operand.hbm [shape: bf16[128,256], index: 11, kind: input, shape index: {}]
  %s12 = inlined_call_operand.vmem [shape: f32[1,128], index: 12, kind: input, shape index: {}]
  %s13 = inlined_call_operand.vmem [shape: f32[1,128], index: 13, kind: input, shape index: {}]
  %s14 = inlined_call_operand.hbm [shape: bf16[128,128], index: 14, kind: input, shape index: {}]
  %s15 = inlined_call_operand.vmem [shape: f32[1,128], index: 15, kind: input, shape index: {}]
  %s16 = inlined_call_operand.hbm [shape: bf16[128,128], index: 16, kind: input, shape index: {}]
  %s17 = inlined_call_operand.vmem [shape: f32[1,128], index: 17, kind: input, shape index: {}]
  %s18 = inlined_call_operand.hbm [shape: f32[2,16,128], index: 18, kind: output, shape index: {}]
  %s19 = sld [smem:[#allocation0]]
  $region125: #{encoder_block_forward.1} parent=0
    _
  %s21 = ssub.s32 1, %s19
  %s22 = scalar_select 0, %s21, %s19
  $region1: #{encoder_block_forward.1} parent=0
    #allocation2 [shape = 'u8[16384]{0}', space=vmem, size = 0x4000, scoped, tag = 'input window, operand 0']
    #allocation3 [shape = 's32[2]{0}', space=sflag, size = 0x8, scoped, tag = 'scoped memory for encoder_block_forward.1']
    #allocation4 [shape = 's32[2]{0}', space=sflag, size = 0x8, scoped, tag = 'scoped memory for encoder_block_forward.1']
    #allocation5 [shape = 'u8[32768]{0}', space=vmem, size = 0x8000, scoped, tag = 'input window, operand 10, single buffered']
    #allocation6 [shape = 's32[1]{0}', space=sflag, size = 0x4, scoped, tag = 'scoped memory for encoder_block_forward.1']
    #allocation7 [shape = 'u8[65536]{0}', space=vmem, size = 0x10000, scoped, tag = 'input window, operand 11, single buffered']
    #allocation8 [shape = 'u8[32768]{0}', space=vmem, size = 0x8000, scoped, tag = 'input window, operand 14, single buffered']
    #allocation9 [shape = 's32[1]{0}', space=sflag, size = 0x4, scoped, tag = 'scoped memory for encoder_block_forward.1']
    #allocation10 [shape = 'u8[32768]{0}', space=vmem, size = 0x8000, scoped, tag = 'input window, operand 16, single buffered']
    #allocation11 [shape = 'u8[16384]{0}', space=vmem, size = 0x4000, scoped, tag = 'output window, operand 0']
    %23 = vsyncpa [#allocation3], 0
    %s24 = scalar_lea.sflag [#allocation3], 1
    %25 = vsyncpa %s24, 0
    %26 = vsyncpa [#allocation6], 0
    %27 = vsyncpa [#allocation9], 0
    %28 = vsyncpa [#allocation4], 0
    %s29 = scalar_lea.sflag [#allocation4], 1
    %30 = vsyncpa %s29, 0
    loop: start=0, step=1, limit=4
    $region2: #{encoder_block_forward.1} parent=1 // loop_pre_header
      _
    $region3: #{encoder_block_forward.1} parent=1 // loop_header
      %s32 = sphi 0, %s36
      %p33 = scmp.ge.s32.totalorder %s32, 4
      %s42 = sphi 0, %s44
      %s45 = sphi 0, %s42
      %s46 = sphi 0, %s45
      %s62 = sphi 0, %s46
      %s68 = sphi 0, %s70
      %s71 = sphi 0, %s68
      %s72 = sphi 0, %s71
      %s88 = sphi 0, %s72
      %s92 = sphi 0, %s92
      %s94 = sphi 0, %s92
      %s95 = sphi 0, %s94
      %s109 = sphi 0, %s95
      %s113 = sphi 0, %s113
      %s115 = sphi 0, %s113
      %s116 = sphi 0, %s115
      %s130 = sphi 0, %s116
      %s134 = sphi 0, %s134
      %s136 = sphi 0, %s134
      %s137 = sphi 0, %s136
      %s151 = sphi 0, %s137
      %s155 = sphi 0, %s155
      %s157 = sphi 0, %s155
      %s158 = sphi 0, %s157
      %s172 = sphi 0, %s158
      %s176 = sphi 0, %s176
      %s178 = sphi 0, %s176
      %s179 = sphi 0, %s178
      %s193 = sphi 0, %s179
      %s197 = sphi 0, %s197
      %s199 = sphi 0, %s197
      %s200 = sphi 0, %s199
      %s214 = sphi 0, %s200
      %s218 = sphi 0, %s218
      %s220 = sphi 0, %s218
      %s221 = sphi 0, %s220
      %s235 = sphi 0, %s221
      %s239 = sphi 0, %s239
      %s241 = sphi 0, %s239
      %s242 = sphi 0, %s241
      %s256 = sphi 0, %s242
      %s260 = sphi 0, %s260
      %s262 = sphi 0, %s260
      %s263 = sphi 0, %s262
      %s277 = sphi 0, %s263
      %s281 = sphi 0, %s281
      %s283 = sphi 0, %s281
      %s284 = sphi 0, %s283
      %s298 = sphi 0, %s284
      %s302 = sphi 0, %s302
      %s304 = sphi 0, %s302
      %s305 = sphi 0, %s304
      %s319 = sphi 0, %s305
      %s323 = sphi 0, %s323
      %s325 = sphi 0, %s323
      %s326 = sphi 0, %s325
      %s340 = sphi 0, %s326
      %s344 = sphi 0, %s344
      %s346 = sphi 0, %s344
      %s347 = sphi 0, %s346
      %s361 = sphi 0, %s347
      %s365 = sphi 0, %s365
      %s367 = sphi 0, %s365
      %s368 = sphi 0, %s367
      %s382 = sphi 0, %s368
      %s386 = sphi 0, %s386
      %s388 = sphi 0, %s386
      %s389 = sphi 0, %s388
      %s403 = sphi 0, %s389
      %s407 = sphi 0, %s407
      %s409 = sphi 0, %s407
      %s410 = sphi 0, %s409
      %s424 = sphi 0, %s410
      %s430 = sphi 0, %s432
      %s433 = sphi 0, %s430
      %s434 = sphi 0, %s433
      %s450 = sphi 0, %s434
    $region4: #{encoder_block_forward.1} parent=1 // loop_header_branch
      %35 = sbr.rel (%p33) target = $region8
    $region5: #{encoder_block_forward.1} parent=1 // loop_body
      %s37 = ssub.s32 %s32, 1
      %s38 = ssub.s32 %s32, 2
      %s39 = sadd.s32 %s32, 1
      %s40 = ssub.s32 %s32, %s39
      %p41 = scmp.eq.s32.totalorder %s40, 0
      %s43 = sadd.s32 %s42, 1
      %s44 = scalar_select %p41, %s42, %s43
      %p47 = pneg %p41
      %p48 = scmp.eq.s32.totalorder %s32, 1
      %p49 = por %p47, %p48
      %p50 = scmp.ne.s32.totalorder %s42, %s45
      %p51 = scmp.eq.s32.totalorder %s32, 0
      %p52 = por %p50, %p51
      %p53 = scmp.ne.s32.totalorder %s42, %s45
      %p54 = scmp.eq.s32.totalorder %s37, 1
      %p55 = por %p53, %p54
      %p56 = scmp.ne.s32.totalorder %s45, %s46
      %p57 = scmp.eq.s32.totalorder %s37, 0
      %p58 = por %p56, %p57
      %p59 = scmp.ne.s32.totalorder %s45, %s46
      %p60 = scmp.eq.s32.totalorder %s38, 1
      %p61 = por %p59, %p60
      %p63 = scmp.ne.s32.totalorder %s46, %s62
      %p64 = scmp.eq.s32.totalorder %s38, 0
      %p65 = por %p63, %p64
      %s66 = ssub.s32 %s32, %s39
      %p67 = scmp.eq.s32.totalorder %s66, 0
      %s69 = sadd.s32 %s68, 1
      %s70 = scalar_select %p67, %s68, %s69
      %p73 = pneg %p67
      %p74 = scmp.eq.s32.totalorder %s32, 1
      %p75 = por %p73, %p74
      %p76 = scmp.ne.s32.totalorder %s68, %s71
      %p77 = scmp.eq.s32.totalorder %s32, 0
      %p78 = por %p76, %p77
      %p79 = scmp.ne.s32.totalorder %s68, %s71
      %p80 = scmp.eq.s32.totalorder %s37, 1
      %p81 = por %p79, %p80
      %p82 = scmp.ne.s32.totalorder %s71, %s72
      %p83 = scmp.eq.s32.totalorder %s37, 0
      %p84 = por %p82, %p83
      %p85 = scmp.ne.s32.totalorder %s71, %s72
      %p86 = scmp.eq.s32.totalorder %s38, 1
      %p87 = por %p85, %p86
      %p89 = scmp.ne.s32.totalorder %s72, %s88
      %p90 = scmp.eq.s32.totalorder %s38, 0
      %p91 = por %p89, %p90
      %s93 = sadd.s32 %s92, 1
      %p96 = scmp.eq.s32.totalorder %s32, 1
      %p97 = scmp.ne.s32.totalorder %s92, %s94
      %p98 = scmp.eq.s32.totalorder %s32, 0
      %p99 = por %p97, %p98
      %p100 = scmp.ne.s32.totalorder %s92, %s94
      %p101 = scmp.eq.s32.totalorder %s37, 1
      %p102 = por %p100, %p101
      %p103 = scmp.ne.s32.totalorder %s94, %s95
      %p104 = scmp.eq.s32.totalorder %s37, 0
      %p105 = por %p103, %p104
      %p106 = scmp.ne.s32.totalorder %s94, %s95
      %p107 = scmp.eq.s32.totalorder %s38, 1
      %p108 = por %p106, %p107
      %p110 = scmp.ne.s32.totalorder %s95, %s109
      %p111 = scmp.eq.s32.totalorder %s38, 0
      %p112 = por %p110, %p111
      %s114 = sadd.s32 %s113, 1
      %p117 = scmp.eq.s32.totalorder %s32, 1
      %p118 = scmp.ne.s32.totalorder %s113, %s115
      %p119 = scmp.eq.s32.totalorder %s32, 0
      %p120 = por %p118, %p119
      %p121 = scmp.ne.s32.totalorder %s113, %s115
      %p122 = scmp.eq.s32.totalorder %s37, 1
      %p123 = por %p121, %p122
      %p124 = scmp.ne.s32.totalorder %s115, %s116
      %p125 = scmp.eq.s32.totalorder %s37, 0
      %p126 = por %p124, %p125
      %p127 = scmp.ne.s32.totalorder %s115, %s116
      %p128 = scmp.eq.s32.totalorder %s38, 1
      %p129 = por %p127, %p128
      %p131 = scmp.ne.s32.totalorder %s116, %s130
      %p132 = scmp.eq.s32.totalorder %s38, 0
      %p133 = por %p131, %p132
      %s135 = sadd.s32 %s134, 1
      %p138 = scmp.eq.s32.totalorder %s32, 1
      %p139 = scmp.ne.s32.totalorder %s134, %s136
      %p140 = scmp.eq.s32.totalorder %s32, 0
      %p141 = por %p139, %p140
      %p142 = scmp.ne.s32.totalorder %s134, %s136
      %p143 = scmp.eq.s32.totalorder %s37, 1
      %p144 = por %p142, %p143
      %p145 = scmp.ne.s32.totalorder %s136, %s137
      %p146 = scmp.eq.s32.totalorder %s37, 0
      %p147 = por %p145, %p146
      %p148 = scmp.ne.s32.totalorder %s136, %s137
      %p149 = scmp.eq.s32.totalorder %s38, 1
      %p150 = por %p148, %p149
      %p152 = scmp.ne.s32.totalorder %s137, %s151
      %p153 = scmp.eq.s32.totalorder %s38, 0
      %p154 = por %p152, %p153
      %s156 = sadd.s32 %s155, 1
      %p159 = scmp.eq.s32.totalorder %s32, 1
      %p160 = scmp.ne.s32.totalorder %s155, %s157
      %p161 = scmp.eq.s32.totalorder %s32, 0
      %p162 = por %p160, %p161
      %p163 = scmp.ne.s32.totalorder %s155, %s157
      %p164 = scmp.eq.s32.totalorder %s37, 1
      %p165 = por %p163, %p164
      %p166 = scmp.ne.s32.totalorder %s157, %s158
      %p167 = scmp.eq.s32.totalorder %s37, 0
      %p168 = por %p166, %p167
      %p169 = scmp.ne.s32.totalorder %s157, %s158
      %p170 = scmp.eq.s32.totalorder %s38, 1
      %p171 = por %p169, %p170
      %p173 = scmp.ne.s32.totalorder %s158, %s172
      %p174 = scmp.eq.s32.totalorder %s38, 0
      %p175 = por %p173, %p174
      %s177 = sadd.s32 %s176, 1
      %p180 = scmp.eq.s32.totalorder %s32, 1
      %p181 = scmp.ne.s32.totalorder %s176, %s178
      %p182 = scmp.eq.s32.totalorder %s32, 0
      %p183 = por %p181, %p182
      %p184 = scmp.ne.s32.totalorder %s176, %s178
      %p185 = scmp.eq.s32.totalorder %s37, 1
      %p186 = por %p184, %p185
      %p187 = scmp.ne.s32.totalorder %s178, %s179
      %p188 = scmp.eq.s32.totalorder %s37, 0
      %p189 = por %p187, %p188
      %p190 = scmp.ne.s32.totalorder %s178, %s179
      %p191 = scmp.eq.s32.totalorder %s38, 1
      %p192 = por %p190, %p191
      %p194 = scmp.ne.s32.totalorder %s179, %s193
      %p195 = scmp.eq.s32.totalorder %s38, 0
      %p196 = por %p194, %p195
      %s198 = sadd.s32 %s197, 1
      %p201 = scmp.eq.s32.totalorder %s32, 1
      %p202 = scmp.ne.s32.totalorder %s197, %s199
      %p203 = scmp.eq.s32.totalorder %s32, 0
      %p204 = por %p202, %p203
      %p205 = scmp.ne.s32.totalorder %s197, %s199
      %p206 = scmp.eq.s32.totalorder %s37, 1
      %p207 = por %p205, %p206
      %p208 = scmp.ne.s32.totalorder %s199, %s200
      %p209 = scmp.eq.s32.totalorder %s37, 0
      %p210 = por %p208, %p209
      %p211 = scmp.ne.s32.totalorder %s199, %s200
      %p212 = scmp.eq.s32.totalorder %s38, 1
      %p213 = por %p211, %p212
      %p215 = scmp.ne.s32.totalorder %s200, %s214
      %p216 = scmp.eq.s32.totalorder %s38, 0
      %p217 = por %p215, %p216
      %s219 = sadd.s32 %s218, 1
      %p222 = scmp.eq.s32.totalorder %s32, 1
      %p223 = scmp.ne.s32.totalorder %s218, %s220
      %p224 = scmp.eq.s32.totalorder %s32, 0
      %p225 = por %p223, %p224
      %p226 = scmp.ne.s32.totalorder %s218, %s220
      %p227 = scmp.eq.s32.totalorder %s37, 1
      %p228 = por %p226, %p227
      %p229 = scmp.ne.s32.totalorder %s220, %s221
      %p230 = scmp.eq.s32.totalorder %s37, 0
      %p231 = por %p229, %p230
      %p232 = scmp.ne.s32.totalorder %s220, %s221
      %p233 = scmp.eq.s32.totalorder %s38, 1
      %p234 = por %p232, %p233
      %p236 = scmp.ne.s32.totalorder %s221, %s235
      %p237 = scmp.eq.s32.totalorder %s38, 0
      %p238 = por %p236, %p237
      %s240 = sadd.s32 %s239, 1
      %p243 = scmp.eq.s32.totalorder %s32, 1
      %p244 = scmp.ne.s32.totalorder %s239, %s241
      %p245 = scmp.eq.s32.totalorder %s32, 0
      %p246 = por %p244, %p245
      %p247 = scmp.ne.s32.totalorder %s239, %s241
      %p248 = scmp.eq.s32.totalorder %s37, 1
      %p249 = por %p247, %p248
      %p250 = scmp.ne.s32.totalorder %s241, %s242
      %p251 = scmp.eq.s32.totalorder %s37, 0
      %p252 = por %p250, %p251
      %p253 = scmp.ne.s32.totalorder %s241, %s242
      %p254 = scmp.eq.s32.totalorder %s38, 1
      %p255 = por %p253, %p254
      %p257 = scmp.ne.s32.totalorder %s242, %s256
      %p258 = scmp.eq.s32.totalorder %s38, 0
      %p259 = por %p257, %p258
      %s261 = sadd.s32 %s260, 1
      %p264 = scmp.eq.s32.totalorder %s32, 1
      %p265 = scmp.ne.s32.totalorder %s260, %s262
      %p266 = scmp.eq.s32.totalorder %s32, 0
      %p267 = por %p265, %p266
      %p268 = scmp.ne.s32.totalorder %s260, %s262
      %p269 = scmp.eq.s32.totalorder %s37, 1
      %p270 = por %p268, %p269
      %p271 = scmp.ne.s32.totalorder %s262, %s263
      %p272 = scmp.eq.s32.totalorder %s37, 0
      %p273 = por %p271, %p272
      %p274 = scmp.ne.s32.totalorder %s262, %s263
      %p275 = scmp.eq.s32.totalorder %s38, 1
      %p276 = por %p274, %p275
      %p278 = scmp.ne.s32.totalorder %s263, %s277
      %p279 = scmp.eq.s32.totalorder %s38, 0
      %p280 = por %p278, %p279
      %s282 = sadd.s32 %s281, 1
      %p285 = scmp.eq.s32.totalorder %s32, 1
      %p286 = scmp.ne.s32.totalorder %s281, %s283
      %p287 = scmp.eq.s32.totalorder %s32, 0
      %p288 = por %p286, %p287
      %p289 = scmp.ne.s32.totalorder %s281, %s283
      %p290 = scmp.eq.s32.totalorder %s37, 1
      %p291 = por %p289, %p290
      %p292 = scmp.ne.s32.totalorder %s283, %s284
      %p293 = scmp.eq.s32.totalorder %s37, 0
      %p294 = por %p292, %p293
      %p295 = scmp.ne.s32.totalorder %s283, %s284
      %p296 = scmp.eq.s32.totalorder %s38, 1
      %p297 = por %p295, %p296
      %p299 = scmp.ne.s32.totalorder %s284, %s298
      %p300 = scmp.eq.s32.totalorder %s38, 0
      %p301 = por %p299, %p300
      %s303 = sadd.s32 %s302, 1
      %p306 = scmp.eq.s32.totalorder %s32, 1
      %p307 = scmp.ne.s32.totalorder %s302, %s304
      %p308 = scmp.eq.s32.totalorder %s32, 0
      %p309 = por %p307, %p308
      %p310 = scmp.ne.s32.totalorder %s302, %s304
      %p311 = scmp.eq.s32.totalorder %s37, 1
      %p312 = por %p310, %p311
      %p313 = scmp.ne.s32.totalorder %s304, %s305
      %p314 = scmp.eq.s32.totalorder %s37, 0
      %p315 = por %p313, %p314
      %p316 = scmp.ne.s32.totalorder %s304, %s305
      %p317 = scmp.eq.s32.totalorder %s38, 1
      %p318 = por %p316, %p317
      %p320 = scmp.ne.s32.totalorder %s305, %s319
      %p321 = scmp.eq.s32.totalorder %s38, 0
      %p322 = por %p320, %p321
      %s324 = sadd.s32 %s323, 1
      %p327 = scmp.eq.s32.totalorder %s32, 1
      %p328 = scmp.ne.s32.totalorder %s323, %s325
      %p329 = scmp.eq.s32.totalorder %s32, 0
      %p330 = por %p328, %p329
      %p331 = scmp.ne.s32.totalorder %s323, %s325
      %p332 = scmp.eq.s32.totalorder %s37, 1
      %p333 = por %p331, %p332
      %p334 = scmp.ne.s32.totalorder %s325, %s326
      %p335 = scmp.eq.s32.totalorder %s37, 0
      %p336 = por %p334, %p335
      %p337 = scmp.ne.s32.totalorder %s325, %s326
      %p338 = scmp.eq.s32.totalorder %s38, 1
      %p339 = por %p337, %p338
      %p341 = scmp.ne.s32.totalorder %s326, %s340
      %p342 = scmp.eq.s32.totalorder %s38, 0
      %p343 = por %p341, %p342
      %s345 = sadd.s32 %s344, 1
      %p348 = scmp.eq.s32.totalorder %s32, 1
      %p349 = scmp.ne.s32.totalorder %s344, %s346
      %p350 = scmp.eq.s32.totalorder %s32, 0
      %p351 = por %p349, %p350
      %p352 = scmp.ne.s32.totalorder %s344, %s346
      %p353 = scmp.eq.s32.totalorder %s37, 1
      %p354 = por %p352, %p353
      %p355 = scmp.ne.s32.totalorder %s346, %s347
      %p356 = scmp.eq.s32.totalorder %s37, 0
      %p357 = por %p355, %p356
      %p358 = scmp.ne.s32.totalorder %s346, %s347
      %p359 = scmp.eq.s32.totalorder %s38, 1
      %p360 = por %p358, %p359
      %p362 = scmp.ne.s32.totalorder %s347, %s361
      %p363 = scmp.eq.s32.totalorder %s38, 0
      %p364 = por %p362, %p363
      %s366 = sadd.s32 %s365, 1
      %p369 = scmp.eq.s32.totalorder %s32, 1
      %p370 = scmp.ne.s32.totalorder %s365, %s367
      %p371 = scmp.eq.s32.totalorder %s32, 0
      %p372 = por %p370, %p371
      %p373 = scmp.ne.s32.totalorder %s365, %s367
      %p374 = scmp.eq.s32.totalorder %s37, 1
      %p375 = por %p373, %p374
      %p376 = scmp.ne.s32.totalorder %s367, %s368
      %p377 = scmp.eq.s32.totalorder %s37, 0
      %p378 = por %p376, %p377
      %p379 = scmp.ne.s32.totalorder %s367, %s368
      %p380 = scmp.eq.s32.totalorder %s38, 1
      %p381 = por %p379, %p380
      %p383 = scmp.ne.s32.totalorder %s368, %s382
      %p384 = scmp.eq.s32.totalorder %s38, 0
      %p385 = por %p383, %p384
      %s387 = sadd.s32 %s386, 1
      %p390 = scmp.eq.s32.totalorder %s32, 1
      %p391 = scmp.ne.s32.totalorder %s386, %s388
      %p392 = scmp.eq.s32.totalorder %s32, 0
      %p393 = por %p391, %p392
      %p394 = scmp.ne.s32.totalorder %s386, %s388
      %p395 = scmp.eq.s32.totalorder %s37, 1
      %p396 = por %p394, %p395
      %p397 = scmp.ne.s32.totalorder %s388, %s389
      %p398 = scmp.eq.s32.totalorder %s37, 0
      %p399 = por %p397, %p398
      %p400 = scmp.ne.s32.totalorder %s388, %s389
      %p401 = scmp.eq.s32.totalorder %s38, 1
      %p402 = por %p400, %p401
      %p404 = scmp.ne.s32.totalorder %s389, %s403
      %p405 = scmp.eq.s32.totalorder %s38, 0
      %p406 = por %p404, %p405
      %s408 = sadd.s32 %s407, 1
      %p411 = scmp.eq.s32.totalorder %s32, 1
      %p412 = scmp.ne.s32.totalorder %s407, %s409
      %p413 = scmp.eq.s32.totalorder %s32, 0
      %p414 = por %p412, %p413
      %p415 = scmp.ne.s32.totalorder %s407, %s409
      %p416 = scmp.eq.s32.totalorder %s37, 1
      %p417 = por %p415, %p416
      %p418 = scmp.ne.s32.totalorder %s409, %s410
      %p419 = scmp.eq.s32.totalorder %s37, 0
      %p420 = por %p418, %p419
      %p421 = scmp.ne.s32.totalorder %s409, %s410
      %p422 = scmp.eq.s32.totalorder %s38, 1
      %p423 = por %p421, %p422
      %p425 = scmp.ne.s32.totalorder %s410, %s424
      %p426 = scmp.eq.s32.totalorder %s38, 0
      %p427 = por %p425, %p426
      %s428 = ssub.s32 %s32, %s39
      %p429 = scmp.eq.s32.totalorder %s428, 0
      %s431 = sadd.s32 %s430, 1
      %s432 = scalar_select %p429, %s430, %s431
      %p435 = pneg %p429
      %p436 = scmp.eq.s32.totalorder %s32, 1
      %p437 = por %p435, %p436
      %p438 = scmp.ne.s32.totalorder %s430, %s433
      %p439 = scmp.eq.s32.totalorder %s32, 0
      %p440 = por %p438, %p439
      %p441 = scmp.ne.s32.totalorder %s430, %s433
      %p442 = scmp.eq.s32.totalorder %s37, 1
      %p443 = por %p441, %p442
      %p444 = scmp.ne.s32.totalorder %s433, %s434
      %p445 = scmp.eq.s32.totalorder %s37, 0
      %p446 = por %p444, %p445
      %p447 = scmp.ne.s32.totalorder %s433, %s434
      %p448 = scmp.eq.s32.totalorder %s38, 1
      %p449 = por %p447, %p448
      %p451 = scmp.ne.s32.totalorder %s434, %s450
      %p452 = scmp.eq.s32.totalorder %s38, 0
      %p453 = por %p451, %p452
      %p454 = scmp.le.s32.totalorder 1, %s32
      %p455 = scmp.lt.s32.totalorder %s32, 3
      %p456 = pnand %p454, %p455
      %p457 = pneg %p456
      // Predicated region
      $region9: #{encoder_block_forward.1} parent=5 // pred_check
        _
      $region10: #{encoder_block_forward.1} parent=5 // pred_check_branch
        %459 = sbr.rel (%p456) target = $region12
      $region11: #{encoder_block_forward.1} parent=5 // pred_region
        %s460 = ssub.s32 %s32, 1
        // Predicated region
        $region13: #{encoder_block_forward.1} parent=11 // pred_check
          %p461 = pneg %p105
        $region14: #{encoder_block_forward.1} parent=11 // pred_check_branch
          %463 = sbr.rel (%p461) target = $region16
        $region15: #{encoder_block_forward.1} parent=11 // pred_region
          _
        $region16: #{encoder_block_forward.1} parent=11 // pred_fallthru
          _
        // Predicated region
        $region17: #{encoder_block_forward.1} parent=11 // pred_check
          %p464 = pneg %p126
        $region18: #{encoder_block_forward.1} parent=11 // pred_check_branch
          %466 = sbr.rel (%p464) target = $region20
        $region19: #{encoder_block_forward.1} parent=11 // pred_region
          _
        $region20: #{encoder_block_forward.1} parent=11 // pred_fallthru
          _
        // Predicated region
        $region21: #{encoder_block_forward.1} parent=11 // pred_check
          %p467 = pneg %p147
        $region22: #{encoder_block_forward.1} parent=11 // pred_check_branch
          %469 = sbr.rel (%p467) target = $region24
        $region23: #{encoder_block_forward.1} parent=11 // pred_region
          _
        $region24: #{encoder_block_forward.1} parent=11 // pred_fallthru
          _
        // Predicated region
        $region25: #{encoder_block_forward.1} parent=11 // pred_check
          %p470 = pneg %p168
        $region26: #{encoder_block_forward.1} parent=11 // pred_check_branch
          %472 = sbr.rel (%p470) target = $region28
        $region27: #{encoder_block_forward.1} parent=11 // pred_region
          _
        $region28: #{encoder_block_forward.1} parent=11 // pred_fallthru
          _
        // Predicated region
        $region29: #{encoder_block_forward.1} parent=11 // pred_check
          %p473 = pneg %p189
        $region30: #{encoder_block_forward.1} parent=11 // pred_check_branch
          %475 = sbr.rel (%p473) target = $region32
        $region31: #{encoder_block_forward.1} parent=11 // pred_region
          _
        $region32: #{encoder_block_forward.1} parent=11 // pred_fallthru
          _
        // Predicated region
        $region33: #{encoder_block_forward.1} parent=11 // pred_check
          %p476 = pneg %p210
        $region34: #{encoder_block_forward.1} parent=11 // pred_check_branch
          %478 = sbr.rel (%p476) target = $region36
        $region35: #{encoder_block_forward.1} parent=11 // pred_region
          _
        $region36: #{encoder_block_forward.1} parent=11 // pred_fallthru
          _
        // Predicated region
        $region37: #{encoder_block_forward.1} parent=11 // pred_check
          %p479 = pneg %p231
        $region38: #{encoder_block_forward.1} parent=11 // pred_check_branch
          %481 = sbr.rel (%p479) target = $region40
        $region39: #{encoder_block_forward.1} parent=11 // pred_region
          _
        $region40: #{encoder_block_forward.1} parent=11 // pred_fallthru
          _
        // Predicated region
        $region41: #{encoder_block_forward.1} parent=11 // pred_check
          %p482 = pneg %p252
        $region42: #{encoder_block_forward.1} parent=11 // pred_check_branch
          %484 = sbr.rel (%p482) target = $region44
        $region43: #{encoder_block_forward.1} parent=11 // pred_region
          _
        $region44: #{encoder_block_forward.1} parent=11 // pred_fallthru
          _
        // Predicated region
        $region45: #{encoder_block_forward.1} parent=11 // pred_check
          %p485 = pneg %p273
        $region46: #{encoder_block_forward.1} parent=11 // pred_check_branch
          %487 = sbr.rel (%p485) target = $region48
        $region47: #{encoder_block_forward.1} parent=11 // pred_region
          %s489 = ssub.s32 1024, 1024
          %490 = vsyncadd [#allocation6], %s489
          %s491 = sshll.u32 [#allocation5], 4
          %s492 = int_to_ptr.vmem [resolvable:$true] %s491
          %497 = dma.hbm_to_vmem [thread:$0]  %s10, 1024, %s492, [#allocation6], 64, 64, 4
        $region48: #{encoder_block_forward.1} parent=11 // pred_fallthru
          _
        // Predicated region
        $region49: #{encoder_block_forward.1} parent=11 // pred_check
          %p498 = pneg %p294
        $region50: #{encoder_block_forward.1} parent=11 // pred_check_branch
          %500 = sbr.rel (%p498) target = $region52
        $region51: #{encoder_block_forward.1} parent=11 // pred_region
          %s502 = ssub.s32 2048, 2048
          %503 = vsyncadd [#allocation6], %s502
          %s504 = sshll.u32 [#allocation7], 4
          %s505 = int_to_ptr.vmem [resolvable:$true] %s504
          %510 = dma.hbm_to_vmem [thread:$0]  %s11, 2048, %s505, [#allocation6], 128, 128, 8
        $region52: #{encoder_block_forward.1} parent=11 // pred_fallthru
          _
        // Predicated region
        $region53: #{encoder_block_forward.1} parent=11 // pred_check
          %p511 = pneg %p315
        $region54: #{encoder_block_forward.1} parent=11 // pred_check_branch
          %513 = sbr.rel (%p511) target = $region56
        $region55: #{encoder_block_forward.1} parent=11 // pred_region
          _
        $region56: #{encoder_block_forward.1} parent=11 // pred_fallthru
          _
        // Predicated region
        $region57: #{encoder_block_forward.1} parent=11 // pred_check
          %p514 = pneg %p336
        $region58: #{encoder_block_forward.1} parent=11 // pred_check_branch
          %516 = sbr.rel (%p514) target = $region60
        $region59: #{encoder_block_forward.1} parent=11 // pred_region
          _
        $region60: #{encoder_block_forward.1} parent=11 // pred_fallthru
          _
        // Predicated region
        $region61: #{encoder_block_forward.1} parent=11 // pred_check
          %p517 = pneg %p357
        $region62: #{encoder_block_forward.1} parent=11 // pred_check_branch
          %519 = sbr.rel (%p517) target = $region64
        $region63: #{encoder_block_forward.1} parent=11 // pred_region
          %s521 = ssub.s32 1024, 1024
          %522 = vsyncadd [#allocation9], %s521
          %s523 = sshll.u32 [#allocation8], 4
          %s524 = int_to_ptr.vmem [resolvable:$true] %s523
          %529 = dma.hbm_to_vmem [thread:$0]  %s14, 1024, %s524, [#allocation9], 64, 64, 4
        $region64: #{encoder_block_forward.1} parent=11 // pred_fallthru
          _
        // Predicated region
        $region65: #{encoder_block_forward.1} parent=11 // pred_check
          %p530 = pneg %p378
        $region66: #{encoder_block_forward.1} parent=11 // pred_check_branch
          %532 = sbr.rel (%p530) target = $region68
        $region67: #{encoder_block_forward.1} parent=11 // pred_region
          _
        $region68: #{encoder_block_forward.1} parent=11 // pred_fallthru
          _
        // Predicated region
        $region69: #{encoder_block_forward.1} parent=11 // pred_check
          %p533 = pneg %p399
        $region70: #{encoder_block_forward.1} parent=11 // pred_check_branch
          %535 = sbr.rel (%p533) target = $region72
        $region71: #{encoder_block_forward.1} parent=11 // pred_region
          %s537 = ssub.s32 1024, 1024
          %538 = vsyncadd [#allocation9], %s537
          %s539 = sshll.u32 [#allocation10], 4
          %s540 = int_to_ptr.vmem [resolvable:$true] %s539
          %545 = dma.hbm_to_vmem [thread:$0]  %s16, 1024, %s540, [#allocation9], 64, 64, 4
        $region72: #{encoder_block_forward.1} parent=11 // pred_fallthru
          _
        // Predicated region
        $region73: #{encoder_block_forward.1} parent=11 // pred_check
          %p546 = pneg %p420
        $region74: #{encoder_block_forward.1} parent=11 // pred_check_branch
          %548 = sbr.rel (%p546) target = $region76
        $region75: #{encoder_block_forward.1} parent=11 // pred_region
          _
        $region76: #{encoder_block_forward.1} parent=11 // pred_fallthru
          _
      $region12: #{encoder_block_forward.1} parent=5 // pred_fallthru
        _
      %p549 = scmp.lt.s32.totalorder %s32, 2
      // Predicated region
      $region77: #{encoder_block_forward.1} parent=5 // pred_check
        %p550 = pneg %p549
      $region78: #{encoder_block_forward.1} parent=5 // pred_check_branch
        %552 = sbr.rel (%p550) target = $region80
      $region79: #{encoder_block_forward.1} parent=5 // pred_region
        // Predicated region
        $region81: #{encoder_block_forward.1} parent=79 // pred_check
          %p553 = pneg %p52
        $region82: #{encoder_block_forward.1} parent=79 // pred_check_branch
          %555 = sbr.rel (%p553) target = $region84
        $region83: #{encoder_block_forward.1} parent=79 // pred_region
          %s556 = sand.u32 %s42, 1
          %s557 = scalar_lea.sflag [#allocation3], %s556
          %s558 = sand.u32 %s42, 1
          %s559 = smul.addr %s558, 16
          %s560 = scalar_lea.vmem [#allocation2], %s559
          %s562 = ssub.s32 256, 256
          %563 = vsyncadd %s557, %s562
          %s564 = smul.addr %s32, 2
          %s565 = smul.addr %s564, 128
          %s566 = scalar_lea.hbm %s0, %s565
          %s567 = sshll.u32 %s560, 4
          %s568 = int_to_ptr.vmem [resolvable:$true] %s567
          %573 = dma.hbm_to_vmem [thread:$0]  %s566, 256, %s568, %s557, 128, 128, 8
        $region84: #{encoder_block_forward.1} parent=79 // pred_fallthru
          _
        // Predicated region
        $region85: #{encoder_block_forward.1} parent=79 // pred_check
          %p574 = pneg %p78
        $region86: #{encoder_block_forward.1} parent=79 // pred_check_branch
          %576 = sbr.rel (%p574) target = $region88
        $region87: #{encoder_block_forward.1} parent=79 // pred_region
          %p577 = scmp.lt.s32.totalorder %s32, 1
          %s578 = scalar_select %p577, %s32, 1
          %s579 = scalar_lea.vmem %s1, %s578
        $region88: #{encoder_block_forward.1} parent=79 // pred_fallthru
          _
      $region80: #{encoder_block_forward.1} parent=5 // pred_fallthru
        _
      %p580 = scmp.le.s32.totalorder 1, %s32
      %p581 = scmp.lt.s32.totalorder %s32, 3
      %p582 = pnand %p580, %p581
      %p583 = pneg %p582
      // Predicated region
      $region89: #{encoder_block_forward.1} parent=5 // pred_check
        _
      $region90: #{encoder_block_forward.1} parent=5 // pred_check_branch
        %585 = sbr.rel (%p582) target = $region92
      $region91: #{encoder_block_forward.1} parent=5 // pred_region
        %s586 = ssub.s32 %s32, 1
        %s587 = sand.u32 %s45, 1
        %s588 = scalar_lea.sflag [#allocation3], %s587
        %s589 = sand.u32 %s45, 1
        %s590 = smul.addr %s589, 16
        %s591 = scalar_lea.vmem [#allocation2], %s590
        // Predicated region
        $region93: #{encoder_block_forward.1} parent=91 // pred_check
          %p592 = pneg %p58
        $region94: #{encoder_block_forward.1} parent=91 // pred_check_branch
          %594 = sbr.rel (%p592) target = $region96
        $region95: #{encoder_block_forward.1} parent=91 // pred_region
          %595 = dma.done %s588, 256
        $region96: #{encoder_block_forward.1} parent=91 // pred_fallthru
          _
        // Predicated region
        $region97: #{encoder_block_forward.1} parent=91 // pred_check
          %p596 = pneg %p273
        $region98: #{encoder_block_forward.1} parent=91 // pred_check_branch
          %598 = sbr.rel (%p596) target = $region100
        $region99: #{encoder_block_forward.1} parent=91 // pred_region
          %599 = dma.done [#allocation6], 1024
        $region100: #{encoder_block_forward.1} parent=91 // pred_fallthru
          _
        // Predicated region
        $region101: #{encoder_block_forward.1} parent=91 // pred_check
          %p600 = pneg %p294
        $region102: #{encoder_block_forward.1} parent=91 // pred_check_branch
          %602 = sbr.rel (%p600) target = $region104
        $region103: #{encoder_block_forward.1} parent=91 // pred_region
          %603 = dma.done [#allocation6], 2048
        $region104: #{encoder_block_forward.1} parent=91 // pred_fallthru
          _
        // Predicated region
        $region105: #{encoder_block_forward.1} parent=91 // pred_check
          %p604 = pneg %p357
        $region106: #{encoder_block_forward.1} parent=91 // pred_check_branch
          %606 = sbr.rel (%p604) target = $region108
        $region107: #{encoder_block_forward.1} parent=91 // pred_region
          %607 = dma.done [#allocation9], 1024
        $region108: #{encoder_block_forward.1} parent=91 // pred_fallthru
          _
        // Predicated region
        $region109: #{encoder_block_forward.1} parent=91 // pred_check
          %p608 = pneg %p399
        $region110: #{encoder_block_forward.1} parent=91 // pred_check_branch
          %610 = sbr.rel (%p608) target = $region112
        $region111: #{encoder_block_forward.1} parent=91 // pred_region
          %611 = dma.done [#allocation9], 1024
        $region112: #{encoder_block_forward.1} parent=91 // pred_fallthru
          _
        %s612 = sand.u32 %s45, 1
        %s613 = scalar_lea.sflag [#allocation3], %s612
        %s614 = sand.u32 %s45, 1
        %s615 = smul.addr %s614, 16
        %s616 = scalar_lea.vmem [#allocation2], %s615
        %p617 = pneg %p58
        %p618 = pneg %p55
        %p619 = scmp.lt.s32.totalorder %s37, 1
        %s620 = scalar_select %p619, %s37, 1
        %s621 = scalar_lea.vmem %s1, %s620
        %p622 = pneg %p84
        %p623 = pneg %p81
        %p624 = pneg %p105
        %p625 = pneg %p102
        %p626 = pneg %p126
        %p627 = pneg %p123
        %p628 = pneg %p147
        %p629 = pneg %p144
        %p630 = pneg %p168
        %p631 = pneg %p165
        %p632 = pneg %p189
        %p633 = pneg %p186
        %p634 = pneg %p210
        %p635 = pneg %p207
        %p636 = pneg %p231
        %p637 = pneg %p228
        %p638 = pneg %p252
        %p639 = pneg %p249
        %p640 = pneg %p273
        %p641 = pneg %p270
        %p642 = pneg %p294
        %p643 = pneg %p291
        %p644 = pneg %p315
        %p645 = pneg %p312
        %p646 = pneg %p336
        %p647 = pneg %p333
        %p648 = pneg %p357
        %p649 = pneg %p354
        %p650 = pneg %p378
        %p651 = pneg %p375
        %p652 = pneg %p399
        %p653 = pneg %p396
        %p654 = pneg %p420
        %p655 = pneg %p417
        %p656 = pneg %p446
        %p657 = pneg %p443
        %s658 = sand.u32 %s433, 1
        %s659 = scalar_lea.sflag [#allocation4], %s658
        %s660 = sand.u32 %s433, 1
        %s661 = smul.addr %s660, 16
        %s662 = scalar_lea.vmem [#allocation11], %s661
        %p663 = scmp.lt.s32.totalorder %s37, 1
        %s664 = scalar_select %p663, %s37, 1
        %s665 = scalar_lea.vmem %s1, %s664
        %v667 = vld [vmem:[%s591] sm:$0xff]
        %v668 = vld [vmem:[%s591 + $0x8] sm:$0xff]
        %v669 = vld [vmem:[%s2] sm:$0xff]
        %v670 = vld [vmem:[%s2 + $0x8] sm:$0xff]
        %v671 = vadd.f32 %v667, %v669
        %v672 = vadd.f32 %v668, %v670
        %v673 = vld [vmem:[%s665] sm:$0x1]
        %v674 = vld [vmem:[%s3] sm:$0x1]
        %v675 = vld [vmem:[%s3 + $0x1] sm:$0x1]
        %v676 = vld [vmem:[%s4] sm:$0x1]
        %v677 = vld [vmem:[%s4 + $0x1] sm:$0x1]
        %v678 = vld [vmem:[%s5] sm:$0x1]
        %v679 = vld [vmem:[%s5 + $0x1] sm:$0x1]
        %v680 = vld [vmem:[%s5 + $0x2] sm:$0x1]
        %v681 = vld [vmem:[%s5 + $0x3] sm:$0x1]
        %v682 = vld [vmem:[%s5 + $0x4] sm:$0x1]
        %v683 = vld [vmem:[%s5 + $0x5] sm:$0x1]
        %v684 = vld [vmem:[%s5 + $0x6] sm:$0x1]
        %v685 = vld [vmem:[%s5 + $0x7] sm:$0x1]
        %v686 = vld [vmem:[%s5 + $0x8] sm:$0x1]
        %v687 = vld [vmem:[%s5 + $0x9] sm:$0x1]
        %v688 = vld [vmem:[%s5 + $0xa] sm:$0x1]
        %v689 = vld [vmem:[%s5 + $0xb] sm:$0x1]
        %v690 = vld [vmem:[%s5 + $0xc] sm:$0x1]
        %v691 = vld [vmem:[%s5 + $0xd] sm:$0x1]
        %v692 = vld [vmem:[%s7] sm:$0x1]
        %v693 = vld [vmem:[%s7 + $0x1] sm:$0x1]
        %694 = vadd.xlane.f32.xlu0 %v671
        %v695 = vpop.xlane.xlu0 %694
        %696 = vadd.xlane.f32.xlu0 %v672
        %v697 = vpop.xlane.xlu0 %696
        %v698 = vrcp.pop 128.0
        %v699 = vmul.f32 %v695, %v698
        %v700 = vmul.f32 %v697, %v698
        %v701 = vsub.f32 %v671, %v699
        %v702 = vsub.f32 %v672, %v700
        %v703 = vmul.f32 %v701, %v701
        %v704 = vmul.f32 %v702, %v702
        %705 = vadd.xlane.f32.xlu0 %v703
        %v706 = vpop.xlane.xlu0 %705
        %707 = vadd.xlane.f32.xlu0 %v704
        %v708 = vpop.xlane.xlu0 %707
        %v709 = vmul.f32 %v706, %v698
        %v710 = vmul.f32 %v708, %v698
        %v711 = vadd.f32 %v709, 1e-05
        %v712 = vadd.f32 %v710, 1e-05
        %v713 = vrsqrt.pop %v711
        %v714 = vrsqrt.pop %v712
        %v715 = vmul.f32 %v701, %v713
        %v716 = vmul.f32 %v702, %v714
        %v718 = vlaneseq
        %v719 = vshrl.u32 %v718, 7
        %v720 = vsub.s32 0, %v719
        %v721 = vrot.slane %v674, %v720
        %v723 = vmul.f32 %v715, %v721
        %v724 = vmul.f32 %v716, %v721
        %v726 = vlaneseq
        %v727 = vshrl.u32 %v726, 7
        %v728 = vsub.s32 0, %v727
        %v729 = vrot.slane %v676, %v728
        %v731 = vadd.f32 %v723, %v729
        %v732 = vadd.f32 %v724, %v729
        %vm735 = vcmask 1042432
        %v736 = vrot.slane %v731, 5
        %v737 = vrot.slane %v732, 5
        %v738 = vsel %vm735, %v736, %v737
        %v742 = vsel %vm735, 0.0, %v736
        %v743 = vsel %vm735, %v737, 0.0
        %v745 = vlaneseq
        %v746 = vshrl.u32 %v745, 7
        %v747 = vsub.s32 0, %v746
        %v748 = vrot.slane %v678, %v747
        %v750 = vmul.f32 %v742, %v748
        %v751 = vmul.f32 %v738, %v748
        %v752 = vadd.f32 %v750, 0.0
        %v753 = vadd.f32 %v751, 0.0
        %v755 = vlaneseq
        %v756 = vshrl.u32 %v755, 7
        %v757 = vsub.s32 0, %v756
        %v758 = vrot.slane %v679, %v757
        %v760 = vmul.f32 %v742, %v758
        %v761 = vmul.f32 %v738, %v758
        %v762 = vmul.f32 %v743, %v758
        %vm766 = vcmask 1046528
        %v767 = vrot.slane %v760, 1
        %v768 = vrot.slane %v761, 1
        %v769 = vsel %vm766, %v767, %v768
        %v770 = vrot.slane %v762, 1
        %v771 = vsel %vm766, %v768, %v770
        %v774 = vadd.f32 %v752, %v769
        %v775 = vadd.f32 %v753, %v771
        %v777 = vlaneseq
        %v778 = vshrl.u32 %v777, 7
        %v779 = vsub.s32 0, %v778
        %v780 = vrot.slane %v680, %v779
        %v782 = vmul.f32 %v742, %v780
        %v783 = vmul.f32 %v738, %v780
        %v784 = vmul.f32 %v743, %v780
        %vm788 = vcmask 1045504
        %v789 = vrot.slane %v782, 2
        %v790 = vrot.slane %v783, 2
        %v791 = vsel %vm788, %v789, %v790
        %v792 = vrot.slane %v784, 2
        %v793 = vsel %vm788, %v790, %v792
        %v796 = vadd.f32 %v774, %v791
        %v797 = vadd.f32 %v775, %v793
        %v799 = vlaneseq
        %v800 = vshrl.u32 %v799, 7
        %v801 = vsub.s32 0, %v800
        %v802 = vrot.slane %v681, %v801
        %v804 = vmul.f32 %v742, %v802
        %v805 = vmul.f32 %v738, %v802
        %v806 = vmul.f32 %v743, %v802
        %vm810 = vcmask 1044480
        %v811 = vrot.slane %v804, 3
        %v812 = vrot.slane %v805, 3
        %v813 = vsel %vm810, %v811, %v812
        %v814 = vrot.slane %v806, 3
        %v815 = vsel %vm810, %v812, %v814
        %v818 = vadd.f32 %v796, %v813
        %v819 = vadd.f32 %v797, %v815
        %v821 = vlaneseq
        %v822 = vshrl.u32 %v821, 7
        %v823 = vsub.s32 0, %v822
        %v824 = vrot.slane %v682, %v823
        %v826 = vmul.f32 %v742, %v824
        %v827 = vmul.f32 %v738, %v824
        %v828 = vmul.f32 %v743, %v824
        %vm832 = vcmask 1043456
        %v833 = vrot.slane %v826, 4
        %v834 = vrot.slane %v827, 4
        %v835 = vsel %vm832, %v833, %v834
        %v836 = vrot.slane %v828, 4
        %v837 = vsel %vm832, %v834, %v836
        %v840 = vadd.f32 %v818, %v835
        %v841 = vadd.f32 %v819, %v837
        %v843 = vlaneseq
        %v844 = vshrl.u32 %v843, 7
        %v845 = vsub.s32 0, %v844
        %v846 = vrot.slane %v683, %v845
        %v848 = vmul.f32 %v742, %v846
        %v849 = vmul.f32 %v738, %v846
        %v850 = vmul.f32 %v743, %v846
        %v854 = vrot.slane %v848, 5
        %v855 = vrot.slane %v849, 5
        %v856 = vsel %vm735, %v854, %v855
        %v857 = vrot.slane %v850, 5
        %v858 = vsel %vm735, %v855, %v857
        %v861 = vadd.f32 %v840, %v856
        %v862 = vadd.f32 %v841, %v858
        %v864 = vlaneseq
        %v865 = vshrl.u32 %v864, 7
        %v866 = vsub.s32 0, %v865
        %v867 = vrot.slane %v684, %v866
        %v869 = vmul.f32 %v742, %v867
        %v870 = vmul.f32 %v738, %v867
        %v871 = vmul.f32 %v743, %v867
        %vm875 = vcmask 1041408
        %v876 = vrot.slane %v869, 6
        %v877 = vrot.slane %v870, 6
        %v878 = vsel %vm875, %v876, %v877
        %v879 = vrot.slane %v871, 6
        %v880 = vsel %vm875, %v877, %v879
        %v883 = vadd.f32 %v861, %v878
        %v884 = vadd.f32 %v862, %v880
        %v885 = vld [vmem:[%s6] sm:$0xf]
        %v886 = vld [vmem:[%s6 + $0x4] sm:$0xf]
        %v887 = vld [vmem:[%s6 + $0x8] sm:$0xf]
        %v888 = vld [vmem:[%s6 + $0xc] sm:$0xf]
        %v889 = vld [vmem:[%s6 + $0x10] sm:$0xf]
        %v890 = vld [vmem:[%s6 + $0x14] sm:$0xf]
        %v891 = vld [vmem:[%s6 + $0x18] sm:$0xf]
        %v892 = vld [vmem:[%s6 + $0x1c] sm:$0xf]
        %v893 = vld [vmem:[%s6 + $0x20] sm:$0xf]
        %v894 = vld [vmem:[%s6 + $0x24] sm:$0xf]
        %v895 = vld [vmem:[%s6 + $0x28] sm:$0xf]
        %v896 = vld [vmem:[%s6 + $0x2c] sm:$0xf]
        %v897 = vld [vmem:[%s6 + $0x30] sm:$0xf]
        %v898 = vld [vmem:[%s6 + $0x34] sm:$0xf]
        %v899 = vld [vmem:[%s6 + $0x38] sm:$0xf]
        %v900 = vld [vmem:[%s6 + $0x3c] sm:$0xf]
        %v901 = vpack.c.bf16 %v884, %v883
        %v903 = vlaneseq
        %v904 = vshrl.u32 %v903, 7
        %v905 = vsub.s32 0, %v904
        %v906 = vrot.slane %v692, %v905
        %v924 = vunpack.c.l.b16 %v885
        %v925 = vunpack.c.l.b16 %v886
        %v926 = vunpack.c.l.b16 %v887
        %v927 = vunpack.c.l.b16 %v888
        %v928 = vunpack.c.l.b16 %v889
        %v929 = vunpack.c.l.b16 %v890
        %v930 = vunpack.c.l.b16 %v891
        %v931 = vunpack.c.l.b16 %v892
        %v932 = vunpack.c.l.b16 %v893
        %v933 = vunpack.c.l.b16 %v894
        %v934 = vunpack.c.l.b16 %v895
        %v935 = vunpack.c.l.b16 %v896
        %v936 = vunpack.c.l.b16 %v897
        %v937 = vunpack.c.l.b16 %v898
        %v938 = vunpack.c.l.b16 %v899
        %v939 = vunpack.c.l.b16 %v900
        %v940 = vpack.c.b16 %v925, %v924
        %v941 = vpack.c.b16 %v927, %v926
        %v942 = vpack.c.b16 %v929, %v928
        %v943 = vpack.c.b16 %v931, %v930
        %v944 = vpack.c.b16 %v933, %v932
        %v945 = vpack.c.b16 %v935, %v934
        %v946 = vpack.c.b16 %v937, %v936
        %v947 = vpack.c.b16 %v939, %v938
        %956 = vmatprep.subr.bf16.mxu0 0
        %957 = vmatpush1.bf16.msra.mxu0 %v940
        %958 = vmatprep.subr.bf16.mxu0 0
        %959 = vmatpush1.bf16.msra.mxu0 %v941
        %960 = vmatprep.subr.bf16.mxu0 0
        %961 = vmatpush1.bf16.msra.mxu0 %v942
        %962 = vmatprep.subr.bf16.mxu0 0
        %963 = vmatpush1.bf16.msra.mxu0 %v943
        %964 = vmatprep.subr.bf16.mxu0 0
        %965 = vmatpush1.bf16.msra.mxu0 %v944
        %966 = vmatprep.subr.bf16.mxu0 0
        %967 = vmatpush1.bf16.msra.mxu0 %v945
        %968 = vmatprep.subr.bf16.mxu0 0
        %969 = vmatpush1.bf16.msra.mxu0 %v946
        %970 = vmatprep.subr.bf16.mxu0 0
        %971 = vmatpush1.bf16.msra.mxu0 %v947
        %972 = vmatprep.subr.bf16.mxu0 0
        %973 = vmatpush1.bf16.msra.mxu0 0
        %974 = vmatprep.subr.bf16.mxu0 0
        %975 = vmatpush1.bf16.msra.mxu0 0
        %976 = vmatprep.subr.bf16.mxu0 0
        %977 = vmatpush1.bf16.msra.mxu0 0
        %978 = vmatprep.subr.bf16.mxu0 0
        %979 = vmatpush1.bf16.msra.mxu0 0
        %980 = vmatprep.subr.bf16.mxu0 0
        %981 = vmatpush1.bf16.msra.mxu0 0
        %982 = vmatprep.subr.bf16.mxu0 0
        %983 = vmatpush1.bf16.msra.mxu0 0
        %984 = vmatprep.subr.bf16.mxu0 0
        %985 = vmatpush1.bf16.msra.mxu0 0
        %986 = vmatprep.subr.bf16.mxu0 0
        %987 = vmatpush1.bf16.msra.mxu0 0
        %988 = vmatprep.mubr.bf16.mxu0 0
        %989 = vmatmul.mubr.bf16.gmra.mrb[0].mxu0 %v901
        %v990 = vpop.f32.mrb[0].mxu0
        %v991 = vadd.f32 %v906, %v990
        %v992 = vpop.f32.mrb[0].mxu0
        %v993 = vpop.f32.mrb[0].mxu0
        %v994 = vadd.f32 %v906, %v993
        %v995 = vpop.f32.mrb[0].mxu0
        %996 = vdwg.mxu0
        %v997 = vmax.f32 %v991, 0.0
        %v998 = vmax.f32 %v994, 0.0
        %v999 = vadd.f32 %v997, %v671
        %v1000 = vadd.f32 %v998, %v672
        %1001 = vadd.xlane.f32.xlu0 %v999
        %v1002 = vpop.xlane.xlu0 %1001
        %1003 = vadd.xlane.f32.xlu0 %v1000
        %v1004 = vpop.xlane.xlu0 %1003
        %v1005 = vmul.f32 %v1002, %v698
        %v1006 = vmul.f32 %v1004, %v698
        %v1007 = vsub.f32 %v999, %v1005
        %v1008 = vsub.f32 %v1000, %v1006
        %v1009 = vmul.f32 %v1007, %v1007
        %v1010 = vmul.f32 %v1008, %v1008
        %1011 = vadd.xlane.f32.xlu0 %v1009
        %v1012 = vpop.xlane.xlu0 %1011
        %1013 = vadd.xlane.f32.xlu0 %v1010
        %v1014 = vpop.xlane.xlu0 %1013
        %v1015 = vmul.f32 %v1012, %v698
        %v1016 = vmul.f32 %v1014, %v698
        %v1017 = vadd.f32 %v1015, 1e-05
        %v1018 = vadd.f32 %v1016, 1e-05
        %v1019 = vrsqrt.pop %v1017
        %v1020 = vrsqrt.pop %v1018
        %v1021 = vmul.f32 %v1007, %v1019
        %v1022 = vmul.f32 %v1008, %v1020
        %v1024 = vlaneseq
        %v1025 = vshrl.u32 %v1024, 7
        %v1026 = vsub.s32 0, %v1025
        %v1027 = vrot.slane %v675, %v1026
        %v1029 = vmul.f32 %v1021, %v1027
        %v1030 = vmul.f32 %v1022, %v1027
        %v1032 = vlaneseq
        %v1033 = vshrl.u32 %v1032, 7
        %v1034 = vsub.s32 0, %v1033
        %v1035 = vrot.slane %v677, %v1034
        %v1037 = vadd.f32 %v1029, %v1035
        %v1038 = vadd.f32 %v1030, %v1035
        %v1041 = vrot.slane %v1037, 5
        %v1042 = vrot.slane %v1038, 5
        %v1043 = vsel %vm735, %v1041, %v1042
        %v1047 = vsel %vm735, 0.0, %v1041
        %v1048 = vsel %vm735, %v1042, 0.0
        %v1050 = vlaneseq
        %v1051 = vshrl.u32 %v1050, 7
        %v1052 = vsub.s32 0, %v1051
        %v1053 = vrot.slane %v685, %v1052
        %v1055 = vmul.f32 %v1047, %v1053
        %v1056 = vmul.f32 %v1043, %v1053
        %v1057 = vadd.f32 %v1055, 0.0
        %v1058 = vadd.f32 %v1056, 0.0
        %v1060 = vlaneseq
        %v1061 = vshrl.u32 %v1060, 7
        %v1062 = vsub.s32 0, %v1061
        %v1063 = vrot.slane %v686, %v1062
        %v1065 = vmul.f32 %v1047, %v1063
        %v1066 = vmul.f32 %v1043, %v1063
        %v1067 = vmul.f32 %v1048, %v1063
        %v1071 = vrot.slane %v1065, 1
        %v1072 = vrot.slane %v1066, 1
        %v1073 = vsel %vm766, %v1071, %v1072
        %v1074 = vrot.slane %v1067, 1
        %v1075 = vsel %vm766, %v1072, %v1074
        %v1078 = vadd.f32 %v1057, %v1073
        %v1079 = vadd.f32 %v1058, %v1075
        %v1081 = vlaneseq
        %v1082 = vshrl.u32 %v1081, 7
        %v1083 = vsub.s32 0, %v1082
        %v1084 = vrot.slane %v687, %v1083
        %v1086 = vmul.f32 %v1047, %v1084
        %v1087 = vmul.f32 %v1043, %v1084
        %v1088 = vmul.f32 %v1048, %v1084
        %v1092 = vrot.slane %v1086, 2
        %v1093 = vrot.slane %v1087, 2
        %v1094 = vsel %vm788, %v1092, %v1093
        %v1095 = vrot.slane %v1088, 2
        %v1096 = vsel %vm788, %v1093, %v1095
        %v1099 = vadd.f32 %v1078, %v1094
        %v1100 = vadd.f32 %v1079, %v1096
        %v1102 = vlaneseq
        %v1103 = vshrl.u32 %v1102, 7
        %v1104 = vsub.s32 0, %v1103
        %v1105 = vrot.slane %v688, %v1104
        %v1107 = vmul.f32 %v1047, %v1105
        %v1108 = vmul.f32 %v1043, %v1105
        %v1109 = vmul.f32 %v1048, %v1105
        %v1113 = vrot.slane %v1107, 3
        %v1114 = vrot.slane %v1108, 3
        %v1115 = vsel %vm810, %v1113, %v1114
        %v1116 = vrot.slane %v1109, 3
        %v1117 = vsel %vm810, %v1114, %v1116
        %v1120 = vadd.f32 %v1099, %v1115
        %v1121 = vadd.f32 %v1100, %v1117
        %v1123 = vlaneseq
        %v1124 = vshrl.u32 %v1123, 7
        %v1125 = vsub.s32 0, %v1124
        %v1126 = vrot.slane %v689, %v1125
        %v1128 = vmul.f32 %v1047, %v1126
        %v1129 = vmul.f32 %v1043, %v1126
        %v1130 = vmul.f32 %v1048, %v1126
        %v1134 = vrot.slane %v1128, 4
        %v1135 = vrot.slane %v1129, 4
        %v1136 = vsel %vm832, %v1134, %v1135
        %v1137 = vrot.slane %v1130, 4
        %v1138 = vsel %vm832, %v1135, %v1137
        %v1141 = vadd.f32 %v1120, %v1136
        %v1142 = vadd.f32 %v1121, %v1138
        %v1144 = vlaneseq
        %v1145 = vshrl.u32 %v1144, 7
        %v1146 = vsub.s32 0, %v1145
        %v1147 = vrot.slane %v690, %v1146
        %v1149 = vmul.f32 %v1047, %v1147
        %v1150 = vmul.f32 %v1043, %v1147
        %v1151 = vmul.f32 %v1048, %v1147
        %v1155 = vrot.slane %v1149, 5
        %v1156 = vrot.slane %v1150, 5
        %v1157 = vsel %vm735, %v1155, %v1156
        %v1158 = vrot.slane %v1151, 5
        %v1159 = vsel %vm735, %v1156, %v1158
        %v1162 = vadd.f32 %v1141, %v1157
        %v1163 = vadd.f32 %v1142, %v1159
        %v1165 = vlaneseq
        %v1166 = vshrl.u32 %v1165, 7
        %v1167 = vsub.s32 0, %v1166
        %v1168 = vrot.slane %v691, %v1167
        %v1170 = vmul.f32 %v1047, %v1168
        %v1171 = vmul.f32 %v1043, %v1168
        %v1172 = vmul.f32 %v1048, %v1168
        %v1176 = vrot.slane %v1170, 6
        %v1177 = vrot.slane %v1171, 6
        %v1178 = vsel %vm875, %v1176, %v1177
        %v1179 = vrot.slane %v1172, 6
        %v1180 = vsel %vm875, %v1177, %v1179
        %v1183 = vadd.f32 %v1162, %v1178
        %v1184 = vadd.f32 %v1163, %v1180
        %s1185 = scalar_lea.vmem %s6, 64
        %v1186 = vld [vmem:[%s1185] sm:$0xf]
        %v1187 = vld [vmem:[%s1185 + $0x4] sm:$0xf]
        %v1188 = vld [vmem:[%s1185 + $0x8] sm:$0xf]
        %v1189 = vld [vmem:[%s1185 + $0xc] sm:$0xf]
        %v1190 = vld [vmem:[%s1185 + $0x10] sm:$0xf]
        %v1191 = vld [vmem:[%s1185 + $0x14] sm:$0xf]
        %v1192 = vld [vmem:[%s1185 + $0x18] sm:$0xf]
        %v1193 = vld [vmem:[%s1185 + $0x1c] sm:$0xf]
        %v1194 = vld [vmem:[%s1185 + $0x20] sm:$0xf]
        %v1195 = vld [vmem:[%s1185 + $0x24] sm:$0xf]
        %v1196 = vld [vmem:[%s1185 + $0x28] sm:$0xf]
        %v1197 = vld [vmem:[%s1185 + $0x2c] sm:$0xf]
        %v1198 = vld [vmem:[%s1185 + $0x30] sm:$0xf]
        %v1199 = vld [vmem:[%s1185 + $0x34] sm:$0xf]
        %v1200 = vld [vmem:[%s1185 + $0x38] sm:$0xf]
        %v1201 = vld [vmem:[%s1185 + $0x3c] sm:$0xf]
        %v1202 = vpack.c.bf16 %v1184, %v1183
        %v1204 = vlaneseq
        %v1205 = vshrl.u32 %v1204, 7
        %v1206 = vsub.s32 0, %v1205
        %v1207 = vrot.slane %v693, %v1206
        %v1225 = vunpack.c.l.b16 %v1186
        %v1226 = vunpack.c.l.b16 %v1187
        %v1227 = vunpack.c.l.b16 %v1188
        %v1228 = vunpack.c.l.b16 %v1189
        %v1229 = vunpack.c.l.b16 %v1190
        %v1230 = vunpack.c.l.b16 %v1191
        %v1231 = vunpack.c.l.b16 %v1192
        %v1232 = vunpack.c.l.b16 %v1193
        %v1233 = vunpack.c.l.b16 %v1194
        %v1234 = vunpack.c.l.b16 %v1195
        %v1235 = vunpack.c.l.b16 %v1196
        %v1236 = vunpack.c.l.b16 %v1197
        %v1237 = vunpack.c.l.b16 %v1198
        %v1238 = vunpack.c.l.b16 %v1199
        %v1239 = vunpack.c.l.b16 %v1200
        %v1240 = vunpack.c.l.b16 %v1201
        %v1241 = vpack.c.b16 %v1226, %v1225
        %v1242 = vpack.c.b16 %v1228, %v1227
        %v1243 = vpack.c.b16 %v1230, %v1229
        %v1244 = vpack.c.b16 %v1232, %v1231
        %v1245 = vpack.c.b16 %v1234, %v1233
        %v1246 = vpack.c.b16 %v1236, %v1235
        %v1247 = vpack.c.b16 %v1238, %v1237
        %v1248 = vpack.c.b16 %v1240, %v1239
        %1257 = vmatprep.subr.bf16.mxu0 0
        %1258 = vmatpush1.bf16.msra.mxu0 %v1241
        %1259 = vmatprep.subr.bf16.mxu0 0
        %1260 = vmatpush1.bf16.msra.mxu0 %v1242
        %1261 = vmatprep.subr.bf16.mxu0 0
        %1262 = vmatpush1.bf16.msra.mxu0 %v1243
        %1263 = vmatprep.subr.bf16.mxu0 0
        %1264 = vmatpush1.bf16.msra.mxu0 %v1244
        %1265 = vmatprep.subr.bf16.mxu0 0
        %1266 = vmatpush1.bf16.msra.mxu0 %v1245
        %1267 = vmatprep.subr.bf16.mxu0 0
        %1268 = vmatpush1.bf16.msra.mxu0 %v1246
        %1269 = vmatprep.subr.bf16.mxu0 0
        %1270 = vmatpush1.bf16.msra.mxu0 %v1247
        %1271 = vmatprep.subr.bf16.mxu0 0
        %1272 = vmatpush1.bf16.msra.mxu0 %v1248
        %1273 = vmatprep.subr.bf16.mxu0 0
        %1274 = vmatpush1.bf16.msra.mxu0 0
        %1275 = vmatprep.subr.bf16.mxu0 0
        %1276 = vmatpush1.bf16.msra.mxu0 0
        %1277 = vmatprep.subr.bf16.mxu0 0
        %1278 = vmatpush1.bf16.msra.mxu0 0
        %1279 = vmatprep.subr.bf16.mxu0 0
        %1280 = vmatpush1.bf16.msra.mxu0 0
        %1281 = vmatprep.subr.bf16.mxu0 0
        %1282 = vmatpush1.bf16.msra.mxu0 0
        %1283 = vmatprep.subr.bf16.mxu0 0
        %1284 = vmatpush1.bf16.msra.mxu0 0
        %1285 = vmatprep.subr.bf16.mxu0 0
        %1286 = vmatpush1.bf16.msra.mxu0 0
        %1287 = vmatprep.subr.bf16.mxu0 0
        %1288 = vmatpush1.bf16.msra.mxu0 0
        %1289 = vmatprep.mubr.bf16.mxu0 0
        %1290 = vmatmul.mubr.bf16.gmra.mrb[0].mxu0 %v1202
        %v1291 = vpop.f32.mrb[0].mxu0
        %v1292 = vadd.f32 %v1207, %v1291
        %v1293 = vpop.f32.mrb[0].mxu0
        %v1294 = vpop.f32.mrb[0].mxu0
        %v1295 = vadd.f32 %v1207, %v1294
        %v1296 = vpop.f32.mrb[0].mxu0
        %1297 = vdwg.mxu0
        %v1298 = vmax.f32 %v1292, 0.0
        %v1299 = vmax.f32 %v1295, 0.0
        %v1300 = vadd.f32 %v1298, %v999
        %v1301 = vadd.f32 %v1299, %v1000
        %v1302 = vld [vmem:[%s8] sm:$0x1]
        %v1303 = vld [vmem:[%s9] sm:$0x1]
        %1304 = vadd.xlane.f32.xlu0 %v1300
        %v1305 = vpop.xlane.xlu0 %1304
        %1306 = vadd.xlane.f32.xlu0 %v1301
        %v1307 = vpop.xlane.xlu0 %1306
        %v1308 = vmul.f32 %v1305, %v698
        %v1309 = vmul.f32 %v1307, %v698
        %v1310 = vsub.f32 %v1300, %v1308
        %v1311 = vsub.f32 %v1301, %v1309
        %v1312 = vmul.f32 %v1310, %v1310
        %v1313 = vmul.f32 %v1311, %v1311
        %1314 = vadd.xlane.f32.xlu0 %v1312
        %v1315 = vpop.xlane.xlu0 %1314
        %1316 = vadd.xlane.f32.xlu0 %v1313
        %v1317 = vpop.xlane.xlu0 %1316
        %v1318 = vmul.f32 %v1315, %v698
        %v1319 = vmul.f32 %v1317, %v698
        %v1320 = vadd.f32 %v1318, 1e-05
        %v1321 = vadd.f32 %v1319, 1e-05
        %v1322 = vrsqrt.pop %v1320
        %v1323 = vrsqrt.pop %v1321
        %v1324 = vmul.f32 %v1310, %v1322
        %v1325 = vmul.f32 %v1311, %v1323
        %v1327 = vlaneseq
        %v1328 = vshrl.u32 %v1327, 7
        %v1329 = vsub.s32 0, %v1328
        %v1330 = vrot.slane %v1302, %v1329
        %v1332 = vmul.f32 %v1324, %v1330
        %v1333 = vmul.f32 %v1325, %v1330
        %v1335 = vlaneseq
        %v1336 = vshrl.u32 %v1335, 7
        %v1337 = vsub.s32 0, %v1336
        %v1338 = vrot.slane %v1303, %v1337
        %v1340 = vadd.f32 %v1332, %v1338
        %v1341 = vadd.f32 %v1333, %v1338
        %v1342 = vld [vmem:[#allocation5] sm:$0xf]
        %v1343 = vld [vmem:[#allocation5 + $0x4] sm:$0xf]
        %v1344 = vld [vmem:[#allocation5 + $0x8] sm:$0xf]
        %v1345 = vld [vmem:[#allocation5 + $0xc] sm:$0xf]
        %v1346 = vld [vmem:[#allocation5 + $0x10] sm:$0xf]
        %v1347 = vld [vmem:[#allocation5 + $0x14] sm:$0xf]
        %v1348 = vld [vmem:[#allocation5 + $0x18] sm:$0xf]
        %v1349 = vld [vmem:[#allocation5 + $0x1c] sm:$0xf]
        %v1350 = vld [vmem:[#allocation5 + $0x20] sm:$0xf]
        %v1351 = vld [vmem:[#allocation5 + $0x24] sm:$0xf]
        %v1352 = vld [vmem:[#allocation5 + $0x28] sm:$0xf]
        %v1353 = vld [vmem:[#allocation5 + $0x2c] sm:$0xf]
        %v1354 = vld [vmem:[#allocation5 + $0x30] sm:$0xf]
        %v1355 = vld [vmem:[#allocation5 + $0x34] sm:$0xf]
        %v1356 = vld [vmem:[#allocation5 + $0x38] sm:$0xf]
        %v1357 = vld [vmem:[#allocation5 + $0x3c] sm:$0xf]
        %v1358 = vpack.c.bf16 %v1341, %v1340
        %v1375 = vunpack.c.l.b16 %v1342
        %v1376 = vunpack.c.l.b16 %v1343
        %v1377 = vunpack.c.l.b16 %v1344
        %v1378 = vunpack.c.l.b16 %v1345
        %v1379 = vunpack.c.l.b16 %v1346
        %v1380 = vunpack.c.l.b16 %v1347
        %v1381 = vunpack.c.l.b16 %v1348
        %v1382 = vunpack.c.l.b16 %v1349
        %v1383 = vunpack.c.l.b16 %v1350
        %v1384 = vunpack.c.l.b16 %v1351
        %v1385 = vunpack.c.l.b16 %v1352
        %v1386 = vunpack.c.l.b16 %v1353
        %v1387 = vunpack.c.l.b16 %v1354
        %v1388 = vunpack.c.l.b16 %v1355
        %v1389 = vunpack.c.l.b16 %v1356
        %v1390 = vunpack.c.l.b16 %v1357
        %v1391 = vpack.c.b16 %v1376, %v1375
        %v1392 = vpack.c.b16 %v1378, %v1377
        %v1393 = vpack.c.b16 %v1380, %v1379
        %v1394 = vpack.c.b16 %v1382, %v1381
        %v1395 = vpack.c.b16 %v1384, %v1383
        %v1396 = vpack.c.b16 %v1386, %v1385
        %v1397 = vpack.c.b16 %v1388, %v1387
        %v1398 = vpack.c.b16 %v1390, %v1389
        %1407 = vmatprep.subr.bf16.mxu0 0
        %1408 = vmatpush1.bf16.msra.mxu0 %v1391
        %1409 = vmatprep.subr.bf16.mxu0 0
        %1410 = vmatpush1.bf16.msra.mxu0 %v1392
        %1411 = vmatprep.subr.bf16.mxu0 0
        %1412 = vmatpush1.bf16.msra.mxu0 %v1393
        %1413 = vmatprep.subr.bf16.mxu0 0
        %1414 = vmatpush1.bf16.msra.mxu0 %v1394
        %1415 = vmatprep.subr.bf16.mxu0 0
        %1416 = vmatpush1.bf16.msra.mxu0 %v1395
        %1417 = vmatprep.subr.bf16.mxu0 0
        %1418 = vmatpush1.bf16.msra.mxu0 %v1396
        %1419 = vmatprep.subr.bf16.mxu0 0
        %1420 = vmatpush1.bf16.msra.mxu0 %v1397
        %1421 = vmatprep.subr.bf16.mxu0 0
        %1422 = vmatpush1.bf16.msra.mxu0 %v1398
        %1423 = vmatprep.subr.bf16.mxu0 0
        %1424 = vmatpush1.bf16.msra.mxu0 0
        %1425 = vmatprep.subr.bf16.mxu0 0
        %1426 = vmatpush1.bf16.msra.mxu0 0
        %1427 = vmatprep.subr.bf16.mxu0 0
        %1428 = vmatpush1.bf16.msra.mxu0 0
        %1429 = vmatprep.subr.bf16.mxu0 0
        %1430 = vmatpush1.bf16.msra.mxu0 0
        %1431 = vmatprep.subr.bf16.mxu0 0
        %1432 = vmatpush1.bf16.msra.mxu0 0
        %1433 = vmatprep.subr.bf16.mxu0 0
        %1434 = vmatpush1.bf16.msra.mxu0 0
        %1435 = vmatprep.subr.bf16.mxu0 0
        %1436 = vmatpush1.bf16.msra.mxu0 0
        %1437 = vmatprep.subr.bf16.mxu0 0
        %1438 = vmatpush1.bf16.msra.mxu0 0
        %1439 = vmatprep.mubr.bf16.mxu0 0
        %1440 = vmatmul.mubr.bf16.gmra.mrb[0].mxu0 %v1358
        %v1441 = vpop.f32.mrb[0].mxu0
        %v1442 = vadd.f32 0.0, %v1441
        %v1443 = vpop.f32.mrb[0].mxu0
        %v1444 = vpop.f32.mrb[0].mxu0
        %v1445 = vadd.f32 0.0, %v1444
        %v1446 = vpop.f32.mrb[0].mxu0
        %1447 = vdwg.mxu0
        %v1448 = vmul.f32 %v1442, 0.25
        %v1449 = vmul.f32 %v1445, 0.25
        %v1450 = vld [vmem:[#allocation7] sm:$0xff]
        %v1451 = vld [vmem:[#allocation7 + $0x8] sm:$0xff]
        %v1452 = vld [vmem:[#allocation7 + $0x10] sm:$0xff]
        %v1453 = vld [vmem:[#allocation7 + $0x18] sm:$0xff]
        %v1454 = vld [vmem:[#allocation7 + $0x20] sm:$0xff]
        %v1455 = vld [vmem:[#allocation7 + $0x28] sm:$0xff]
        %v1456 = vld [vmem:[#allocation7 + $0x30] sm:$0xff]
        %v1457 = vld [vmem:[#allocation7 + $0x38] sm:$0xff]
        %v1458 = vld [vmem:[#allocation7 + $0x40] sm:$0xff]
        %v1459 = vld [vmem:[#allocation7 + $0x48] sm:$0xff]
        %v1460 = vld [vmem:[#allocation7 + $0x50] sm:$0xff]
        %v1461 = vld [vmem:[#allocation7 + $0x58] sm:$0xff]
        %v1462 = vld [vmem:[#allocation7 + $0x60] sm:$0xff]
        %v1463 = vld [vmem:[#allocation7 + $0x68] sm:$0xff]
        %v1464 = vld [vmem:[#allocation7 + $0x70] sm:$0xff]
        %v1465 = vld [vmem:[#allocation7 + $0x78] sm:$0xff]
        %v1482 = vunpack.c.l.b16 %v1450
        %v1483 = vunpack.c.h.b16 %v1450
        %v1484 = vunpack.c.l.b16 %v1451
        %v1485 = vunpack.c.h.b16 %v1451
        %v1486 = vunpack.c.l.b16 %v1452
        %v1487 = vunpack.c.h.b16 %v1452
        %v1488 = vunpack.c.l.b16 %v1453
        %v1489 = vunpack.c.h.b16 %v1453
        %v1490 = vunpack.c.l.b16 %v1454
        %v1491 = vunpack.c.h.b16 %v1454
        %v1492 = vunpack.c.l.b16 %v1455
        %v1493 = vunpack.c.h.b16 %v1455
        %v1494 = vunpack.c.l.b16 %v1456
        %v1495 = vunpack.c.h.b16 %v1456
        %v1496 = vunpack.c.l.b16 %v1457
        %v1497 = vunpack.c.h.b16 %v1457
        %v1498 = vunpack.c.l.b16 %v1458
        %v1499 = vunpack.c.h.b16 %v1458
        %v1500 = vunpack.c.l.b16 %v1459
        %v1501 = vunpack.c.h.b16 %v1459
        %v1502 = vunpack.c.l.b16 %v1460
        %v1503 = vunpack.c.h.b16 %v1460
        %v1504 = vunpack.c.l.b16 %v1461
        %v1505 = vunpack.c.h.b16 %v1461
        %v1506 = vunpack.c.l.b16 %v1462
        %v1507 = vunpack.c.h.b16 %v1462
        %v1508 = vunpack.c.l.b16 %v1463
        %v1509 = vunpack.c.h.b16 %v1463
        %v1510 = vunpack.c.l.b16 %v1464
        %v1511 = vunpack.c.h.b16 %v1464
        %v1512 = vunpack.c.l.b16 %v1465
        %v1513 = vunpack.c.h.b16 %v1465
        %v1514 = vpack.c.b16 %v1484, %v1482
        %v1515 = vpack.c.b16 %v1485, %v1483
        %v1516 = vpack.c.b16 %v1488, %v1486
        %v1517 = vpack.c.b16 %v1489, %v1487
        %v1518 = vpack.c.b16 %v1492, %v1490
        %v1519 = vpack.c.b16 %v1493, %v1491
        %v1520 = vpack.c.b16 %v1496, %v1494
        %v1521 = vpack.c.b16 %v1497, %v1495
        %v1522 = vpack.c.b16 %v1500, %v1498
        %v1523 = vpack.c.b16 %v1501, %v1499
        %v1524 = vpack.c.b16 %v1504, %v1502
        %v1525 = vpack.c.b16 %v1505, %v1503
        %v1526 = vpack.c.b16 %v1508, %v1506
        %v1527 = vpack.c.b16 %v1509, %v1507
        %v1528 = vpack.c.b16 %v1512, %v1510
        %v1529 = vpack.c.b16 %v1513, %v1511
        %1546 = vmatprep.subr.bf16.mxu0 %v1515
        %1547 = vmatpush1.bf16.msra.mxu0 %v1514
        %1548 = vmatprep.subr.bf16.mxu0 %v1517
        %1549 = vmatpush1.bf16.msra.mxu0 %v1516
        %1550 = vmatprep.subr.bf16.mxu0 %v1519
        %1551 = vmatpush1.bf16.msra.mxu0 %v1518
        %1552 = vmatprep.subr.bf16.mxu0 %v1521
        %1553 = vmatpush1.bf16.msra.mxu0 %v1520
        %1554 = vmatprep.subr.bf16.mxu0 %v1523
        %1555 = vmatpush1.bf16.msra.mxu0 %v1522
        %1556 = vmatprep.subr.bf16.mxu0 %v1525
        %1557 = vmatpush1.bf16.msra.mxu0 %v1524
        %1558 = vmatprep.subr.bf16.mxu0 %v1527
        %1559 = vmatpush1.bf16.msra.mxu0 %v1526
        %1560 = vmatprep.subr.bf16.mxu0 %v1529
        %1561 = vmatpush1.bf16.msra.mxu0 %v1528
        %1562 = vmatprep.subr.bf16.mxu0 0
        %1563 = vmatpush1.bf16.msra.mxu0 0
        %1564 = vmatprep.subr.bf16.mxu0 0
        %1565 = vmatpush1.bf16.msra.mxu0 0
        %1566 = vmatprep.subr.bf16.mxu0 0
        %1567 = vmatpush1.bf16.msra.mxu0 0
        %1568 = vmatprep.subr.bf16.mxu0 0
        %1569 = vmatpush1.bf16.msra.mxu0 0
        %1570 = vmatprep.subr.bf16.mxu0 0
        %1571 = vmatpush1.bf16.msra.mxu0 0
        %1572 = vmatprep.subr.bf16.mxu0 0
        %1573 = vmatpush1.bf16.msra.mxu0 0
        %1574 = vmatprep.subr.bf16.mxu0 0
        %1575 = vmatpush1.bf16.msra.mxu0 0
        %1576 = vmatprep.subr.bf16.mxu0 0
        %1577 = vmatpush1.bf16.msra.mxu0 0
        %1578 = vmatprep.mubr.bf16.mxu0 0
        %1579 = vmatmul.mubr.bf16.gmra.mrb[0].mxu0 %v1358
        %v1580 = vpop.f32.mrb[0].mxu0
        %v1581 = vadd.f32 0.0, %v1580
        %v1582 = vpop.f32.mrb[0].mxu0
        %v1583 = vadd.f32 0.0, %v1582
        %v1584 = vpop.f32.mrb[0].mxu0
        %v1585 = vadd.f32 0.0, %v1584
        %v1586 = vpop.f32.mrb[0].mxu0
        %v1587 = vadd.f32 0.0, %v1586
        %1588 = vdwg.mxu0
        %v1589 = vsub.f32 1.0, %v673
        %v1590 = vmul.f32 %v1589, -1e+30
        %v1591 = vpack.c.bf16 %v1449, %v1448
        %v1592 = vpack.c.bf16 %v1585, %v1581
        %vm1593 = vcmask 130048
        %v1595 = vsel %vm1593, %v1591, 0
        %v1598 = vsel %vm1593, %v1592, 0
        %1600 = vmatprep.subr.bf16.mxu0 0
        %1601 = vmatpush1.bf16.xpose.msra.mxu0 %v1598
        %1602 = vmatprep.subr.bf16.mxu0 0
        %1603 = vmatpush1.bf16.xpose.msra.mxu0 0
        %1604 = vmatprep.subr.bf16.mxu0 0
        %1605 = vmatpush1.bf16.xpose.msra.mxu0 0
        %1606 = vmatprep.subr.bf16.mxu0 0
        %1607 = vmatpush1.bf16.xpose.msra.mxu0 0
        %1608 = vmatprep.subr.bf16.mxu0 0
        %1609 = vmatpush1.bf16.xpose.msra.mxu0 0
        %1610 = vmatprep.subr.bf16.mxu0 0
        %1611 = vmatpush1.bf16.xpose.msra.mxu0 0
        %1612 = vmatprep.subr.bf16.mxu0 0
        %1613 = vmatpush1.bf16.xpose.msra.mxu0 0
        %1614 = vmatprep.subr.bf16.mxu0 0
        %1615 = vmatpush1.bf16.xpose.msra.mxu0 0
        %1616 = vmatprep.subr.bf16.mxu0 0
        %1617 = vmatpush1.bf16.xpose.msra.mxu0 0
        %1618 = vmatprep.subr.bf16.mxu0 0
        %1619 = vmatpush1.bf16.xpose.msra.mxu0 0
        %1620 = vmatprep.subr.bf16.mxu0 0
        %1621 = vmatpush1.bf16.xpose.msra.mxu0 0
        %1622 = vmatprep.subr.bf16.mxu0 0
        %1623 = vmatpush1.bf16.xpose.msra.mxu0 0
        %1624 = vmatprep.subr.bf16.mxu0 0
        %1625 = vmatpush1.bf16.xpose.msra.mxu0 0
        %1626 = vmatprep.subr.bf16.mxu0 0
        %1627 = vmatpush1.bf16.xpose.msra.mxu0 0
        %1628 = vmatprep.subr.bf16.mxu0 0
        %1629 = vmatpush1.bf16.xpose.msra.mxu0 0
        %1630 = vmatprep.subr.bf16.mxu0 0
        %1631 = vmatpush1.bf16.xpose.msra.mxu0 0
        %1632 = vmatprep.mubr.bf16.mxu0 0
        %1633 = vmatmul.mubr.bf16.gmra.mrb[0].mxu0 %v1595
        %v1634 = vpop.f32.mrb[0].mxu0
        %v1635 = vadd.f32 0.0, %v1634
        %v1636 = vpop.f32.mrb[0].mxu0
        %v1637 = vpop.f32.mrb[0].mxu0
        %v1638 = vadd.f32 0.0, %v1637
        %v1639 = vpop.f32.mrb[0].mxu0
        %1640 = vdwg.mxu0
        %v1642 = vlaneseq
        %v1643 = vshrl.u32 %v1642, 7
        %v1644 = vsub.s32 0, %v1643
        %v1645 = vrot.slane %v673, %v1644
        %v1647 = vmul.f32 %v1635, %v1645
        %v1648 = vmul.f32 %v1638, %v1645
        %v1650 = vlaneseq
        %v1651 = vshrl.u32 %v1650, 7
        %v1652 = vsub.s32 0, %v1651
        %v1653 = vrot.slane %v1590, %v1652
        %v1655 = vadd.f32 %v1647, %v1653
        %v1656 = vadd.f32 %v1648, %v1653
        %v1657 = vsel %vm1593, %v1655, -inf
        %1658 = vmax.xlane.f32.xlu0 %v1657
        %v1659 = vpop.xlane.xlu0 %1658
        %v1660 = vsel %vm1593, %v1656, -inf
        %1661 = vmax.xlane.f32.xlu0 %v1660
        %v1662 = vpop.xlane.xlu0 %1661
        %v1663 = vsub.f32 %v1655, %v1659
        %v1664 = vsub.f32 %v1656, %v1662
        %v1665 = vmul.f32 %v1663, 1.442695
        %v1666 = vpow.pop %v1665
        %v1667 = vmul.f32 %v1664, 1.442695
        %v1668 = vpow.pop %v1667
        %v1669 = vsel %vm1593, %v1666, 0.0
        %1670 = vadd.xlane.f32.xlu0 %v1669
        %v1671 = vpop.xlane.xlu0 %1670
        %v1672 = vsel %vm1593, %v1668, 0.0
        %1673 = vadd.xlane.f32.xlu0 %v1672
        %v1674 = vpop.xlane.xlu0 %1673
        %v1675 = vrcp.pop %v1671
        %v1676 = vrcp.pop %v1674
        %v1677 = vmul.f32 %v1666, %v1675
        %v1678 = vmul.f32 %v1668, %v1676
        %v1679 = vpack.c.bf16 %v1678, %v1677
        %v1680 = vpack.c.bf16 %v1587, %v1583
        %v1682 = vsel %vm1593, %v1679, 0
        %1684 = vmatprep.subr.bf16.mxu0 0
        %1685 = vmatpush1.bf16.msra.mxu0 %v1680
        %1686 = vmatprep.subr.bf16.mxu0 0
        %1687 = vmatpush1.bf16.msra.mxu0 0
        %1688 = vmatprep.subr.bf16.mxu0 0
        %1689 = vmatpush1.bf16.msra.mxu0 0
        %1690 = vmatprep.subr.bf16.mxu0 0
        %1691 = vmatpush1.bf16.msra.mxu0 0
        %1692 = vmatprep.subr.bf16.mxu0 0
        %1693 = vmatpush1.bf16.msra.mxu0 0
        %1694 = vmatprep.subr.bf16.mxu0 0
        %1695 = vmatpush1.bf16.msra.mxu0 0
        %1696 = vmatprep.subr.bf16.mxu0 0
        %1697 = vmatpush1.bf16.msra.mxu0 0
        %1698 = vmatprep.subr.bf16.mxu0 0
        %1699 = vmatpush1.bf16.msra.mxu0 0
        %1700 = vmatprep.subr.bf16.mxu0 0
        %1701 = vmatpush1.bf16.msra.mxu0 0
        %1702 = vmatprep.subr.bf16.mxu0 0
        %1703 = vmatpush1.bf16.msra.mxu0 0
        %1704 = vmatprep.subr.bf16.mxu0 0
        %1705 = vmatpush1.bf16.msra.mxu0 0
        %1706 = vmatprep.subr.bf16.mxu0 0
        %1707 = vmatpush1.bf16.msra.mxu0 0
        %1708 = vmatprep.subr.bf16.mxu0 0
        %1709 = vmatpush1.bf16.msra.mxu0 0
        %1710 = vmatprep.subr.bf16.mxu0 0
        %1711 = vmatpush1.bf16.msra.mxu0 0
        %1712 = vmatprep.subr.bf16.mxu0 0
        %1713 = vmatpush1.bf16.msra.mxu0 0
        %1714 = vmatprep.subr.bf16.mxu0 0
        %1715 = vmatpush1.bf16.msra.mxu0 0
        %1716 = vmatprep.mubr.bf16.mxu0 0
        %1717 = vmatmul.mubr.bf16.gmra.mrb[0].mxu0 %v1682
        %v1718 = vpop.f32.mrb[0].mxu0
        %v1719 = vadd.f32 0.0, %v1718
        %v1720 = vpop.f32.mrb[0].mxu0
        %v1721 = vpop.f32.mrb[0].mxu0
        %v1722 = vadd.f32 0.0, %v1721
        %v1723 = vpop.f32.mrb[0].mxu0
        %1724 = vdwg.mxu0
        %1726 = vrot.lane.b32.xlu0 %v1591, 112
        %v1727 = vpop.permute.xlu0 %1726
        %1729 = vrot.lane.b32.xlu0 %v1592, 112
        %v1730 = vpop.permute.xlu0 %1729
        %v1732 = vsel %vm1593, %v1727, 0
        %v1735 = vsel %vm1593, %v1730, 0
        %1737 = vmatprep.subr.bf16.mxu0 0
        %1738 = vmatpush1.bf16.xpose.msra.mxu0 %v1735
        %1739 = vmatprep.subr.bf16.mxu0 0
        %1740 = vmatpush1.bf16.xpose.msra.mxu0 0
        %1741 = vmatprep.subr.bf16.mxu0 0
        %1742 = vmatpush1.bf16.xpose.msra.mxu0 0
        %1743 = vmatprep.subr.bf16.mxu0 0
        %1744 = vmatpush1.bf16.xpose.msra.mxu0 0
        %1745 = vmatprep.subr.bf16.mxu0 0
        %1746 = vmatpush1.bf16.xpose.msra.mxu0 0
        %1747 = vmatprep.subr.bf16.mxu0 0
        %1748 = vmatpush1.bf16.xpose.msra.mxu0 0
        %1749 = vmatprep.subr.bf16.mxu0 0
        %1750 = vmatpush1.bf16.xpose.msra.mxu0 0
        %1751 = vmatprep.subr.bf16.mxu0 0
        %1752 = vmatpush1.bf16.xpose.msra.mxu0 0
        %1753 = vmatprep.subr.bf16.mxu0 0
        %1754 = vmatpush1.bf16.xpose.msra.mxu0 0
        %1755 = vmatprep.subr.bf16.mxu0 0
        %1756 = vmatpush1.bf16.xpose.msra.mxu0 0
        %1757 = vmatprep.subr.bf16.mxu0 0
        %1758 = vmatpush1.bf16.xpose.msra.mxu0 0
        %1759 = vmatprep.subr.bf16.mxu0 0
        %1760 = vmatpush1.bf16.xpose.msra.mxu0 0
        %1761 = vmatprep.subr.bf16.mxu0 0
        %1762 = vmatpush1.bf16.xpose.msra.mxu0 0
        %1763 = vmatprep.subr.bf16.mxu0 0
        %1764 = vmatpush1.bf16.xpose.msra.mxu0 0
        %1765 = vmatprep.subr.bf16.mxu0 0
        %1766 = vmatpush1.bf16.xpose.msra.mxu0 0
        %1767 = vmatprep.subr.bf16.mxu0 0
        %1768 = vmatpush1.bf16.xpose.msra.mxu0 0
        %1769 = vmatprep.mubr.bf16.mxu0 0
        %1770 = vmatmul.mubr.bf16.gmra.mrb[0].mxu0 %v1732
        %v1771 = vpop.f32.mrb[0].mxu0
        %v1772 = vadd.f32 0.0, %v1771
        %v1773 = vpop.f32.mrb[0].mxu0
        %v1774 = vpop.f32.mrb[0].mxu0
        %v1775 = vadd.f32 0.0, %v1774
        %v1776 = vpop.f32.mrb[0].mxu0
        %1777 = vdwg.mxu0
        %v1778 = vmul.f32 %v1772, %v1645
        %v1779 = vmul.f32 %v1775, %v1645
        %v1780 = vadd.f32 %v1778, %v1653
        %v1781 = vadd.f32 %v1779, %v1653
        %v1782 = vsel %vm1593, %v1780, -inf
        %1783 = vmax.xlane.f32.xlu0 %v1782
        %v1784 = vpop.xlane.xlu0 %1783
        %v1785 = vsel %vm1593, %v1781, -inf
        %1786 = vmax.xlane.f32.xlu0 %v1785
        %v1787 = vpop.xlane.xlu0 %1786
        %v1788 = vsub.f32 %v1780, %v1784
        %v1789 = vsub.f32 %v1781, %v1787
        %v1790 = vmul.f32 %v1788, 1.442695
        %v1791 = vpow.pop %v1790
        %v1792 = vmul.f32 %v1789, 1.442695
        %v1793 = vpow.pop %v1792
        %v1794 = vsel %vm1593, %v1791, 0.0
        %1795 = vadd.xlane.f32.xlu0 %v1794
        %v1796 = vpop.xlane.xlu0 %1795
        %v1797 = vsel %vm1593, %v1793, 0.0
        %1798 = vadd.xlane.f32.xlu0 %v1797
        %v1799 = vpop.xlane.xlu0 %1798
        %v1800 = vrcp.pop %v1796
        %v1801 = vrcp.pop %v1799
        %v1802 = vmul.f32 %v1791, %v1800
        %v1803 = vmul.f32 %v1793, %v1801
        %v1804 = vpack.c.bf16 %v1803, %v1802
        %1806 = vrot.lane.b32.xlu0 %v1680, 112
        %v1807 = vpop.permute.xlu0 %1806
        %v1810 = vsel %vm1593, %v1804, 0
        %1812 = vmatprep.subr.bf16.mxu0 0
        %1813 = vmatpush1.bf16.msra.mxu0 %v1807
        %1814 = vmatprep.subr.bf16.mxu0 0
        %1815 = vmatpush1.bf16.msra.mxu0 0
        %1816 = vmatprep.subr.bf16.mxu0 0
        %1817 = vmatpush1.bf16.msra.mxu0 0
        %1818 = vmatprep.subr.bf16.mxu0 0
        %1819 = vmatpush1.bf16.msra.mxu0 0
        %1820 = vmatprep.subr.bf16.mxu0 0
        %1821 = vmatpush1.bf16.msra.mxu0 0
        %1822 = vmatprep.subr.bf16.mxu0 0
        %1823 = vmatpush1.bf16.msra.mxu0 0
        %1824 = vmatprep.subr.bf16.mxu0 0
        %1825 = vmatpush1.bf16.msra.mxu0 0
        %1826 = vmatprep.subr.bf16.mxu0 0
        %1827 = vmatpush1.bf16.msra.mxu0 0
        %1828 = vmatprep.subr.bf16.mxu0 0
        %1829 = vmatpush1.bf16.msra.mxu0 0
        %1830 = vmatprep.subr.bf16.mxu0 0
        %1831 = vmatpush1.bf16.msra.mxu0 0
        %1832 = vmatprep.subr.bf16.mxu0 0
        %1833 = vmatpush1.bf16.msra.mxu0 0
        %1834 = vmatprep.subr.bf16.mxu0 0
        %1835 = vmatpush1.bf16.msra.mxu0 0
        %1836 = vmatprep.subr.bf16.mxu0 0
        %1837 = vmatpush1.bf16.msra.mxu0 0
        %1838 = vmatprep.subr.bf16.mxu0 0
        %1839 = vmatpush1.bf16.msra.mxu0 0
        %1840 = vmatprep.subr.bf16.mxu0 0
        %1841 = vmatpush1.bf16.msra.mxu0 0
        %1842 = vmatprep.subr.bf16.mxu0 0
        %1843 = vmatpush1.bf16.msra.mxu0 0
        %1844 = vmatprep.mubr.bf16.mxu0 0
        %1845 = vmatmul.mubr.bf16.gmra.mrb[0].mxu0 %v1810
        %v1846 = vpop.f32.mrb[0].mxu0
        %v1847 = vadd.f32 0.0, %v1846
        %v1848 = vpop.f32.mrb[0].mxu0
        %v1849 = vpop.f32.mrb[0].mxu0
        %v1850 = vadd.f32 0.0, %v1849
        %v1851 = vpop.f32.mrb[0].mxu0
        %1852 = vdwg.mxu0
        %1853 = vrot.lane.b32.xlu0 %v1591, 96
        %v1854 = vpop.permute.xlu0 %1853
        %1855 = vrot.lane.b32.xlu0 %v1592, 96
        %v1856 = vpop.permute.xlu0 %1855
        %v1858 = vsel %vm1593, %v1854, 0
        %v1861 = vsel %vm1593, %v1856, 0
        %1863 = vmatprep.subr.bf16.mxu0 0
        %1864 = vmatpush1.bf16.xpose.msra.mxu0 %v1861
        %1865 = vmatprep.subr.bf16.mxu0 0
        %1866 = vmatpush1.bf16.xpose.msra.mxu0 0
        %1867 = vmatprep.subr.bf16.mxu0 0
        %1868 = vmatpush1.bf16.xpose.msra.mxu0 0
        %1869 = vmatprep.subr.bf16.mxu0 0
        %1870 = vmatpush1.bf16.xpose.msra.mxu0 0
        %1871 = vmatprep.subr.bf16.mxu0 0
        %1872 = vmatpush1.bf16.xpose.msra.mxu0 0
        %1873 = vmatprep.subr.bf16.mxu0 0
        %1874 = vmatpush1.bf16.xpose.msra.mxu0 0
        %1875 = vmatprep.subr.bf16.mxu0 0
        %1876 = vmatpush1.bf16.xpose.msra.mxu0 0
        %1877 = vmatprep.subr.bf16.mxu0 0
        %1878 = vmatpush1.bf16.xpose.msra.mxu0 0
        %1879 = vmatprep.subr.bf16.mxu0 0
        %1880 = vmatpush1.bf16.xpose.msra.mxu0 0
        %1881 = vmatprep.subr.bf16.mxu0 0
        %1882 = vmatpush1.bf16.xpose.msra.mxu0 0
        %1883 = vmatprep.subr.bf16.mxu0 0
        %1884 = vmatpush1.bf16.xpose.msra.mxu0 0
        %1885 = vmatprep.subr.bf16.mxu0 0
        %1886 = vmatpush1.bf16.xpose.msra.mxu0 0
        %1887 = vmatprep.subr.bf16.mxu0 0
        %1888 = vmatpush1.bf16.xpose.msra.mxu0 0
        %1889 = vmatprep.subr.bf16.mxu0 0
        %1890 = vmatpush1.bf16.xpose.msra.mxu0 0
        %1891 = vmatprep.subr.bf16.mxu0 0
        %1892 = vmatpush1.bf16.xpose.msra.mxu0 0
        %1893 = vmatprep.subr.bf16.mxu0 0
        %1894 = vmatpush1.bf16.xpose.msra.mxu0 0
        %1895 = vmatprep.mubr.bf16.mxu0 0
        %1896 = vmatmul.mubr.bf16.gmra.mrb[0].mxu0 %v1858
        %v1897 = vpop.f32.mrb[0].mxu0
        %v1898 = vadd.f32 0.0, %v1897
        %v1899 = vpop.f32.mrb[0].mxu0
        %v1900 = vpop.f32.mrb[0].mxu0
        %v1901 = vadd.f32 0.0, %v1900
        %v1902 = vpop.f32.mrb[0].mxu0
        %1903 = vdwg.mxu0
        %v1904 = vmul.f32 %v1898, %v1645
        %v1905 = vmul.f32 %v1901, %v1645
        %v1906 = vadd.f32 %v1904, %v1653
        %v1907 = vadd.f32 %v1905, %v1653
        %v1908 = vsel %vm1593, %v1906, -inf
        %1909 = vmax.xlane.f32.xlu0 %v1908
        %v1910 = vpop.xlane.xlu0 %1909
        %v1911 = vsel %vm1593, %v1907, -inf
        %1912 = vmax.xlane.f32.xlu0 %v1911
        %v1913 = vpop.xlane.xlu0 %1912
        %v1914 = vsub.f32 %v1906, %v1910
        %v1915 = vsub.f32 %v1907, %v1913
        %v1916 = vmul.f32 %v1914, 1.442695
        %v1917 = vpow.pop %v1916
        %v1918 = vmul.f32 %v1915, 1.442695
        %v1919 = vpow.pop %v1918
        %v1920 = vsel %vm1593, %v1917, 0.0
        %1921 = vadd.xlane.f32.xlu0 %v1920
        %v1922 = vpop.xlane.xlu0 %1921
        %v1923 = vsel %vm1593, %v1919, 0.0
        %1924 = vadd.xlane.f32.xlu0 %v1923
        %v1925 = vpop.xlane.xlu0 %1924
        %v1926 = vrcp.pop %v1922
        %v1927 = vrcp.pop %v1925
        %v1928 = vmul.f32 %v1917, %v1926
        %v1929 = vmul.f32 %v1919, %v1927
        %v1930 = vpack.c.bf16 %v1929, %v1928
        %1931 = vrot.lane.b32.xlu0 %v1680, 96
        %v1932 = vpop.permute.xlu0 %1931
        %v1935 = vsel %vm1593, %v1930, 0
        %1937 = vmatprep.subr.bf16.mxu0 0
        %1938 = vmatpush1.bf16.msra.mxu0 %v1932
        %1939 = vmatprep.subr.bf16.mxu0 0
        %1940 = vmatpush1.bf16.msra.mxu0 0
        %1941 = vmatprep.subr.bf16.mxu0 0
        %1942 = vmatpush1.bf16.msra.mxu0 0
        %1943 = vmatprep.subr.bf16.mxu0 0
        %1944 = vmatpush1.bf16.msra.mxu0 0
        %1945 = vmatprep.subr.bf16.mxu0 0
        %1946 = vmatpush1.bf16.msra.mxu0 0
        %1947 = vmatprep.subr.bf16.mxu0 0
        %1948 = vmatpush1.bf16.msra.mxu0 0
        %1949 = vmatprep.subr.bf16.mxu0 0
        %1950 = vmatpush1.bf16.msra.mxu0 0
        %1951 = vmatprep.subr.bf16.mxu0 0
        %1952 = vmatpush1.bf16.msra.mxu0 0
        %1953 = vmatprep.subr.bf16.mxu0 0
        %1954 = vmatpush1.bf16.msra.mxu0 0
        %1955 = vmatprep.subr.bf16.mxu0 0
        %1956 = vmatpush1.bf16.msra.mxu0 0
        %1957 = vmatprep.subr.bf16.mxu0 0
        %1958 = vmatpush1.bf16.msra.mxu0 0
        %1959 = vmatprep.subr.bf16.mxu0 0
        %1960 = vmatpush1.bf16.msra.mxu0 0
        %1961 = vmatprep.subr.bf16.mxu0 0
        %1962 = vmatpush1.bf16.msra.mxu0 0
        %1963 = vmatprep.subr.bf16.mxu0 0
        %1964 = vmatpush1.bf16.msra.mxu0 0
        %1965 = vmatprep.subr.bf16.mxu0 0
        %1966 = vmatpush1.bf16.msra.mxu0 0
        %1967 = vmatprep.subr.bf16.mxu0 0
        %1968 = vmatpush1.bf16.msra.mxu0 0
        %1969 = vmatprep.mubr.bf16.mxu0 0
        %1970 = vmatmul.mubr.bf16.gmra.mrb[0].mxu0 %v1935
        %v1971 = vpop.f32.mrb[0].mxu0
        %v1972 = vadd.f32 0.0, %v1971
        %v1973 = vpop.f32.mrb[0].mxu0
        %v1974 = vpop.f32.mrb[0].mxu0
        %v1975 = vadd.f32 0.0, %v1974
        %v1976 = vpop.f32.mrb[0].mxu0
        %1977 = vdwg.mxu0
        %1978 = vrot.lane.b32.xlu0 %v1591, 80
        %v1979 = vpop.permute.xlu0 %1978
        %1980 = vrot.lane.b32.xlu0 %v1592, 80
        %v1981 = vpop.permute.xlu0 %1980
        %v1983 = vsel %vm1593, %v1979, 0
        %v1986 = vsel %vm1593, %v1981, 0
        %1988 = vmatprep.subr.bf16.mxu0 0
        %1989 = vmatpush1.bf16.xpose.msra.mxu0 %v1986
        %1990 = vmatprep.subr.bf16.mxu0 0
        %1991 = vmatpush1.bf16.xpose.msra.mxu0 0
        %1992 = vmatprep.subr.bf16.mxu0 0
        %1993 = vmatpush1.bf16.xpose.msra.mxu0 0
        %1994 = vmatprep.subr.bf16.mxu0 0
        %1995 = vmatpush1.bf16.xpose.msra.mxu0 0
        %1996 = vmatprep.subr.bf16.mxu0 0
        %1997 = vmatpush1.bf16.xpose.msra.mxu0 0
        %1998 = vmatprep.subr.bf16.mxu0 0
        %1999 = vmatpush1.bf16.xpose.msra.mxu0 0
        %2000 = vmatprep.subr.bf16.mxu0 0
        %2001 = vmatpush1.bf16.xpose.msra.mxu0 0
        %2002 = vmatprep.subr.bf16.mxu0 0
        %2003 = vmatpush1.bf16.xpose.msra.mxu0 0
        %2004 = vmatprep.subr.bf16.mxu0 0
        %2005 = vmatpush1.bf16.xpose.msra.mxu0 0
        %2006 = vmatprep.subr.bf16.mxu0 0
        %2007 = vmatpush1.bf16.xpose.msra.mxu0 0
        %2008 = vmatprep.subr.bf16.mxu0 0
        %2009 = vmatpush1.bf16.xpose.msra.mxu0 0
        %2010 = vmatprep.subr.bf16.mxu0 0
        %2011 = vmatpush1.bf16.xpose.msra.mxu0 0
        %2012 = vmatprep.subr.bf16.mxu0 0
        %2013 = vmatpush1.bf16.xpose.msra.mxu0 0
        %2014 = vmatprep.subr.bf16.mxu0 0
        %2015 = vmatpush1.bf16.xpose.msra.mxu0 0
        %2016 = vmatprep.subr.bf16.mxu0 0
        %2017 = vmatpush1.bf16.xpose.msra.mxu0 0
        %2018 = vmatprep.subr.bf16.mxu0 0
        %2019 = vmatpush1.bf16.xpose.msra.mxu0 0
        %2020 = vmatprep.mubr.bf16.mxu0 0
        %2021 = vmatmul.mubr.bf16.gmra.mrb[0].mxu0 %v1983
        %v2022 = vpop.f32.mrb[0].mxu0
        %v2023 = vadd.f32 0.0, %v2022
        %v2024 = vpop.f32.mrb[0].mxu0
        %v2025 = vpop.f32.mrb[0].mxu0
        %v2026 = vadd.f32 0.0, %v2025
        %v2027 = vpop.f32.mrb[0].mxu0
        %2028 = vdwg.mxu0
        %v2029 = vmul.f32 %v2023, %v1645
        %v2030 = vmul.f32 %v2026, %v1645
        %v2031 = vadd.f32 %v2029, %v1653
        %v2032 = vadd.f32 %v2030, %v1653
        %v2033 = vsel %vm1593, %v2031, -inf
        %2034 = vmax.xlane.f32.xlu0 %v2033
        %v2035 = vpop.xlane.xlu0 %2034
        %v2036 = vsel %vm1593, %v2032, -inf
        %2037 = vmax.xlane.f32.xlu0 %v2036
        %v2038 = vpop.xlane.xlu0 %2037
        %v2039 = vsub.f32 %v2031, %v2035
        %v2040 = vsub.f32 %v2032, %v2038
        %v2041 = vmul.f32 %v2039, 1.442695
        %v2042 = vpow.pop %v2041
        %v2043 = vmul.f32 %v2040, 1.442695
        %v2044 = vpow.pop %v2043
        %v2045 = vsel %vm1593, %v2042, 0.0
        %2046 = vadd.xlane.f32.xlu0 %v2045
        %v2047 = vpop.xlane.xlu0 %2046
        %v2048 = vsel %vm1593, %v2044, 0.0
        %2049 = vadd.xlane.f32.xlu0 %v2048
        %v2050 = vpop.xlane.xlu0 %2049
        %v2051 = vrcp.pop %v2047
        %v2052 = vrcp.pop %v2050
        %v2053 = vmul.f32 %v2042, %v2051
        %v2054 = vmul.f32 %v2044, %v2052
        %v2055 = vpack.c.bf16 %v2054, %v2053
        %2056 = vrot.lane.b32.xlu0 %v1680, 80
        %v2057 = vpop.permute.xlu0 %2056
        %v2060 = vsel %vm1593, %v2055, 0
        %2062 = vmatprep.subr.bf16.mxu0 0
        %2063 = vmatpush1.bf16.msra.mxu0 %v2057
        %2064 = vmatprep.subr.bf16.mxu0 0
        %2065 = vmatpush1.bf16.msra.mxu0 0
        %2066 = vmatprep.subr.bf16.mxu0 0
        %2067 = vmatpush1.bf16.msra.mxu0 0
        %2068 = vmatprep.subr.bf16.mxu0 0
        %2069 = vmatpush1.bf16.msra.mxu0 0
        %2070 = vmatprep.subr.bf16.mxu0 0
        %2071 = vmatpush1.bf16.msra.mxu0 0
        %2072 = vmatprep.subr.bf16.mxu0 0
        %2073 = vmatpush1.bf16.msra.mxu0 0
        %2074 = vmatprep.subr.bf16.mxu0 0
        %2075 = vmatpush1.bf16.msra.mxu0 0
        %2076 = vmatprep.subr.bf16.mxu0 0
        %2077 = vmatpush1.bf16.msra.mxu0 0
        %2078 = vmatprep.subr.bf16.mxu0 0
        %2079 = vmatpush1.bf16.msra.mxu0 0
        %2080 = vmatprep.subr.bf16.mxu0 0
        %2081 = vmatpush1.bf16.msra.mxu0 0
        %2082 = vmatprep.subr.bf16.mxu0 0
        %2083 = vmatpush1.bf16.msra.mxu0 0
        %2084 = vmatprep.subr.bf16.mxu0 0
        %2085 = vmatpush1.bf16.msra.mxu0 0
        %2086 = vmatprep.subr.bf16.mxu0 0
        %2087 = vmatpush1.bf16.msra.mxu0 0
        %2088 = vmatprep.subr.bf16.mxu0 0
        %2089 = vmatpush1.bf16.msra.mxu0 0
        %2090 = vmatprep.subr.bf16.mxu0 0
        %2091 = vmatpush1.bf16.msra.mxu0 0
        %2092 = vmatprep.subr.bf16.mxu0 0
        %2093 = vmatpush1.bf16.msra.mxu0 0
        %2094 = vmatprep.mubr.bf16.mxu0 0
        %2095 = vmatmul.mubr.bf16.gmra.mrb[0].mxu0 %v2060
        %v2096 = vpop.f32.mrb[0].mxu0
        %v2097 = vadd.f32 0.0, %v2096
        %v2098 = vpop.f32.mrb[0].mxu0
        %v2099 = vpop.f32.mrb[0].mxu0
        %v2100 = vadd.f32 0.0, %v2099
        %v2101 = vpop.f32.mrb[0].mxu0
        %2102 = vdwg.mxu0
        %2103 = vrot.lane.b32.xlu0 %v1591, 64
        %v2104 = vpop.permute.xlu0 %2103
        %2105 = vrot.lane.b32.xlu0 %v1592, 64
        %v2106 = vpop.permute.xlu0 %2105
        %v2108 = vsel %vm1593, %v2104, 0
        %v2111 = vsel %vm1593, %v2106, 0
        %2113 = vmatprep.subr.bf16.mxu0 0
        %2114 = vmatpush1.bf16.xpose.msra.mxu0 %v2111
        %2115 = vmatprep.subr.bf16.mxu0 0
        %2116 = vmatpush1.bf16.xpose.msra.mxu0 0
        %2117 = vmatprep.subr.bf16.mxu0 0
        %2118 = vmatpush1.bf16.xpose.msra.mxu0 0
        %2119 = vmatprep.subr.bf16.mxu0 0
        %2120 = vmatpush1.bf16.xpose.msra.mxu0 0
        %2121 = vmatprep.subr.bf16.mxu0 0
        %2122 = vmatpush1.bf16.xpose.msra.mxu0 0
        %2123 = vmatprep.subr.bf16.mxu0 0
        %2124 = vmatpush1.bf16.xpose.msra.mxu0 0
        %2125 = vmatprep.subr.bf16.mxu0 0
        %2126 = vmatpush1.bf16.xpose.msra.mxu0 0
        %2127 = vmatprep.subr.bf16.mxu0 0
        %2128 = vmatpush1.bf16.xpose.msra.mxu0 0
        %2129 = vmatprep.subr.bf16.mxu0 0
        %2130 = vmatpush1.bf16.xpose.msra.mxu0 0
        %2131 = vmatprep.subr.bf16.mxu0 0
        %2132 = vmatpush1.bf16.xpose.msra.mxu0 0
        %2133 = vmatprep.subr.bf16.mxu0 0
        %2134 = vmatpush1.bf16.xpose.msra.mxu0 0
        %2135 = vmatprep.subr.bf16.mxu0 0
        %2136 = vmatpush1.bf16.xpose.msra.mxu0 0
        %2137 = vmatprep.subr.bf16.mxu0 0
        %2138 = vmatpush1.bf16.xpose.msra.mxu0 0
        %2139 = vmatprep.subr.bf16.mxu0 0
        %2140 = vmatpush1.bf16.xpose.msra.mxu0 0
        %2141 = vmatprep.subr.bf16.mxu0 0
        %2142 = vmatpush1.bf16.xpose.msra.mxu0 0
        %2143 = vmatprep.subr.bf16.mxu0 0
        %2144 = vmatpush1.bf16.xpose.msra.mxu0 0
        %2145 = vmatprep.mubr.bf16.mxu0 0
        %2146 = vmatmul.mubr.bf16.gmra.mrb[0].mxu0 %v2108
        %v2147 = vpop.f32.mrb[0].mxu0
        %v2148 = vadd.f32 0.0, %v2147
        %v2149 = vpop.f32.mrb[0].mxu0
        %v2150 = vpop.f32.mrb[0].mxu0
        %v2151 = vadd.f32 0.0, %v2150
        %v2152 = vpop.f32.mrb[0].mxu0
        %2153 = vdwg.mxu0
        %v2154 = vmul.f32 %v2148, %v1645
        %v2155 = vmul.f32 %v2151, %v1645
        %v2156 = vadd.f32 %v2154, %v1653
        %v2157 = vadd.f32 %v2155, %v1653
        %v2158 = vsel %vm1593, %v2156, -inf
        %2159 = vmax.xlane.f32.xlu0 %v2158
        %v2160 = vpop.xlane.xlu0 %2159
        %v2161 = vsel %vm1593, %v2157, -inf
        %2162 = vmax.xlane.f32.xlu0 %v2161
        %v2163 = vpop.xlane.xlu0 %2162
        %v2164 = vsub.f32 %v2156, %v2160
        %v2165 = vsub.f32 %v2157, %v2163
        %v2166 = vmul.f32 %v2164, 1.442695
        %v2167 = vpow.pop %v2166
        %v2168 = vmul.f32 %v2165, 1.442695
        %v2169 = vpow.pop %v2168
        %v2170 = vsel %vm1593, %v2167, 0.0
        %2171 = vadd.xlane.f32.xlu0 %v2170
        %v2172 = vpop.xlane.xlu0 %2171
        %v2173 = vsel %vm1593, %v2169, 0.0
        %2174 = vadd.xlane.f32.xlu0 %v2173
        %v2175 = vpop.xlane.xlu0 %2174
        %v2176 = vrcp.pop %v2172
        %v2177 = vrcp.pop %v2175
        %v2178 = vmul.f32 %v2167, %v2176
        %v2179 = vmul.f32 %v2169, %v2177
        %v2180 = vpack.c.bf16 %v2179, %v2178
        %2181 = vrot.lane.b32.xlu0 %v1680, 64
        %v2182 = vpop.permute.xlu0 %2181
        %v2185 = vsel %vm1593, %v2180, 0
        %2187 = vmatprep.subr.bf16.mxu0 0
        %2188 = vmatpush1.bf16.msra.mxu0 %v2182
        %2189 = vmatprep.subr.bf16.mxu0 0
        %2190 = vmatpush1.bf16.msra.mxu0 0
        %2191 = vmatprep.subr.bf16.mxu0 0
        %2192 = vmatpush1.bf16.msra.mxu0 0
        %2193 = vmatprep.subr.bf16.mxu0 0
        %2194 = vmatpush1.bf16.msra.mxu0 0
        %2195 = vmatprep.subr.bf16.mxu0 0
        %2196 = vmatpush1.bf16.msra.mxu0 0
        %2197 = vmatprep.subr.bf16.mxu0 0
        %2198 = vmatpush1.bf16.msra.mxu0 0
        %2199 = vmatprep.subr.bf16.mxu0 0
        %2200 = vmatpush1.bf16.msra.mxu0 0
        %2201 = vmatprep.subr.bf16.mxu0 0
        %2202 = vmatpush1.bf16.msra.mxu0 0
        %2203 = vmatprep.subr.bf16.mxu0 0
        %2204 = vmatpush1.bf16.msra.mxu0 0
        %2205 = vmatprep.subr.bf16.mxu0 0
        %2206 = vmatpush1.bf16.msra.mxu0 0
        %2207 = vmatprep.subr.bf16.mxu0 0
        %2208 = vmatpush1.bf16.msra.mxu0 0
        %2209 = vmatprep.subr.bf16.mxu0 0
        %2210 = vmatpush1.bf16.msra.mxu0 0
        %2211 = vmatprep.subr.bf16.mxu0 0
        %2212 = vmatpush1.bf16.msra.mxu0 0
        %2213 = vmatprep.subr.bf16.mxu0 0
        %2214 = vmatpush1.bf16.msra.mxu0 0
        %2215 = vmatprep.subr.bf16.mxu0 0
        %2216 = vmatpush1.bf16.msra.mxu0 0
        %2217 = vmatprep.subr.bf16.mxu0 0
        %2218 = vmatpush1.bf16.msra.mxu0 0
        %2219 = vmatprep.mubr.bf16.mxu0 0
        %2220 = vmatmul.mubr.bf16.gmra.mrb[0].mxu0 %v2185
        %v2221 = vpop.f32.mrb[0].mxu0
        %v2222 = vadd.f32 0.0, %v2221
        %v2223 = vpop.f32.mrb[0].mxu0
        %v2224 = vpop.f32.mrb[0].mxu0
        %v2225 = vadd.f32 0.0, %v2224
        %v2226 = vpop.f32.mrb[0].mxu0
        %2227 = vdwg.mxu0
        %2228 = vrot.lane.b32.xlu0 %v1591, 48
        %v2229 = vpop.permute.xlu0 %2228
        %2230 = vrot.lane.b32.xlu0 %v1592, 48
        %v2231 = vpop.permute.xlu0 %2230
        %v2233 = vsel %vm1593, %v2229, 0
        %v2236 = vsel %vm1593, %v2231, 0
        %2238 = vmatprep.subr.bf16.mxu0 0
        %2239 = vmatpush1.bf16.xpose.msra.mxu0 %v2236
        %2240 = vmatprep.subr.bf16.mxu0 0
        %2241 = vmatpush1.bf16.xpose.msra.mxu0 0
        %2242 = vmatprep.subr.bf16.mxu0 0
        %2243 = vmatpush1.bf16.xpose.msra.mxu0 0
        %2244 = vmatprep.subr.bf16.mxu0 0
        %2245 = vmatpush1.bf16.xpose.msra.mxu0 0
        %2246 = vmatprep.subr.bf16.mxu0 0
        %2247 = vmatpush1.bf16.xpose.msra.mxu0 0
        %2248 = vmatprep.subr.bf16.mxu0 0
        %2249 = vmatpush1.bf16.xpose.msra.mxu0 0
        %2250 = vmatprep.subr.bf16.mxu0 0
        %2251 = vmatpush1.bf16.xpose.msra.mxu0 0
        %2252 = vmatprep.subr.bf16.mxu0 0
        %2253 = vmatpush1.bf16.xpose.msra.mxu0 0
        %2254 = vmatprep.subr.bf16.mxu0 0
        %2255 = vmatpush1.bf16.xpose.msra.mxu0 0
        %2256 = vmatprep.subr.bf16.mxu0 0
        %2257 = vmatpush1.bf16.xpose.msra.mxu0 0
        %2258 = vmatprep.subr.bf16.mxu0 0
        %2259 = vmatpush1.bf16.xpose.msra.mxu0 0
        %2260 = vmatprep.subr.bf16.mxu0 0
        %2261 = vmatpush1.bf16.xpose.msra.mxu0 0
        %2262 = vmatprep.subr.bf16.mxu0 0
        %2263 = vmatpush1.bf16.xpose.msra.mxu0 0
        %2264 = vmatprep.subr.bf16.mxu0 0
        %2265 = vmatpush1.bf16.xpose.msra.mxu0 0
        %2266 = vmatprep.subr.bf16.mxu0 0
        %2267 = vmatpush1.bf16.xpose.msra.mxu0 0
        %2268 = vmatprep.subr.bf16.mxu0 0
        %2269 = vmatpush1.bf16.xpose.msra.mxu0 0
        %2270 = vmatprep.mubr.bf16.mxu0 0
        %2271 = vmatmul.mubr.bf16.gmra.mrb[0].mxu0 %v2233
        %v2272 = vpop.f32.mrb[0].mxu0
        %v2273 = vadd.f32 0.0, %v2272
        %v2274 = vpop.f32.mrb[0].mxu0
        %v2275 = vpop.f32.mrb[0].mxu0
        %v2276 = vadd.f32 0.0, %v2275
        %v2277 = vpop.f32.mrb[0].mxu0
        %2278 = vdwg.mxu0
        %v2279 = vmul.f32 %v2273, %v1645
        %v2280 = vmul.f32 %v2276, %v1645
        %v2281 = vadd.f32 %v2279, %v1653
        %v2282 = vadd.f32 %v2280, %v1653
        %v2283 = vsel %vm1593, %v2281, -inf
        %2284 = vmax.xlane.f32.xlu0 %v2283
        %v2285 = vpop.xlane.xlu0 %2284
        %v2286 = vsel %vm1593, %v2282, -inf
        %2287 = vmax.xlane.f32.xlu0 %v2286
        %v2288 = vpop.xlane.xlu0 %2287
        %v2289 = vsub.f32 %v2281, %v2285
        %v2290 = vsub.f32 %v2282, %v2288
        %v2291 = vmul.f32 %v2289, 1.442695
        %v2292 = vpow.pop %v2291
        %v2293 = vmul.f32 %v2290, 1.442695
        %v2294 = vpow.pop %v2293
        %v2295 = vsel %vm1593, %v2292, 0.0
        %2296 = vadd.xlane.f32.xlu0 %v2295
        %v2297 = vpop.xlane.xlu0 %2296
        %v2298 = vsel %vm1593, %v2294, 0.0
        %2299 = vadd.xlane.f32.xlu0 %v2298
        %v2300 = vpop.xlane.xlu0 %2299
        %v2301 = vrcp.pop %v2297
        %v2302 = vrcp.pop %v2300
        %v2303 = vmul.f32 %v2292, %v2301
        %v2304 = vmul.f32 %v2294, %v2302
        %v2305 = vpack.c.bf16 %v2304, %v2303
        %2306 = vrot.lane.b32.xlu0 %v1680, 48
        %v2307 = vpop.permute.xlu0 %2306
        %v2310 = vsel %vm1593, %v2305, 0
        %2312 = vmatprep.subr.bf16.mxu0 0
        %2313 = vmatpush1.bf16.msra.mxu0 %v2307
        %2314 = vmatprep.subr.bf16.mxu0 0
        %2315 = vmatpush1.bf16.msra.mxu0 0
        %2316 = vmatprep.subr.bf16.mxu0 0
        %2317 = vmatpush1.bf16.msra.mxu0 0
        %2318 = vmatprep.subr.bf16.mxu0 0
        %2319 = vmatpush1.bf16.msra.mxu0 0
        %2320 = vmatprep.subr.bf16.mxu0 0
        %2321 = vmatpush1.bf16.msra.mxu0 0
        %2322 = vmatprep.subr.bf16.mxu0 0
        %2323 = vmatpush1.bf16.msra.mxu0 0
        %2324 = vmatprep.subr.bf16.mxu0 0
        %2325 = vmatpush1.bf16.msra.mxu0 0
        %2326 = vmatprep.subr.bf16.mxu0 0
        %2327 = vmatpush1.bf16.msra.mxu0 0
        %2328 = vmatprep.subr.bf16.mxu0 0
        %2329 = vmatpush1.bf16.msra.mxu0 0
        %2330 = vmatprep.subr.bf16.mxu0 0
        %2331 = vmatpush1.bf16.msra.mxu0 0
        %2332 = vmatprep.subr.bf16.mxu0 0
        %2333 = vmatpush1.bf16.msra.mxu0 0
        %2334 = vmatprep.subr.bf16.mxu0 0
        %2335 = vmatpush1.bf16.msra.mxu0 0
        %2336 = vmatprep.subr.bf16.mxu0 0
        %2337 = vmatpush1.bf16.msra.mxu0 0
        %2338 = vmatprep.subr.bf16.mxu0 0
        %2339 = vmatpush1.bf16.msra.mxu0 0
        %2340 = vmatprep.subr.bf16.mxu0 0
        %2341 = vmatpush1.bf16.msra.mxu0 0
        %2342 = vmatprep.subr.bf16.mxu0 0
        %2343 = vmatpush1.bf16.msra.mxu0 0
        %2344 = vmatprep.mubr.bf16.mxu0 0
        %2345 = vmatmul.mubr.bf16.gmra.mrb[0].mxu0 %v2310
        %v2346 = vpop.f32.mrb[0].mxu0
        %v2347 = vadd.f32 0.0, %v2346
        %v2348 = vpop.f32.mrb[0].mxu0
        %v2349 = vpop.f32.mrb[0].mxu0
        %v2350 = vadd.f32 0.0, %v2349
        %v2351 = vpop.f32.mrb[0].mxu0
        %2352 = vdwg.mxu0
        %2353 = vrot.lane.b32.xlu0 %v1591, 32
        %v2354 = vpop.permute.xlu0 %2353
        %2355 = vrot.lane.b32.xlu0 %v1592, 32
        %v2356 = vpop.permute.xlu0 %2355
        %v2358 = vsel %vm1593, %v2354, 0
        %v2361 = vsel %vm1593, %v2356, 0
        %2363 = vmatprep.subr.bf16.mxu0 0
        %2364 = vmatpush1.bf16.xpose.msra.mxu0 %v2361
        %2365 = vmatprep.subr.bf16.mxu0 0
        %2366 = vmatpush1.bf16.xpose.msra.mxu0 0
        %2367 = vmatprep.subr.bf16.mxu0 0
        %2368 = vmatpush1.bf16.xpose.msra.mxu0 0
        %2369 = vmatprep.subr.bf16.mxu0 0
        %2370 = vmatpush1.bf16.xpose.msra.mxu0 0
        %2371 = vmatprep.subr.bf16.mxu0 0
        %2372 = vmatpush1.bf16.xpose.msra.mxu0 0
        %2373 = vmatprep.subr.bf16.mxu0 0
        %2374 = vmatpush1.bf16.xpose.msra.mxu0 0
        %2375 = vmatprep.subr.bf16.mxu0 0
        %2376 = vmatpush1.bf16.xpose.msra.mxu0 0
        %2377 = vmatprep.subr.bf16.mxu0 0
        %2378 = vmatpush1.bf16.xpose.msra.mxu0 0
        %2379 = vmatprep.subr.bf16.mxu0 0
        %2380 = vmatpush1.bf16.xpose.msra.mxu0 0
        %2381 = vmatprep.subr.bf16.mxu0 0
        %2382 = vmatpush1.bf16.xpose.msra.mxu0 0
        %2383 = vmatprep.subr.bf16.mxu0 0
        %2384 = vmatpush1.bf16.xpose.msra.mxu0 0
        %2385 = vmatprep.subr.bf16.mxu0 0
        %2386 = vmatpush1.bf16.xpose.msra.mxu0 0
        %2387 = vmatprep.subr.bf16.mxu0 0
        %2388 = vmatpush1.bf16.xpose.msra.mxu0 0
        %2389 = vmatprep.subr.bf16.mxu0 0
        %2390 = vmatpush1.bf16.xpose.msra.mxu0 0
        %2391 = vmatprep.subr.bf16.mxu0 0
        %2392 = vmatpush1.bf16.xpose.msra.mxu0 0
        %2393 = vmatprep.subr.bf16.mxu0 0
        %2394 = vmatpush1.bf16.xpose.msra.mxu0 0
        %2395 = vmatprep.mubr.bf16.mxu0 0
        %2396 = vmatmul.mubr.bf16.gmra.mrb[0].mxu0 %v2358
        %v2397 = vpop.f32.mrb[0].mxu0
        %v2398 = vadd.f32 0.0, %v2397
        %v2399 = vpop.f32.mrb[0].mxu0
        %v2400 = vpop.f32.mrb[0].mxu0
        %v2401 = vadd.f32 0.0, %v2400
        %v2402 = vpop.f32.mrb[0].mxu0
        %2403 = vdwg.mxu0
        %v2404 = vmul.f32 %v2398, %v1645
        %v2405 = vmul.f32 %v2401, %v1645
        %v2406 = vadd.f32 %v2404, %v1653
        %v2407 = vadd.f32 %v2405, %v1653
        %v2408 = vsel %vm1593, %v2406, -inf
        %2409 = vmax.xlane.f32.xlu0 %v2408
        %v2410 = vpop.xlane.xlu0 %2409
        %v2411 = vsel %vm1593, %v2407, -inf
        %2412 = vmax.xlane.f32.xlu0 %v2411
        %v2413 = vpop.xlane.xlu0 %2412
        %v2414 = vsub.f32 %v2406, %v2410
        %v2415 = vsub.f32 %v2407, %v2413
        %v2416 = vmul.f32 %v2414, 1.442695
        %v2417 = vpow.pop %v2416
        %v2418 = vmul.f32 %v2415, 1.442695
        %v2419 = vpow.pop %v2418
        %v2420 = vsel %vm1593, %v2417, 0.0
        %2421 = vadd.xlane.f32.xlu0 %v2420
        %v2422 = vpop.xlane.xlu0 %2421
        %v2423 = vsel %vm1593, %v2419, 0.0
        %2424 = vadd.xlane.f32.xlu0 %v2423
        %v2425 = vpop.xlane.xlu0 %2424
        %v2426 = vrcp.pop %v2422
        %v2427 = vrcp.pop %v2425
        %v2428 = vmul.f32 %v2417, %v2426
        %v2429 = vmul.f32 %v2419, %v2427
        %v2430 = vpack.c.bf16 %v2429, %v2428
        %2431 = vrot.lane.b32.xlu0 %v1680, 32
        %v2432 = vpop.permute.xlu0 %2431
        %v2435 = vsel %vm1593, %v2430, 0
        %2437 = vmatprep.subr.bf16.mxu0 0
        %2438 = vmatpush1.bf16.msra.mxu0 %v2432
        %2439 = vmatprep.subr.bf16.mxu0 0
        %2440 = vmatpush1.bf16.msra.mxu0 0
        %2441 = vmatprep.subr.bf16.mxu0 0
        %2442 = vmatpush1.bf16.msra.mxu0 0
        %2443 = vmatprep.subr.bf16.mxu0 0
        %2444 = vmatpush1.bf16.msra.mxu0 0
        %2445 = vmatprep.subr.bf16.mxu0 0
        %2446 = vmatpush1.bf16.msra.mxu0 0
        %2447 = vmatprep.subr.bf16.mxu0 0
        %2448 = vmatpush1.bf16.msra.mxu0 0
        %2449 = vmatprep.subr.bf16.mxu0 0
        %2450 = vmatpush1.bf16.msra.mxu0 0
        %2451 = vmatprep.subr.bf16.mxu0 0
        %2452 = vmatpush1.bf16.msra.mxu0 0
        %2453 = vmatprep.subr.bf16.mxu0 0
        %2454 = vmatpush1.bf16.msra.mxu0 0
        %2455 = vmatprep.subr.bf16.mxu0 0
        %2456 = vmatpush1.bf16.msra.mxu0 0
        %2457 = vmatprep.subr.bf16.mxu0 0
        %2458 = vmatpush1.bf16.msra.mxu0 0
        %2459 = vmatprep.subr.bf16.mxu0 0
        %2460 = vmatpush1.bf16.msra.mxu0 0
        %2461 = vmatprep.subr.bf16.mxu0 0
        %2462 = vmatpush1.bf16.msra.mxu0 0
        %2463 = vmatprep.subr.bf16.mxu0 0
        %2464 = vmatpush1.bf16.msra.mxu0 0
        %2465 = vmatprep.subr.bf16.mxu0 0
        %2466 = vmatpush1.bf16.msra.mxu0 0
        %2467 = vmatprep.subr.bf16.mxu0 0
        %2468 = vmatpush1.bf16.msra.mxu0 0
        %2469 = vmatprep.mubr.bf16.mxu0 0
        %2470 = vmatmul.mubr.bf16.gmra.mrb[0].mxu0 %v2435
        %v2471 = vpop.f32.mrb[0].mxu0
        %v2472 = vadd.f32 0.0, %v2471
        %v2473 = vpop.f32.mrb[0].mxu0
        %v2474 = vpop.f32.mrb[0].mxu0
        %v2475 = vadd.f32 0.0, %v2474
        %v2476 = vpop.f32.mrb[0].mxu0
        %2477 = vdwg.mxu0
        %2478 = vrot.lane.b32.xlu0 %v1591, 16
        %v2479 = vpop.permute.xlu0 %2478
        %2480 = vrot.lane.b32.xlu0 %v1592, 16
        %v2481 = vpop.permute.xlu0 %2480
        %v2483 = vsel %vm1593, %v2479, 0
        %v2486 = vsel %vm1593, %v2481, 0
        %2488 = vmatprep.subr.bf16.mxu0 0
        %2489 = vmatpush1.bf16.xpose.msra.mxu0 %v2486
        %2490 = vmatprep.subr.bf16.mxu0 0
        %2491 = vmatpush1.bf16.xpose.msra.mxu0 0
        %2492 = vmatprep.subr.bf16.mxu0 0
        %2493 = vmatpush1.bf16.xpose.msra.mxu0 0
        %2494 = vmatprep.subr.bf16.mxu0 0
        %2495 = vmatpush1.bf16.xpose.msra.mxu0 0
        %2496 = vmatprep.subr.bf16.mxu0 0
        %2497 = vmatpush1.bf16.xpose.msra.mxu0 0
        %2498 = vmatprep.subr.bf16.mxu0 0
        %2499 = vmatpush1.bf16.xpose.msra.mxu0 0
        %2500 = vmatprep.subr.bf16.mxu0 0
        %2501 = vmatpush1.bf16.xpose.msra.mxu0 0
        %2502 = vmatprep.subr.bf16.mxu0 0
        %2503 = vmatpush1.bf16.xpose.msra.mxu0 0
        %2504 = vmatprep.subr.bf16.mxu0 0
        %2505 = vmatpush1.bf16.xpose.msra.mxu0 0
        %2506 = vmatprep.subr.bf16.mxu0 0
        %2507 = vmatpush1.bf16.xpose.msra.mxu0 0
        %2508 = vmatprep.subr.bf16.mxu0 0
        %2509 = vmatpush1.bf16.xpose.msra.mxu0 0
        %2510 = vmatprep.subr.bf16.mxu0 0
        %2511 = vmatpush1.bf16.xpose.msra.mxu0 0
        %2512 = vmatprep.subr.bf16.mxu0 0
        %2513 = vmatpush1.bf16.xpose.msra.mxu0 0
        %2514 = vmatprep.subr.bf16.mxu0 0
        %2515 = vmatpush1.bf16.xpose.msra.mxu0 0
        %2516 = vmatprep.subr.bf16.mxu0 0
        %2517 = vmatpush1.bf16.xpose.msra.mxu0 0
        %2518 = vmatprep.subr.bf16.mxu0 0
        %2519 = vmatpush1.bf16.xpose.msra.mxu0 0
        %2520 = vmatprep.mubr.bf16.mxu0 0
        %2521 = vmatmul.mubr.bf16.gmra.mrb[0].mxu0 %v2483
        %v2522 = vpop.f32.mrb[0].mxu0
        %v2523 = vadd.f32 0.0, %v2522
        %v2524 = vpop.f32.mrb[0].mxu0
        %v2525 = vpop.f32.mrb[0].mxu0
        %v2526 = vadd.f32 0.0, %v2525
        %v2527 = vpop.f32.mrb[0].mxu0
        %2528 = vdwg.mxu0
        %v2529 = vmul.f32 %v2523, %v1645
        %v2530 = vmul.f32 %v2526, %v1645
        %v2531 = vadd.f32 %v2529, %v1653
        %v2532 = vadd.f32 %v2530, %v1653
        %v2533 = vsel %vm1593, %v2531, -inf
        %2534 = vmax.xlane.f32.xlu0 %v2533
        %v2535 = vpop.xlane.xlu0 %2534
        %v2536 = vsel %vm1593, %v2532, -inf
        %2537 = vmax.xlane.f32.xlu0 %v2536
        %v2538 = vpop.xlane.xlu0 %2537
        %v2539 = vsub.f32 %v2531, %v2535
        %v2540 = vsub.f32 %v2532, %v2538
        %v2541 = vmul.f32 %v2539, 1.442695
        %v2542 = vpow.pop %v2541
        %v2543 = vmul.f32 %v2540, 1.442695
        %v2544 = vpow.pop %v2543
        %v2545 = vsel %vm1593, %v2542, 0.0
        %2546 = vadd.xlane.f32.xlu0 %v2545
        %v2547 = vpop.xlane.xlu0 %2546
        %v2548 = vsel %vm1593, %v2544, 0.0
        %2549 = vadd.xlane.f32.xlu0 %v2548
        %v2550 = vpop.xlane.xlu0 %2549
        %v2551 = vrcp.pop %v2547
        %v2552 = vrcp.pop %v2550
        %v2553 = vmul.f32 %v2542, %v2551
        %v2554 = vmul.f32 %v2544, %v2552
        %v2555 = vpack.c.bf16 %v2554, %v2553
        %2556 = vrot.lane.b32.xlu0 %v1680, 16
        %v2557 = vpop.permute.xlu0 %2556
        %v2560 = vsel %vm1593, %v2555, 0
        %2562 = vmatprep.subr.bf16.mxu0 0
        %2563 = vmatpush1.bf16.msra.mxu0 %v2557
        %2564 = vmatprep.subr.bf16.mxu0 0
        %2565 = vmatpush1.bf16.msra.mxu0 0
        %2566 = vmatprep.subr.bf16.mxu0 0
        %2567 = vmatpush1.bf16.msra.mxu0 0
        %2568 = vmatprep.subr.bf16.mxu0 0
        %2569 = vmatpush1.bf16.msra.mxu0 0
        %2570 = vmatprep.subr.bf16.mxu0 0
        %2571 = vmatpush1.bf16.msra.mxu0 0
        %2572 = vmatprep.subr.bf16.mxu0 0
        %2573 = vmatpush1.bf16.msra.mxu0 0
        %2574 = vmatprep.subr.bf16.mxu0 0
        %2575 = vmatpush1.bf16.msra.mxu0 0
        %2576 = vmatprep.subr.bf16.mxu0 0
        %2577 = vmatpush1.bf16.msra.mxu0 0
        %2578 = vmatprep.subr.bf16.mxu0 0
        %2579 = vmatpush1.bf16.msra.mxu0 0
        %2580 = vmatprep.subr.bf16.mxu0 0
        %2581 = vmatpush1.bf16.msra.mxu0 0
        %2582 = vmatprep.subr.bf16.mxu0 0
        %2583 = vmatpush1.bf16.msra.mxu0 0
        %2584 = vmatprep.subr.bf16.mxu0 0
        %2585 = vmatpush1.bf16.msra.mxu0 0
        %2586 = vmatprep.subr.bf16.mxu0 0
        %2587 = vmatpush1.bf16.msra.mxu0 0
        %2588 = vmatprep.subr.bf16.mxu0 0
        %2589 = vmatpush1.bf16.msra.mxu0 0
        %2590 = vmatprep.subr.bf16.mxu0 0
        %2591 = vmatpush1.bf16.msra.mxu0 0
        %2592 = vmatprep.subr.bf16.mxu0 0
        %2593 = vmatpush1.bf16.msra.mxu0 0
        %2594 = vmatprep.mubr.bf16.mxu0 0
        %2595 = vmatmul.mubr.bf16.gmra.mrb[0].mxu0 %v2560
        %v2596 = vpop.f32.mrb[0].mxu0
        %v2597 = vadd.f32 0.0, %v2596
        %v2598 = vpop.f32.mrb[0].mxu0
        %v2599 = vpop.f32.mrb[0].mxu0
        %v2600 = vadd.f32 0.0, %v2599
        %v2601 = vpop.f32.mrb[0].mxu0
        %2602 = vdwg.mxu0
        %2605 = vrot.lane.b32.xlu0 %v1847, 16
        %v2606 = vpop.permute.xlu0 %2605
        %2607 = vrot.lane.b32.xlu0 %v1850, 16
        %v2608 = vpop.permute.xlu0 %2607
        %2613 = vrot.lane.b32.xlu0 %v1972, 32
        %v2614 = vpop.permute.xlu0 %2613
        %2615 = vrot.lane.b32.xlu0 %v1975, 32
        %v2616 = vpop.permute.xlu0 %2615
        %2621 = vrot.lane.b32.xlu0 %v2097, 48
        %v2622 = vpop.permute.xlu0 %2621
        %2623 = vrot.lane.b32.xlu0 %v2100, 48
        %v2624 = vpop.permute.xlu0 %2623
        %2629 = vrot.lane.b32.xlu0 %v2222, 64
        %v2630 = vpop.permute.xlu0 %2629
        %2631 = vrot.lane.b32.xlu0 %v2225, 64
        %v2632 = vpop.permute.xlu0 %2631
        %2637 = vrot.lane.b32.xlu0 %v2347, 80
        %v2638 = vpop.permute.xlu0 %2637
        %2639 = vrot.lane.b32.xlu0 %v2350, 80
        %v2640 = vpop.permute.xlu0 %2639
        %2645 = vrot.lane.b32.xlu0 %v2472, 96
        %v2646 = vpop.permute.xlu0 %2645
        %2647 = vrot.lane.b32.xlu0 %v2475, 96
        %v2648 = vpop.permute.xlu0 %2647
        %2653 = vrot.lane.b32.xlu0 %v2597, 112
        %v2654 = vpop.permute.xlu0 %2653
        %2655 = vrot.lane.b32.xlu0 %v2600, 112
        %v2656 = vpop.permute.xlu0 %2655
        %v2659 = vsel %vm1593, %v1719, %v2606
        %v2660 = vsel %vm1593, %v1722, %v2608
        %vm2661 = vcmask 261120
        %v2662 = vsel %vm2661, %v2659, %v2614
        %v2663 = vsel %vm2661, %v2660, %v2616
        %vm2664 = vcmask 392192
        %v2665 = vsel %vm2664, %v2662, %v2622
        %v2666 = vsel %vm2664, %v2663, %v2624
        %vm2667 = vcmask 523264
        %v2668 = vsel %vm2667, %v2665, %v2630
        %v2669 = vsel %vm2667, %v2666, %v2632
        %vm2670 = vcmask 654336
        %v2671 = vsel %vm2670, %v2668, %v2638
        %v2672 = vsel %vm2670, %v2669, %v2640
        %vm2673 = vcmask 785408
        %v2674 = vsel %vm2673, %v2671, %v2646
        %v2675 = vsel %vm2673, %v2672, %v2648
        %vm2676 = vcmask 916480
        %v2677 = vsel %vm2676, %v2674, %v2654
        %v2678 = vsel %vm2676, %v2675, %v2656
        %v2679 = vadd.f32 %v2677, %v1300
        %v2680 = vadd.f32 %v2678, %v1301
        %v2681 = vld [vmem:[%s12] sm:$0x1]
        %v2682 = vld [vmem:[%s13] sm:$0x1]
        %2683 = vadd.xlane.f32.xlu0 %v2679
        %v2684 = vpop.xlane.xlu0 %2683
        %2685 = vadd.xlane.f32.xlu0 %v2680
        %v2686 = vpop.xlane.xlu0 %2685
        %v2687 = vmul.f32 %v2684, %v698
        %v2688 = vmul.f32 %v2686, %v698
        %v2689 = vsub.f32 %v2679, %v2687
        %v2690 = vsub.f32 %v2680, %v2688
        %v2691 = vmul.f32 %v2689, %v2689
        %v2692 = vmul.f32 %v2690, %v2690
        %2693 = vadd.xlane.f32.xlu0 %v2691
        %v2694 = vpop.xlane.xlu0 %2693
        %2695 = vadd.xlane.f32.xlu0 %v2692
        %v2696 = vpop.xlane.xlu0 %2695
        %v2697 = vmul.f32 %v2694, %v698
        %v2698 = vmul.f32 %v2696, %v698
        %v2699 = vadd.f32 %v2697, 1e-05
        %v2700 = vadd.f32 %v2698, 1e-05
        %v2701 = vrsqrt.pop %v2699
        %v2702 = vrsqrt.pop %v2700
        %v2703 = vmul.f32 %v2689, %v2701
        %v2704 = vmul.f32 %v2690, %v2702
        %v2706 = vlaneseq
        %v2707 = vshrl.u32 %v2706, 7
        %v2708 = vsub.s32 0, %v2707
        %v2709 = vrot.slane %v2681, %v2708
        %v2711 = vmul.f32 %v2703, %v2709
        %v2712 = vmul.f32 %v2704, %v2709
        %v2714 = vlaneseq
        %v2715 = vshrl.u32 %v2714, 7
        %v2716 = vsub.s32 0, %v2715
        %v2717 = vrot.slane %v2682, %v2716
        %v2719 = vadd.f32 %v2711, %v2717
        %v2720 = vadd.f32 %v2712, %v2717
        %v2721 = vld [vmem:[#allocation8] sm:$0xf]
        %v2722 = vld [vmem:[#allocation8 + $0x4] sm:$0xf]
        %v2723 = vld [vmem:[#allocation8 + $0x8] sm:$0xf]
        %v2724 = vld [vmem:[#allocation8 + $0xc] sm:$0xf]
        %v2725 = vld [vmem:[#allocation8 + $0x10] sm:$0xf]
        %v2726 = vld [vmem:[#allocation8 + $0x14] sm:$0xf]
        %v2727 = vld [vmem:[#allocation8 + $0x18] sm:$0xf]
        %v2728 = vld [vmem:[#allocation8 + $0x1c] sm:$0xf]
        %v2729 = vld [vmem:[#allocation8 + $0x20] sm:$0xf]
        %v2730 = vld [vmem:[#allocation8 + $0x24] sm:$0xf]
        %v2731 = vld [vmem:[#allocation8 + $0x28] sm:$0xf]
        %v2732 = vld [vmem:[#allocation8 + $0x2c] sm:$0xf]
        %v2733 = vld [vmem:[#allocation8 + $0x30] sm:$0xf]
        %v2734 = vld [vmem:[#allocation8 + $0x34] sm:$0xf]
        %v2735 = vld [vmem:[#allocation8 + $0x38] sm:$0xf]
        %v2736 = vld [vmem:[#allocation8 + $0x3c] sm:$0xf]
        %v2737 = vpack.c.bf16 %v2720, %v2719
        %v2738 = vld [vmem:[%s15] sm:$0x1]
        %v2740 = vlaneseq
        %v2741 = vshrl.u32 %v2740, 7
        %v2742 = vsub.s32 0, %v2741
        %v2743 = vrot.slane %v2738, %v2742
        %v2761 = vunpack.c.l.b16 %v2721
        %v2762 = vunpack.c.l.b16 %v2722
        %v2763 = vunpack.c.l.b16 %v2723
        %v2764 = vunpack.c.l.b16 %v2724
        %v2765 = vunpack.c.l.b16 %v2725
        %v2766 = vunpack.c.l.b16 %v2726
        %v2767 = vunpack.c.l.b16 %v2727
        %v2768 = vunpack.c.l.b16 %v2728
        %v2769 = vunpack.c.l.b16 %v2729
        %v2770 = vunpack.c.l.b16 %v2730
        %v2771 = vunpack.c.l.b16 %v2731
        %v2772 = vunpack.c.l.b16 %v2732
        %v2773 = vunpack.c.l.b16 %v2733
        %v2774 = vunpack.c.l.b16 %v2734
        %v2775 = vunpack.c.l.b16 %v2735
        %v2776 = vunpack.c.l.b16 %v2736
        %v2777 = vpack.c.b16 %v2762, %v2761
        %v2778 = vpack.c.b16 %v2764, %v2763
        %v2779 = vpack.c.b16 %v2766, %v2765
        %v2780 = vpack.c.b16 %v2768, %v2767
        %v2781 = vpack.c.b16 %v2770, %v2769
        %v2782 = vpack.c.b16 %v2772, %v2771
        %v2783 = vpack.c.b16 %v2774, %v2773
        %v2784 = vpack.c.b16 %v2776, %v2775
        %2793 = vmatprep.subr.bf16.mxu0 0
        %2794 = vmatpush1.bf16.msra.mxu0 %v2777
        %2795 = vmatprep.subr.bf16.mxu0 0
        %2796 = vmatpush1.bf16.msra.mxu0 %v2778
        %2797 = vmatprep.subr.bf16.mxu0 0
        %2798 = vmatpush1.bf16.msra.mxu0 %v2779
        %2799 = vmatprep.subr.bf16.mxu0 0
        %2800 = vmatpush1.bf16.msra.mxu0 %v2780
        %2801 = vmatprep.subr.bf16.mxu0 0
        %2802 = vmatpush1.bf16.msra.mxu0 %v2781
        %2803 = vmatprep.subr.bf16.mxu0 0
        %2804 = vmatpush1.bf16.msra.mxu0 %v2782
        %2805 = vmatprep.subr.bf16.mxu0 0
        %2806 = vmatpush1.bf16.msra.mxu0 %v2783
        %2807 = vmatprep.subr.bf16.mxu0 0
        %2808 = vmatpush1.bf16.msra.mxu0 %v2784
        %2809 = vmatprep.subr.bf16.mxu0 0
        %2810 = vmatpush1.bf16.msra.mxu0 0
        %2811 = vmatprep.subr.bf16.mxu0 0
        %2812 = vmatpush1.bf16.msra.mxu0 0
        %2813 = vmatprep.subr.bf16.mxu0 0
        %2814 = vmatpush1.bf16.msra.mxu0 0
        %2815 = vmatprep.subr.bf16.mxu0 0
        %2816 = vmatpush1.bf16.msra.mxu0 0
        %2817 = vmatprep.subr.bf16.mxu0 0
        %2818 = vmatpush1.bf16.msra.mxu0 0
        %2819 = vmatprep.subr.bf16.mxu0 0
        %2820 = vmatpush1.bf16.msra.mxu0 0
        %2821 = vmatprep.subr.bf16.mxu0 0
        %2822 = vmatpush1.bf16.msra.mxu0 0
        %2823 = vmatprep.subr.bf16.mxu0 0
        %2824 = vmatpush1.bf16.msra.mxu0 0
        %2825 = vmatprep.mubr.bf16.mxu0 0
        %2826 = vmatmul.mubr.bf16.gmra.mrb[0].mxu0 %v2737
        %v2827 = vpop.f32.mrb[0].mxu0
        %v2828 = vadd.f32 %v2743, %v2827
        %v2829 = vpop.f32.mrb[0].mxu0
        %v2830 = vpop.f32.mrb[0].mxu0
        %v2831 = vadd.f32 %v2743, %v2830
        %v2832 = vpop.f32.mrb[0].mxu0
        %2833 = vdwg.mxu0
        %v2834 = vmax.f32 %v2828, 0.0
        %v2835 = vmax.f32 %v2831, 0.0
        %v2836 = vld [vmem:[#allocation10] sm:$0xf]
        %v2837 = vld [vmem:[#allocation10 + $0x4] sm:$0xf]
        %v2838 = vld [vmem:[#allocation10 + $0x8] sm:$0xf]
        %v2839 = vld [vmem:[#allocation10 + $0xc] sm:$0xf]
        %v2840 = vld [vmem:[#allocation10 + $0x10] sm:$0xf]
        %v2841 = vld [vmem:[#allocation10 + $0x14] sm:$0xf]
        %v2842 = vld [vmem:[#allocation10 + $0x18] sm:$0xf]
        %v2843 = vld [vmem:[#allocation10 + $0x1c] sm:$0xf]
        %v2844 = vld [vmem:[#allocation10 + $0x20] sm:$0xf]
        %v2845 = vld [vmem:[#allocation10 + $0x24] sm:$0xf]
        %v2846 = vld [vmem:[#allocation10 + $0x28] sm:$0xf]
        %v2847 = vld [vmem:[#allocation10 + $0x2c] sm:$0xf]
        %v2848 = vld [vmem:[#allocation10 + $0x30] sm:$0xf]
        %v2849 = vld [vmem:[#allocation10 + $0x34] sm:$0xf]
        %v2850 = vld [vmem:[#allocation10 + $0x38] sm:$0xf]
        %v2851 = vld [vmem:[#allocation10 + $0x3c] sm:$0xf]
        %v2852 = vpack.c.bf16 %v2835, %v2834
        %v2853 = vld [vmem:[%s17] sm:$0x1]
        %v2855 = vlaneseq
        %v2856 = vshrl.u32 %v2855, 7
        %v2857 = vsub.s32 0, %v2856
        %v2858 = vrot.slane %v2853, %v2857
        %v2876 = vunpack.c.l.b16 %v2836
        %v2877 = vunpack.c.l.b16 %v2837
        %v2878 = vunpack.c.l.b16 %v2838
        %v2879 = vunpack.c.l.b16 %v2839
        %v2880 = vunpack.c.l.b16 %v2840
        %v2881 = vunpack.c.l.b16 %v2841
        %v2882 = vunpack.c.l.b16 %v2842
        %v2883 = vunpack.c.l.b16 %v2843
        %v2884 = vunpack.c.l.b16 %v2844
        %v2885 = vunpack.c.l.b16 %v2845
        %v2886 = vunpack.c.l.b16 %v2846
        %v2887 = vunpack.c.l.b16 %v2847
        %v2888 = vunpack.c.l.b16 %v2848
        %v2889 = vunpack.c.l.b16 %v2849
        %v2890 = vunpack.c.l.b16 %v2850
        %v2891 = vunpack.c.l.b16 %v2851
        %v2892 = vpack.c.b16 %v2877, %v2876
        %v2893 = vpack.c.b16 %v2879, %v2878
        %v2894 = vpack.c.b16 %v2881, %v2880
        %v2895 = vpack.c.b16 %v2883, %v2882
        %v2896 = vpack.c.b16 %v2885, %v2884
        %v2897 = vpack.c.b16 %v2887, %v2886
        %v2898 = vpack.c.b16 %v2889, %v2888
        %v2899 = vpack.c.b16 %v2891, %v2890
        %2908 = vmatprep.subr.bf16.mxu0 0
        %2909 = vmatpush1.bf16.msra.mxu0 %v2892
        %2910 = vmatprep.subr.bf16.mxu0 0
        %2911 = vmatpush1.bf16.msra.mxu0 %v2893
        %2912 = vmatprep.subr.bf16.mxu0 0
        %2913 = vmatpush1.bf16.msra.mxu0 %v2894
        %2914 = vmatprep.subr.bf16.mxu0 0
        %2915 = vmatpush1.bf16.msra.mxu0 %v2895
        %2916 = vmatprep.subr.bf16.mxu0 0
        %2917 = vmatpush1.bf16.msra.mxu0 %v2896
        %2918 = vmatprep.subr.bf16.mxu0 0
        %2919 = vmatpush1.bf16.msra.mxu0 %v2897
        %2920 = vmatprep.subr.bf16.mxu0 0
        %2921 = vmatpush1.bf16.msra.mxu0 %v2898
        %2922 = vmatprep.subr.bf16.mxu0 0
        %2923 = vmatpush1.bf16.msra.mxu0 %v2899
        %2924 = vmatprep.subr.bf16.mxu0 0
        %2925 = vmatpush1.bf16.msra.mxu0 0
        %2926 = vmatprep.subr.bf16.mxu0 0
        %2927 = vmatpush1.bf16.msra.mxu0 0
        %2928 = vmatprep.subr.bf16.mxu0 0
        %2929 = vmatpush1.bf16.msra.mxu0 0
        %2930 = vmatprep.subr.bf16.mxu0 0
        %2931 = vmatpush1.bf16.msra.mxu0 0
        %2932 = vmatprep.subr.bf16.mxu0 0
        %2933 = vmatpush1.bf16.msra.mxu0 0
        %2934 = vmatprep.subr.bf16.mxu0 0
        %2935 = vmatpush1.bf16.msra.mxu0 0
        %2936 = vmatprep.subr.bf16.mxu0 0
        %2937 = vmatpush1.bf16.msra.mxu0 0
        %2938 = vmatprep.subr.bf16.mxu0 0
        %2939 = vmatpush1.bf16.msra.mxu0 0
        %2940 = vmatprep.mubr.bf16.mxu0 0
        %2941 = vmatmul.mubr.bf16.gmra.mrb[0].mxu0 %v2852
        %v2942 = vpop.f32.mrb[0].mxu0
        %v2943 = vadd.f32 %v2858, %v2942
        %v2944 = vpop.f32.mrb[0].mxu0
        %v2945 = vpop.f32.mrb[0].mxu0
        %v2946 = vadd.f32 %v2858, %v2945
        %v2947 = vpop.f32.mrb[0].mxu0
        %2948 = vdwg.mxu0
        %v2949 = vadd.f32 %v2943, %v2679
        %v2950 = vadd.f32 %v2946, %v2680
        %2951 = vst [vmem:[%s662] sm:$0xff] %v2949
        %2952 = vst [vmem:[%s662 + $0x8] sm:$0xff] %v2950
        %s2953 = sand.u32 %s433, 1
        %s2954 = scalar_lea.sflag [#allocation4], %s2953
        %s2955 = sand.u32 %s433, 1
        %s2956 = smul.addr %s2955, 16
        %s2957 = scalar_lea.vmem [#allocation11], %s2956
        // Predicated region
        $region113: #{encoder_block_forward.1} parent=91 // pred_check
          %p2958 = pneg %p443
        $region114: #{encoder_block_forward.1} parent=91 // pred_check_branch
          %2960 = sbr.rel (%p2958) target = $region116
        $region115: #{encoder_block_forward.1} parent=91 // pred_region
          %s2962 = ssub.s32 256, 256
          %2963 = vsyncadd %s2954, %s2962
          %s2964 = smul.addr %s37, 2
          %s2965 = smul.addr %s2964, 128
          %s2966 = scalar_lea.hbm %s18, %s2965
          %s2967 = sshll.u32 %s2957, 4
          %s2968 = int_to_ptr.vmem [resolvable:$true] %s2967
          %2973 = dma.vmem_to_hbm [thread:$0]  %s2968, 256, %s2966, %s2954, 128, 128, 8
        $region116: #{encoder_block_forward.1} parent=91 // pred_fallthru
          _
      $region92: #{encoder_block_forward.1} parent=5 // pred_fallthru
        _
      %p2974 = scmp.le.s32.totalorder 2, %s32
      // Predicated region
      $region117: #{encoder_block_forward.1} parent=5 // pred_check
        %p2975 = pneg %p2974
      $region118: #{encoder_block_forward.1} parent=5 // pred_check_branch
        %2977 = sbr.rel (%p2975) target = $region120
      $region119: #{encoder_block_forward.1} parent=5 // pred_region
        %s2978 = ssub.s32 %s32, 2
        // Predicated region
        $region121: #{encoder_block_forward.1} parent=119 // pred_check
          %p2979 = pneg %p449
        $region122: #{encoder_block_forward.1} parent=119 // pred_check_branch
          %2981 = sbr.rel (%p2979) target = $region124
        $region123: #{encoder_block_forward.1} parent=119 // pred_region
          %s2982 = sand.u32 %s434, 1
          %s2983 = scalar_lea.sflag [#allocation4], %s2982
          %s2984 = sand.u32 %s434, 1
          %s2985 = smul.addr %s2984, 16
          %s2986 = scalar_lea.vmem [#allocation11], %s2985
          %2987 = dma.done %s2983, 256
        $region124: #{encoder_block_forward.1} parent=119 // pred_fallthru
          _
      $region120: #{encoder_block_forward.1} parent=5 // pred_fallthru
        _
    $region6: #{encoder_block_forward.1} parent=1 // loop_footer
      %s36 = sadd.s32 1, %s32
    $region7: #{encoder_block_forward.1} parent=1 // loop_footer_branch
      %31 = sbr.rel target = $region3
    $region8: #{encoder_block_forward.1} parent=1 // loop_exit
      _
    %2988 = vsyncpa [#allocation3], 1
    %s2989 = scalar_lea.sflag [#allocation3], 1
    %2990 = vsyncpa %s2989, 1
    %2991 = vsyncpa [#allocation6], 1
    %2992 = vsyncpa [#allocation9], 1
    %2993 = vsyncpa [#allocation4], 1
    %s2994 = scalar_lea.sflag [#allocation4], 1
    %2995 = vsyncpa %s2994, 1

</llo_original>
